<compile_context>
chip_gen: v7x
topology: tpu7x:2x2x1
jax: 0.10.0
libtpu: 0.0.40
codegen_flags: <defaults>
</compile_context>

<pallas_src>
import functools
import math

import jax
import jax.numpy as jnp
import numpy as np
from jax import lax
from jax.experimental import pallas as pl
from jax.experimental.pallas import tpu as pltpu


def _round_up(x, m):
    return ((x + m - 1) // m) * m


# ---------------------------------------------------------------------------
# Fused PKANet forward kernel (grid-less, whole arrays resident in VMEM)
#   i_all = act_slab @ stacked_emb                   (one MXU push)
#   i1 = i_all[0:T]*ninp + pe ; i2 = i_all[Tp:Tp+T]*ninp + pe ; med = i_all[2Tp]
#   o1 = MHA0(i1); o2 = MHA1(i2); prior = MHA2(med)
#   out = Linear2(ReLU(Linear1(ReLU(cat[o1[-1], o2[-1], prior]))))
# ---------------------------------------------------------------------------
def _pkanet_kernel(act_ref, wa_ref, wb_ref, wc_ref, out_ref, *,
                   T, Tp, num_heads, D, ninp, v_tot):
    hd = D // num_heads
    scale = 1.0 / math.sqrt(hd)
    off_wo = v_tot                 # 3 x (D, D) output projections
    off_wh = v_tot + 3 * D         # (3D, D) first output Linear
    off_b = off_wh + 3 * D         # bias block (8-row-spaced rows)

    # --- fused embedding averaging: one matmul for diag / proc / med means ---
    emb = wa_ref[0:v_tot, :]                                     # (Vtot, D)
    i_all = jnp.dot(act_ref[...], emb, preferred_element_type=jnp.float32)

    pe = wa_ref[off_b:off_b + 1, :]                              # PE row 0
    i1 = i_all[0:T, :] * ninp + pe                               # (T, D)
    i2 = i_all[Tp:Tp + T, :] * ninp + pe                         # (T, D)
    med = i_all[2 * Tp:2 * Tp + 1, :]                            # (1, D)

    # TODO(synk): the reference MultiHeadAttention class is not provided in the
    # spec; a standard scaled-dot-product MHA (fused QKV + output projection,
    # dropout=0.0, no residual / layer norm) is assumed.
    def mha(x, idx):
        wqkv = wb_ref[idx * D:(idx + 1) * D, :]                       # (D, 3D)
        bqkv = wb_ref[3 * D + 8 * idx:3 * D + 8 * idx + 1, :]         # (1, 3D)
        wo = wa_ref[off_wo + idx * D:off_wo + (idx + 1) * D, :]       # (D, D)
        bo = wa_ref[off_b + 8 + 8 * idx:off_b + 9 + 8 * idx, :]       # (1, D)

        qkv = jnp.dot(x, wqkv, preferred_element_type=jnp.float32) + bqkv
        heads = []
        for h in range(num_heads):                    # static unroll (4 heads)
            qh = qkv[:, h * hd:(h + 1) * hd]
            kh = qkv[:, D + h * hd:D + (h + 1) * hd]
            vh = qkv[:, 2 * D + h * hd:2 * D + (h + 1) * hd]
            s = lax.dot_general(qh, kh, (((1,), (1,)), ((), ())),
                                preferred_element_type=jnp.float32) * scale
            s = s - jnp.max(s, axis=-1, keepdims=True)
            e = jnp.exp(s)
            a = e / jnp.sum(e, axis=-1, keepdims=True)
            heads.append(jnp.dot(a, vh, preferred_element_type=jnp.float32))
        # concat the 4 head contexts along lanes (4*32 = 128) -> ONE W_o matmul
        ctx = jnp.concatenate(heads, axis=-1)                         # (t, D)
        return jnp.dot(ctx, wo, preferred_element_type=jnp.float32) + bo

    o1 = mha(i1, 0)
    o2 = mha(i2, 1)
    prior = mha(med, 2)

    # output MLP: ReLU -> Linear(3D, D) -> ReLU -> Linear(D, V2_pad)
    r1 = jnp.maximum(o1[T - 1:T, :], 0.0)
    r2 = jnp.maximum(o2[T - 1:T, :], 0.0)
    r3 = jnp.maximum(prior, 0.0)
    feat = jnp.concatenate([r1, r2, r3], axis=-1)                     # (1, 3D)

    wh = wa_ref[off_wh:off_wh + 3 * D, :]
    bh = wa_ref[off_b + 32:off_b + 33, :]
    hidden = jnp.maximum(
        jnp.dot(feat, wh, preferred_element_type=jnp.float32) + bh, 0.0)

    w_out = wc_ref[0:D, :]
    b_out = wc_ref[D:D + 1, :]
    out_ref[...] = (jnp.dot(hidden, w_out, preferred_element_type=jnp.float32)
                    + b_out)


# ---------------------------------------------------------------------------
# Model wrapper: deterministic params packed into 3 slabs at init, one
# host-built activation slab per call, cached jitted pallas_call per T.
# ---------------------------------------------------------------------------
class PKANetPallas:
    def __init__(self, vocab_size, emb_dim=64, num_heads=4):
        self.vocab_size = list(vocab_size)
        self.emb_dim = emb_dim
        self.num_heads = num_heads
        D = 2 * emb_dim
        self.D = D
        self.ninp = float(D)

        # vocab (contraction) dims zero-padded to 128; logits lane dim padded too
        self.vpad = [_round_up(v, 128) for v in self.vocab_size]
        self.col_off = [0, self.vpad[0], self.vpad[0] + self.vpad[1]]
        self.v_tot = sum(self.vpad)
        self.v2_out = _round_up(self.vocab_size[2], 128)

        key = jax.random.PRNGKey(0)

        def rand(shape, scale=0.1):
            nonlocal key
            key, sub = jax.random.split(key)
            return np.asarray(scale * jax.random.normal(sub, shape),
                              dtype=np.float32)

        off_wo = self.v_tot
        off_wh = self.v_tot + 3 * D
        off_b = off_wh + 3 * D
        rows_a = off_b + 40

        # slab A (lanes = D): stacked emb tables, 3x W_o, W_h, pe + biases
        wa = np.zeros((rows_a, D), np.float32)
        for i in range(3):
            wa[self.col_off[i]:self.col_off[i] + self.vocab_size[i], :] = \
                rand((self.vocab_size[i], D))
        pe = np.zeros((D,), np.float32)
        pe[1::2] = 1.0                 # PositionalEncoding row 0: sin(0)=0, cos(0)=1
        wa[off_b, :] = pe

        # slab B (lanes = 3D): 3x fused W_qkv and their biases
        wb = np.zeros((3 * D + 24, 3 * D), np.float32)
        for i in range(3):
            wb[i * D:(i + 1) * D, :] = rand((D, 3 * D))                 # w_qkv
            wb[3 * D + 8 * i, :] = rand((3 * D,))                       # b_qkv
            wa[off_wo + i * D:off_wo + (i + 1) * D, :] = rand((D, D))   # w_o
            wa[off_b + 8 + 8 * i, :] = rand((D,))                       # b_o
        wa[off_wh:off_wh + 3 * D, :] = rand((3 * D, D))                 # w_h
        wa[off_b + 32, :] = rand((D,))                                  # b_h

        # slab C (lanes = padded logits): final Linear, extra columns zero
        wc = np.zeros((D + 8, self.v2_out), np.float32)
        wc[0:D, :self.vocab_size[2]] = rand((D, self.vocab_size[2]))
        wc[D, :self.vocab_size[2]] = rand((self.vocab_size[2],))

        self.wa = jnp.asarray(wa)
        self.wb = jnp.asarray(wb)
        self.wc = jnp.asarray(wc)

        # NOTE: self.encoders (GRUs), self.query1 / queries1 and MultiHead[3]
        # exist in the reference __init__ but do not influence the returned
        # output; they are intentionally not instantiated here.

        self._calls = {}   # T -> jitted pallas_call (built once, reused)

    def _get_call(self, T):
        fn = self._calls.get(T)
        if fn is None:
            Tp = _round_up(T, 8)
            kernel = functools.partial(
                _pkanet_kernel, T=T, Tp=Tp, num_heads=self.num_heads,
                D=self.D, ninp=self.ninp, v_tot=self.v_tot)
            vmem = pl.BlockSpec(memory_space=pltpu.MemorySpace.VMEM)
            fn = jax.jit(pl.pallas_call(
                kernel,
                in_specs=[vmem, vmem, vmem, vmem],
                out_specs=vmem,
                out_shape=jax.ShapeDtypeStruct((1, self.v2_out), jnp.float32),
            ))
            self._calls[T] = fn
        return fn

    # -- forward: host builds ONE ragged->dense activation slab ---------------
    def forward(self, adms):
        T = len(adms)
        Tp = _round_up(T, 8)
        # rows [0,T): diag visit means; [Tp,Tp+T): procedure means;
        # row 2*Tp: last-visit medication mean.  Columns are the stacked,
        # 128-padded vocab sections matching the stacked embedding slab.
        act = np.zeros((2 * Tp + 8, self.v_tot), np.float32)
        for t, adm in enumerate(adms):
            d = np.asarray(adm[0], np.int64)
            p = np.asarray(adm[1], np.int64)
            np.add.at(act, (t, self.col_off[0] + d), 1.0 / len(adm[0]))
            np.add.at(act, (Tp + t, self.col_off[1] + p), 1.0 / len(adm[1]))
        meds = adms[-1][3] if len(adms[-1][3]) > 0 else [0]
        m = np.asarray(meds, np.int64)
        np.add.at(act, (2 * Tp, self.col_off[2] + m), 1.0 / len(meds))
        # TODO(synk): for realistic (thousands-wide) vocabularies, replace the
        # dense averaging-matrix contraction with scalar-prefetch / DMA row
        # gathers of the embedding tables.

        out_pad = self._get_call(T)(jnp.asarray(act), self.wa, self.wb, self.wc)
        return out_pad[:, :self.vocab_size[2]]


# ---------------------------------------------------------------------------
if __name__ == "__main__":
    vocab_size = [32, 24, 40]     # (diagnosis, procedure, medication)
    emb_dim = 64                  # D = 2*emb_dim = 128 (lane-aligned)
    num_heads = 4

    # adm = [diag_codes, pro_codes, <unused>, med_codes]
    # (the reference forward reads adm[0], adm[1] and adm[3])
    input_adms = [
        [[1, 3, 5, 7], [2, 4, 6], [], [0, 2, 7]],
        [[2, 3, 8, 11], [1, 5, 9], [], [1, 3, 9, 11]],
        [[4, 7, 9, 12, 15], [0, 3, 6, 10], [], [2, 5, 8, 13]],
    ]

    model = PKANetPallas(vocab_size, emb_dim=emb_dim, num_heads=num_heads)
    output = model.forward(input_adms)
    jax.block_until_ready(output)
    # second call: hits the cached jitted pallas_call (no re-trace / re-compile)
    output2 = model.forward(input_adms)
    jax.block_until_ready(output2)

    assert output.shape == (1, vocab_size[2])
    assert np.all(np.isfinite(np.asarray(output)))
    assert np.allclose(np.asarray(output), np.asarray(output2))
    print("KERNEL_OK")
</pallas_src>

<mosaic_0001>
module attributes {stable_mosaic.version = 11 : i64} {
  func.func @_pkanet_kernel(%arg0: memref<24x384xf32, #tpu.memory_space<vmem>>, %arg1: memref<1192x128xf32, #tpu.memory_space<vmem>>, %arg2: memref<408x384xf32, #tpu.memory_space<vmem>>, %arg3: memref<136x128xf32, #tpu.memory_space<vmem>>, %arg4: memref<1x128xf32, #tpu.memory_space<vmem>>) attributes {dimension_semantics = [], scalar_prefetch = 0 : i64, scratch_operands = 0 : i64, tpu.core_type = #tpu.core_type<tc>} {
    %c0 = arith.constant 0 : index
    %c0_0 = arith.constant 0 : index
    %0 = vector.load %arg1[%c0, %c0_0] : memref<1192x128xf32, #tpu.memory_space<vmem>>, vector<384x128xf32>
    %c0_1 = arith.constant 0 : index
    %c0_2 = arith.constant 0 : index
    %1 = vector.load %arg0[%c0_1, %c0_2] : memref<24x384xf32, #tpu.memory_space<vmem>>, vector<24x384xf32>
    %cst = arith.constant dense<0.000000e+00> : vector<24x128xf32>
    %2 = tpu.matmul %1, %0, %cst {dimension_numbers = #tpu.dot_dimension_numbers<[1], [0], [0], [1], [0, 0, 1, 1], [], []>} : vector<24x384xf32>, vector<384x128xf32>, vector<24x128xf32> -> vector<24x128xf32>
    %c1152 = arith.constant 1152 : index
    %c0_3 = arith.constant 0 : index
    %3 = vector.load %arg1[%c1152, %c0_3] : memref<1192x128xf32, #tpu.memory_space<vmem>>, vector<1x128xf32>
    %4 = vector.extract_strided_slice %2 {offsets = [0, 0], sizes = [3, 128], strides = [1, 1]} : vector<24x128xf32> to vector<3x128xf32>
    %cst_4 = arith.constant 1.280000e+02 : f32
    %5 = vector.broadcast %cst_4 : f32 to vector<3x128xf32>
    %6 = arith.mulf %4, %5 : vector<3x128xf32>
    %7 = vector.broadcast %3 : vector<1x128xf32> to vector<3x128xf32>
    %8 = arith.addf %6, %7 : vector<3x128xf32>
    %9 = vector.extract_strided_slice %2 {offsets = [8, 0], sizes = [3, 128], strides = [1, 1]} : vector<24x128xf32> to vector<3x128xf32>
    %cst_5 = arith.constant 1.280000e+02 : f32
    %10 = vector.broadcast %cst_5 : f32 to vector<3x128xf32>
    %11 = arith.mulf %9, %10 : vector<3x128xf32>
    %12 = vector.broadcast %3 : vector<1x128xf32> to vector<3x128xf32>
    %13 = arith.addf %11, %12 : vector<3x128xf32>
    %14 = vector.extract_strided_slice %2 {offsets = [16, 0], sizes = [1, 128], strides = [1, 1]} : vector<24x128xf32> to vector<1x128xf32>
    %c0_6 = arith.constant 0 : index
    %c0_7 = arith.constant 0 : index
    %15 = vector.load %arg2[%c0_6, %c0_7] : memref<408x384xf32, #tpu.memory_space<vmem>>, vector<128x384xf32>
    %c384 = arith.constant 384 : index
    %c0_8 = arith.constant 0 : index
    %16 = vector.load %arg2[%c384, %c0_8] : memref<408x384xf32, #tpu.memory_space<vmem>>, vector<1x384xf32>
    %c384_9 = arith.constant 384 : index
    %c0_10 = arith.constant 0 : index
    %17 = vector.load %arg1[%c384_9, %c0_10] : memref<1192x128xf32, #tpu.memory_space<vmem>>, vector<128x128xf32>
    %c1160 = arith.constant 1160 : index
    %c0_11 = arith.constant 0 : index
    %18 = vector.load %arg1[%c1160, %c0_11] : memref<1192x128xf32, #tpu.memory_space<vmem>>, vector<1x128xf32>
    %cst_12 = arith.constant dense<0.000000e+00> : vector<3x384xf32>
    %19 = tpu.matmul %8, %15, %cst_12 {dimension_numbers = #tpu.dot_dimension_numbers<[1], [0], [0], [1], [0, 0, 1, 1], [], []>} : vector<3x128xf32>, vector<128x384xf32>, vector<3x384xf32> -> vector<3x384xf32>
    %20 = vector.broadcast %16 : vector<1x384xf32> to vector<3x384xf32>
    %21 = arith.addf %19, %20 : vector<3x384xf32>
    %22 = vector.extract_strided_slice %21 {offsets = [0, 0], sizes = [3, 32], strides = [1, 1]} : vector<3x384xf32> to vector<3x32xf32>
    %23 = vector.extract_strided_slice %21 {offsets = [0, 128], sizes = [3, 32], strides = [1, 1]} : vector<3x384xf32> to vector<3x32xf32>
    %24 = vector.extract_strided_slice %21 {offsets = [0, 256], sizes = [3, 32], strides = [1, 1]} : vector<3x384xf32> to vector<3x32xf32>
    %cst_13 = arith.constant dense<0.000000e+00> : vector<3x3xf32>
    %25 = tpu.matmul %22, %23, %cst_13 {dimension_numbers = #tpu.dot_dimension_numbers<[1], [1], [0], [0], [0, 0, 1, 0], [], []>} : vector<3x32xf32>, vector<3x32xf32>, vector<3x3xf32> -> vector<3x3xf32>
    %cst_14 = arith.constant 0.176776692 : f32
    %26 = vector.broadcast %cst_14 : f32 to vector<3x3xf32>
    %27 = arith.mulf %25, %26 : vector<3x3xf32>
    %cst_15 = arith.constant dense<0xFF800000> : vector<3xf32>
    %28 = vector.multi_reduction <maximumf>, %27, %cst_15 [1] : vector<3x3xf32> to vector<3xf32>
    %29 = vector.shape_cast %28 : vector<3xf32> to vector<3x1xf32>
    %30 = vector.broadcast %29 : vector<3x1xf32> to vector<3x3xf32>
    %31 = arith.subf %27, %30 : vector<3x3xf32>
    %32 = math.exp %31 : vector<3x3xf32>
    %cst_16 = arith.constant dense<0.000000e+00> : vector<3xf32>
    %33 = vector.multi_reduction <add>, %32, %cst_16 [1] : vector<3x3xf32> to vector<3xf32>
    %34 = vector.shape_cast %33 : vector<3xf32> to vector<3x1xf32>
    %35 = vector.broadcast %34 : vector<3x1xf32> to vector<3x3xf32>
    %36 = arith.divf %32, %35 : vector<3x3xf32>
    %cst_17 = arith.constant dense<0.000000e+00> : vector<3x32xf32>
    %37 = tpu.matmul %36, %24, %cst_17 {dimension_numbers = #tpu.dot_dimension_numbers<[1], [0], [0], [1], [0, 0, 1, 1], [], []>} : vector<3x3xf32>, vector<3x32xf32>, vector<3x32xf32> -> vector<3x32xf32>
    %38 = vector.extract_strided_slice %21 {offsets = [0, 32], sizes = [3, 32], strides = [1, 1]} : vector<3x384xf32> to vector<3x32xf32>
    %39 = vector.extract_strided_slice %21 {offsets = [0, 160], sizes = [3, 32], strides = [1, 1]} : vector<3x384xf32> to vector<3x32xf32>
    %40 = vector.extract_strided_slice %21 {offsets = [0, 288], sizes = [3, 32], strides = [1, 1]} : vector<3x384xf32> to vector<3x32xf32>
    %cst_18 = arith.constant dense<0.000000e+00> : vector<3x3xf32>
    %41 = tpu.matmul %38, %39, %cst_18 {dimension_numbers = #tpu.dot_dimension_numbers<[1], [1], [0], [0], [0, 0, 1, 0], [], []>} : vector<3x32xf32>, vector<3x32xf32>, vector<3x3xf32> -> vector<3x3xf32>
    %cst_19 = arith.constant 0.176776692 : f32
    %42 = vector.broadcast %cst_19 : f32 to vector<3x3xf32>
    %43 = arith.mulf %41, %42 : vector<3x3xf32>
    %cst_20 = arith.constant dense<0xFF800000> : vector<3xf32>
    %44 = vector.multi_reduction <maximumf>, %43, %cst_20 [1] : vector<3x3xf32> to vector<3xf32>
    %45 = vector.shape_cast %44 : vector<3xf32> to vector<3x1xf32>
    %46 = vector.broadcast %45 : vector<3x1xf32> to vector<3x3xf32>
    %47 = arith.subf %43, %46 : vector<3x3xf32>
    %48 = math.exp %47 : vector<3x3xf32>
    %cst_21 = arith.constant dense<0.000000e+00> : vector<3xf32>
    %49 = vector.multi_reduction <add>, %48, %cst_21 [1] : vector<3x3xf32> to vector<3xf32>
    %50 = vector.shape_cast %49 : vector<3xf32> to vector<3x1xf32>
    %51 = vector.broadcast %50 : vector<3x1xf32> to vector<3x3xf32>
    %52 = arith.divf %48, %51 : vector<3x3xf32>
    %cst_22 = arith.constant dense<0.000000e+00> : vector<3x32xf32>
    %53 = tpu.matmul %52, %40, %cst_22 {dimension_numbers = #tpu.dot_dimension_numbers<[1], [0], [0], [1], [0, 0, 1, 1], [], []>} : vector<3x3xf32>, vector<3x32xf32>, vector<3x32xf32> -> vector<3x32xf32>
    %54 = vector.extract_strided_slice %21 {offsets = [0, 64], sizes = [3, 32], strides = [1, 1]} : vector<3x384xf32> to vector<3x32xf32>
    %55 = vector.extract_strided_slice %21 {offsets = [0, 192], sizes = [3, 32], strides = [1, 1]} : vector<3x384xf32> to vector<3x32xf32>
    %56 = vector.extract_strided_slice %21 {offsets = [0, 320], sizes = [3, 32], strides = [1, 1]} : vector<3x384xf32> to vector<3x32xf32>
    %cst_23 = arith.constant dense<0.000000e+00> : vector<3x3xf32>
    %57 = tpu.matmul %54, %55, %cst_23 {dimension_numbers = #tpu.dot_dimension_numbers<[1], [1], [0], [0], [0, 0, 1, 0], [], []>} : vector<3x32xf32>, vector<3x32xf32>, vector<3x3xf32> -> vector<3x3xf32>
    %cst_24 = arith.constant 0.176776692 : f32
    %58 = vector.broadcast %cst_24 : f32 to vector<3x3xf32>
    %59 = arith.mulf %57, %58 : vector<3x3xf32>
    %cst_25 = arith.constant dense<0xFF800000> : vector<3xf32>
    %60 = vector.multi_reduction <maximumf>, %59, %cst_25 [1] : vector<3x3xf32> to vector<3xf32>
    %61 = vector.shape_cast %60 : vector<3xf32> to vector<3x1xf32>
    %62 = vector.broadcast %61 : vector<3x1xf32> to vector<3x3xf32>
    %63 = arith.subf %59, %62 : vector<3x3xf32>
    %64 = math.exp %63 : vector<3x3xf32>
    %cst_26 = arith.constant dense<0.000000e+00> : vector<3xf32>
    %65 = vector.multi_reduction <add>, %64, %cst_26 [1] : vector<3x3xf32> to vector<3xf32>
    %66 = vector.shape_cast %65 : vector<3xf32> to vector<3x1xf32>
    %67 = vector.broadcast %66 : vector<3x1xf32> to vector<3x3xf32>
    %68 = arith.divf %64, %67 : vector<3x3xf32>
    %cst_27 = arith.constant dense<0.000000e+00> : vector<3x32xf32>
    %69 = tpu.matmul %68, %56, %cst_27 {dimension_numbers = #tpu.dot_dimension_numbers<[1], [0], [0], [1], [0, 0, 1, 1], [], []>} : vector<3x3xf32>, vector<3x32xf32>, vector<3x32xf32> -> vector<3x32xf32>
    %70 = vector.extract_strided_slice %21 {offsets = [0, 96], sizes = [3, 32], strides = [1, 1]} : vector<3x384xf32> to vector<3x32xf32>
    %71 = vector.extract_strided_slice %21 {offsets = [0, 224], sizes = [3, 32], strides = [1, 1]} : vector<3x384xf32> to vector<3x32xf32>
    %72 = vector.extract_strided_slice %21 {offsets = [0, 352], sizes = [3, 32], strides = [1, 1]} : vector<3x384xf32> to vector<3x32xf32>
    %cst_28 = arith.constant dense<0.000000e+00> : vector<3x3xf32>
    %73 = tpu.matmul %70, %71, %cst_28 {dimension_numbers = #tpu.dot_dimension_numbers<[1], [1], [0], [0], [0, 0, 1, 0], [], []>} : vector<3x32xf32>, vector<3x32xf32>, vector<3x3xf32> -> vector<3x3xf32>
    %cst_29 = arith.constant 0.176776692 : f32
    %74 = vector.broadcast %cst_29 : f32 to vector<3x3xf32>
    %75 = arith.mulf %73, %74 : vector<3x3xf32>
    %cst_30 = arith.constant dense<0xFF800000> : vector<3xf32>
    %76 = vector.multi_reduction <maximumf>, %75, %cst_30 [1] : vector<3x3xf32> to vector<3xf32>
    %77 = vector.shape_cast %76 : vector<3xf32> to vector<3x1xf32>
    %78 = vector.broadcast %77 : vector<3x1xf32> to vector<3x3xf32>
    %79 = arith.subf %75, %78 : vector<3x3xf32>
    %80 = math.exp %79 : vector<3x3xf32>
    %cst_31 = arith.constant dense<0.000000e+00> : vector<3xf32>
    %81 = vector.multi_reduction <add>, %80, %cst_31 [1] : vector<3x3xf32> to vector<3xf32>
    %82 = vector.shape_cast %81 : vector<3xf32> to vector<3x1xf32>
    %83 = vector.broadcast %82 : vector<3x1xf32> to vector<3x3xf32>
    %84 = arith.divf %80, %83 : vector<3x3xf32>
    %cst_32 = arith.constant dense<0.000000e+00> : vector<3x32xf32>
    %85 = tpu.matmul %84, %72, %cst_32 {dimension_numbers = #tpu.dot_dimension_numbers<[1], [0], [0], [1], [0, 0, 1, 1], [], []>} : vector<3x3xf32>, vector<3x32xf32>, vector<3x32xf32> -> vector<3x32xf32>
    %86 = tpu.concatenate %37, %53, %69, %85 in 1 : vector<3x32xf32>, vector<3x32xf32>, vector<3x32xf32>, vector<3x32xf32> -> vector<3x128xf32>
    %cst_33 = arith.constant dense<0.000000e+00> : vector<3x128xf32>
    %87 = tpu.matmul %86, %17, %cst_33 {dimension_numbers = #tpu.dot_dimension_numbers<[1], [0], [0], [1], [0, 0, 1, 1], [], []>} : vector<3x128xf32>, vector<128x128xf32>, vector<3x128xf32> -> vector<3x128xf32>
    %88 = vector.broadcast %18 : vector<1x128xf32> to vector<3x128xf32>
    %89 = arith.addf %87, %88 : vector<3x128xf32>
    %c128 = arith.constant 128 : index
    %c0_34 = arith.constant 0 : index
    %90 = vector.load %arg2[%c128, %c0_34] : memref<408x384xf32, #tpu.memory_space<vmem>>, vector<128x384xf32>
    %c392 = arith.constant 392 : index
    %c0_35 = arith.constant 0 : index
    %91 = vector.load %arg2[%c392, %c0_35] : memref<408x384xf32, #tpu.memory_space<vmem>>, vector<1x384xf32>
    %c512 = arith.constant 512 : index
    %c0_36 = arith.constant 0 : index
    %92 = vector.load %arg1[%c512, %c0_36] : memref<1192x128xf32, #tpu.memory_space<vmem>>, vector<128x128xf32>
    %c1168 = arith.constant 1168 : index
    %c0_37 = arith.constant 0 : index
    %93 = vector.load %arg1[%c1168, %c0_37] : memref<1192x128xf32, #tpu.memory_space<vmem>>, vector<1x128xf32>
    %cst_38 = arith.constant dense<0.000000e+00> : vector<3x384xf32>
    %94 = tpu.matmul %13, %90, %cst_38 {dimension_numbers = #tpu.dot_dimension_numbers<[1], [0], [0], [1], [0, 0, 1, 1], [], []>} : vector<3x128xf32>, vector<128x384xf32>, vector<3x384xf32> -> vector<3x384xf32>
    %95 = vector.broadcast %91 : vector<1x384xf32> to vector<3x384xf32>
    %96 = arith.addf %94, %95 : vector<3x384xf32>
    %97 = vector.extract_strided_slice %96 {offsets = [0, 0], sizes = [3, 32], strides = [1, 1]} : vector<3x384xf32> to vector<3x32xf32>
    %98 = vector.extract_strided_slice %96 {offsets = [0, 128], sizes = [3, 32], strides = [1, 1]} : vector<3x384xf32> to vector<3x32xf32>
    %99 = vector.extract_strided_slice %96 {offsets = [0, 256], sizes = [3, 32], strides = [1, 1]} : vector<3x384xf32> to vector<3x32xf32>
    %cst_39 = arith.constant dense<0.000000e+00> : vector<3x3xf32>
    %100 = tpu.matmul %97, %98, %cst_39 {dimension_numbers = #tpu.dot_dimension_numbers<[1], [1], [0], [0], [0, 0, 1, 0], [], []>} : vector<3x32xf32>, vector<3x32xf32>, vector<3x3xf32> -> vector<3x3xf32>
    %cst_40 = arith.constant 0.176776692 : f32
    %101 = vector.broadcast %cst_40 : f32 to vector<3x3xf32>
    %102 = arith.mulf %100, %101 : vector<3x3xf32>
    %cst_41 = arith.constant dense<0xFF800000> : vector<3xf32>
    %103 = vector.multi_reduction <maximumf>, %102, %cst_41 [1] : vector<3x3xf32> to vector<3xf32>
    %104 = vector.shape_cast %103 : vector<3xf32> to vector<3x1xf32>
    %105 = vector.broadcast %104 : vector<3x1xf32> to vector<3x3xf32>
    %106 = arith.subf %102, %105 : vector<3x3xf32>
    %107 = math.exp %106 : vector<3x3xf32>
    %cst_42 = arith.constant dense<0.000000e+00> : vector<3xf32>
    %108 = vector.multi_reduction <add>, %107, %cst_42 [1] : vector<3x3xf32> to vector<3xf32>
    %109 = vector.shape_cast %108 : vector<3xf32> to vector<3x1xf32>
    %110 = vector.broadcast %109 : vector<3x1xf32> to vector<3x3xf32>
    %111 = arith.divf %107, %110 : vector<3x3xf32>
    %cst_43 = arith.constant dense<0.000000e+00> : vector<3x32xf32>
    %112 = tpu.matmul %111, %99, %cst_43 {dimension_numbers = #tpu.dot_dimension_numbers<[1], [0], [0], [1], [0, 0, 1, 1], [], []>} : vector<3x3xf32>, vector<3x32xf32>, vector<3x32xf32> -> vector<3x32xf32>
    %113 = vector.extract_strided_slice %96 {offsets = [0, 32], sizes = [3, 32], strides = [1, 1]} : vector<3x384xf32> to vector<3x32xf32>
    %114 = vector.extract_strided_slice %96 {offsets = [0, 160], sizes = [3, 32], strides = [1, 1]} : vector<3x384xf32> to vector<3x32xf32>
    %115 = vector.extract_strided_slice %96 {offsets = [0, 288], sizes = [3, 32], strides = [1, 1]} : vector<3x384xf32> to vector<3x32xf32>
    %cst_44 = arith.constant dense<0.000000e+00> : vector<3x3xf32>
    %116 = tpu.matmul %113, %114, %cst_44 {dimension_numbers = #tpu.dot_dimension_numbers<[1], [1], [0], [0], [0, 0, 1, 0], [], []>} : vector<3x32xf32>, vector<3x32xf32>, vector<3x3xf32> -> vector<3x3xf32>
    %cst_45 = arith.constant 0.176776692 : f32
    %117 = vector.broadcast %cst_45 : f32 to vector<3x3xf32>
    %118 = arith.mulf %116, %117 : vector<3x3xf32>
    %cst_46 = arith.constant dense<0xFF800000> : vector<3xf32>
    %119 = vector.multi_reduction <maximumf>, %118, %cst_46 [1] : vector<3x3xf32> to vector<3xf32>
    %120 = vector.shape_cast %119 : vector<3xf32> to vector<3x1xf32>
    %121 = vector.broadcast %120 : vector<3x1xf32> to vector<3x3xf32>
    %122 = arith.subf %118, %121 : vector<3x3xf32>
    %123 = math.exp %122 : vector<3x3xf32>
    %cst_47 = arith.constant dense<0.000000e+00> : vector<3xf32>
    %124 = vector.multi_reduction <add>, %123, %cst_47 [1] : vector<3x3xf32> to vector<3xf32>
    %125 = vector.shape_cast %124 : vector<3xf32> to vector<3x1xf32>
    %126 = vector.broadcast %125 : vector<3x1xf32> to vector<3x3xf32>
    %127 = arith.divf %123, %126 : vector<3x3xf32>
    %cst_48 = arith.constant dense<0.000000e+00> : vector<3x32xf32>
    %128 = tpu.matmul %127, %115, %cst_48 {dimension_numbers = #tpu.dot_dimension_numbers<[1], [0], [0], [1], [0, 0, 1, 1], [], []>} : vector<3x3xf32>, vector<3x32xf32>, vector<3x32xf32> -> vector<3x32xf32>
    %129 = vector.extract_strided_slice %96 {offsets = [0, 64], sizes = [3, 32], strides = [1, 1]} : vector<3x384xf32> to vector<3x32xf32>
    %130 = vector.extract_strided_slice %96 {offsets = [0, 192], sizes = [3, 32], strides = [1, 1]} : vector<3x384xf32> to vector<3x32xf32>
    %131 = vector.extract_strided_slice %96 {offsets = [0, 320], sizes = [3, 32], strides = [1, 1]} : vector<3x384xf32> to vector<3x32xf32>
    %cst_49 = arith.constant dense<0.000000e+00> : vector<3x3xf32>
    %132 = tpu.matmul %129, %130, %cst_49 {dimension_numbers = #tpu.dot_dimension_numbers<[1], [1], [0], [0], [0, 0, 1, 0], [], []>} : vector<3x32xf32>, vector<3x32xf32>, vector<3x3xf32> -> vector<3x3xf32>
    %cst_50 = arith.constant 0.176776692 : f32
    %133 = vector.broadcast %cst_50 : f32 to vector<3x3xf32>
    %134 = arith.mulf %132, %133 : vector<3x3xf32>
    %cst_51 = arith.constant dense<0xFF800000> : vector<3xf32>
    %135 = vector.multi_reduction <maximumf>, %134, %cst_51 [1] : vector<3x3xf32> to vector<3xf32>
    %136 = vector.shape_cast %135 : vector<3xf32> to vector<3x1xf32>
    %137 = vector.broadcast %136 : vector<3x1xf32> to vector<3x3xf32>
    %138 = arith.subf %134, %137 : vector<3x3xf32>
    %139 = math.exp %138 : vector<3x3xf32>
    %cst_52 = arith.constant dense<0.000000e+00> : vector<3xf32>
    %140 = vector.multi_reduction <add>, %139, %cst_52 [1] : vector<3x3xf32> to vector<3xf32>
    %141 = vector.shape_cast %140 : vector<3xf32> to vector<3x1xf32>
    %142 = vector.broadcast %141 : vector<3x1xf32> to vector<3x3xf32>
    %143 = arith.divf %139, %142 : vector<3x3xf32>
    %cst_53 = arith.constant dense<0.000000e+00> : vector<3x32xf32>
    %144 = tpu.matmul %143, %131, %cst_53 {dimension_numbers = #tpu.dot_dimension_numbers<[1], [0], [0], [1], [0, 0, 1, 1], [], []>} : vector<3x3xf32>, vector<3x32xf32>, vector<3x32xf32> -> vector<3x32xf32>
    %145 = vector.extract_strided_slice %96 {offsets = [0, 96], sizes = [3, 32], strides = [1, 1]} : vector<3x384xf32> to vector<3x32xf32>
    %146 = vector.extract_strided_slice %96 {offsets = [0, 224], sizes = [3, 32], strides = [1, 1]} : vector<3x384xf32> to vector<3x32xf32>
    %147 = vector.extract_strided_slice %96 {offsets = [0, 352], sizes = [3, 32], strides = [1, 1]} : vector<3x384xf32> to vector<3x32xf32>
    %cst_54 = arith.constant dense<0.000000e+00> : vector<3x3xf32>
    %148 = tpu.matmul %145, %146, %cst_54 {dimension_numbers = #tpu.dot_dimension_numbers<[1], [1], [0], [0], [0, 0, 1, 0], [], []>} : vector<3x32xf32>, vector<3x32xf32>, vector<3x3xf32> -> vector<3x3xf32>
    %cst_55 = arith.constant 0.176776692 : f32
    %149 = vector.broadcast %cst_55 : f32 to vector<3x3xf32>
    %150 = arith.mulf %148, %149 : vector<3x3xf32>
    %cst_56 = arith.constant dense<0xFF800000> : vector<3xf32>
    %151 = vector.multi_reduction <maximumf>, %150, %cst_56 [1] : vector<3x3xf32> to vector<3xf32>
    %152 = vector.shape_cast %151 : vector<3xf32> to vector<3x1xf32>
    %153 = vector.broadcast %152 : vector<3x1xf32> to vector<3x3xf32>
    %154 = arith.subf %150, %153 : vector<3x3xf32>
    %155 = math.exp %154 : vector<3x3xf32>
    %cst_57 = arith.constant dense<0.000000e+00> : vector<3xf32>
    %156 = vector.multi_reduction <add>, %155, %cst_57 [1] : vector<3x3xf32> to vector<3xf32>
    %157 = vector.shape_cast %156 : vector<3xf32> to vector<3x1xf32>
    %158 = vector.broadcast %157 : vector<3x1xf32> to vector<3x3xf32>
    %159 = arith.divf %155, %158 : vector<3x3xf32>
    %cst_58 = arith.constant dense<0.000000e+00> : vector<3x32xf32>
    %160 = tpu.matmul %159, %147, %cst_58 {dimension_numbers = #tpu.dot_dimension_numbers<[1], [0], [0], [1], [0, 0, 1, 1], [], []>} : vector<3x3xf32>, vector<3x32xf32>, vector<3x32xf32> -> vector<3x32xf32>
    %161 = tpu.concatenate %112, %128, %144, %160 in 1 : vector<3x32xf32>, vector<3x32xf32>, vector<3x32xf32>, vector<3x32xf32> -> vector<3x128xf32>
    %cst_59 = arith.constant dense<0.000000e+00> : vector<3x128xf32>
    %162 = tpu.matmul %161, %92, %cst_59 {dimension_numbers = #tpu.dot_dimension_numbers<[1], [0], [0], [1], [0, 0, 1, 1], [], []>} : vector<3x128xf32>, vector<128x128xf32>, vector<3x128xf32> -> vector<3x128xf32>
    %163 = vector.broadcast %93 : vector<1x128xf32> to vector<3x128xf32>
    %164 = arith.addf %162, %163 : vector<3x128xf32>
    %c256 = arith.constant 256 : index
    %c0_60 = arith.constant 0 : index
    %165 = vector.load %arg2[%c256, %c0_60] : memref<408x384xf32, #tpu.memory_space<vmem>>, vector<128x384xf32>
    %c400 = arith.constant 400 : index
    %c0_61 = arith.constant 0 : index
    %166 = vector.load %arg2[%c400, %c0_61] : memref<408x384xf32, #tpu.memory_space<vmem>>, vector<1x384xf32>
    %c640 = arith.constant 640 : index
    %c0_62 = arith.constant 0 : index
    %167 = vector.load %arg1[%c640, %c0_62] : memref<1192x128xf32, #tpu.memory_space<vmem>>, vector<128x128xf32>
    %c1176 = arith.constant 1176 : index
    %c0_63 = arith.constant 0 : index
    %168 = vector.load %arg1[%c1176, %c0_63] : memref<1192x128xf32, #tpu.memory_space<vmem>>, vector<1x128xf32>
    %cst_64 = arith.constant dense<0.000000e+00> : vector<1x384xf32>
    %169 = tpu.matmul %14, %165, %cst_64 {dimension_numbers = #tpu.dot_dimension_numbers<[1], [0], [0], [1], [0, 0, 1, 1], [], []>} : vector<1x128xf32>, vector<128x384xf32>, vector<1x384xf32> -> vector<1x384xf32>
    %170 = arith.addf %169, %166 : vector<1x384xf32>
    %171 = vector.extract_strided_slice %170 {offsets = [0, 0], sizes = [1, 32], strides = [1, 1]} : vector<1x384xf32> to vector<1x32xf32>
    %172 = vector.extract_strided_slice %170 {offsets = [0, 128], sizes = [1, 32], strides = [1, 1]} : vector<1x384xf32> to vector<1x32xf32>
    %173 = vector.extract_strided_slice %170 {offsets = [0, 256], sizes = [1, 32], strides = [1, 1]} : vector<1x384xf32> to vector<1x32xf32>
    %cst_65 = arith.constant dense<0.000000e+00> : vector<1x1xf32>
    %174 = tpu.matmul %171, %172, %cst_65 {dimension_numbers = #tpu.dot_dimension_numbers<[1], [1], [0], [0], [0, 0, 1, 0], [], []>} : vector<1x32xf32>, vector<1x32xf32>, vector<1x1xf32> -> vector<1x1xf32>
    %cst_66 = arith.constant 0.176776692 : f32
    %175 = vector.broadcast %cst_66 : f32 to vector<1x1xf32>
    %176 = arith.mulf %174, %175 : vector<1x1xf32>
    %cst_67 = arith.constant dense<0xFF800000> : vector<1xf32>
    %177 = vector.multi_reduction <maximumf>, %176, %cst_67 [1] : vector<1x1xf32> to vector<1xf32>
    %178 = vector.shape_cast %177 : vector<1xf32> to vector<1x1xf32>
    %179 = arith.subf %176, %178 : vector<1x1xf32>
    %180 = math.exp %179 : vector<1x1xf32>
    %cst_68 = arith.constant dense<0.000000e+00> : vector<1xf32>
    %181 = vector.multi_reduction <add>, %180, %cst_68 [1] : vector<1x1xf32> to vector<1xf32>
    %182 = vector.shape_cast %181 : vector<1xf32> to vector<1x1xf32>
    %183 = arith.divf %180, %182 : vector<1x1xf32>
    %cst_69 = arith.constant dense<0.000000e+00> : vector<1x32xf32>
    %184 = tpu.matmul %183, %173, %cst_69 {dimension_numbers = #tpu.dot_dimension_numbers<[1], [0], [0], [1], [0, 0, 1, 1], [], []>} : vector<1x1xf32>, vector<1x32xf32>, vector<1x32xf32> -> vector<1x32xf32>
    %185 = vector.extract_strided_slice %170 {offsets = [0, 32], sizes = [1, 32], strides = [1, 1]} : vector<1x384xf32> to vector<1x32xf32>
    %186 = vector.extract_strided_slice %170 {offsets = [0, 160], sizes = [1, 32], strides = [1, 1]} : vector<1x384xf32> to vector<1x32xf32>
    %187 = vector.extract_strided_slice %170 {offsets = [0, 288], sizes = [1, 32], strides = [1, 1]} : vector<1x384xf32> to vector<1x32xf32>
    %cst_70 = arith.constant dense<0.000000e+00> : vector<1x1xf32>
    %188 = tpu.matmul %185, %186, %cst_70 {dimension_numbers = #tpu.dot_dimension_numbers<[1], [1], [0], [0], [0, 0, 1, 0], [], []>} : vector<1x32xf32>, vector<1x32xf32>, vector<1x1xf32> -> vector<1x1xf32>
    %cst_71 = arith.constant 0.176776692 : f32
    %189 = vector.broadcast %cst_71 : f32 to vector<1x1xf32>
    %190 = arith.mulf %188, %189 : vector<1x1xf32>
    %cst_72 = arith.constant dense<0xFF800000> : vector<1xf32>
    %191 = vector.multi_reduction <maximumf>, %190, %cst_72 [1] : vector<1x1xf32> to vector<1xf32>
    %192 = vector.shape_cast %191 : vector<1xf32> to vector<1x1xf32>
    %193 = arith.subf %190, %192 : vector<1x1xf32>
    %194 = math.exp %193 : vector<1x1xf32>
    %cst_73 = arith.constant dense<0.000000e+00> : vector<1xf32>
    %195 = vector.multi_reduction <add>, %194, %cst_73 [1] : vector<1x1xf32> to vector<1xf32>
    %196 = vector.shape_cast %195 : vector<1xf32> to vector<1x1xf32>
    %197 = arith.divf %194, %196 : vector<1x1xf32>
    %cst_74 = arith.constant dense<0.000000e+00> : vector<1x32xf32>
    %198 = tpu.matmul %197, %187, %cst_74 {dimension_numbers = #tpu.dot_dimension_numbers<[1], [0], [0], [1], [0, 0, 1, 1], [], []>} : vector<1x1xf32>, vector<1x32xf32>, vector<1x32xf32> -> vector<1x32xf32>
    %199 = vector.extract_strided_slice %170 {offsets = [0, 64], sizes = [1, 32], strides = [1, 1]} : vector<1x384xf32> to vector<1x32xf32>
    %200 = vector.extract_strided_slice %170 {offsets = [0, 192], sizes = [1, 32], strides = [1, 1]} : vector<1x384xf32> to vector<1x32xf32>
    %201 = vector.extract_strided_slice %170 {offsets = [0, 320], sizes = [1, 32], strides = [1, 1]} : vector<1x384xf32> to vector<1x32xf32>
    %cst_75 = arith.constant dense<0.000000e+00> : vector<1x1xf32>
    %202 = tpu.matmul %199, %200, %cst_75 {dimension_numbers = #tpu.dot_dimension_numbers<[1], [1], [0], [0], [0, 0, 1, 0], [], []>} : vector<1x32xf32>, vector<1x32xf32>, vector<1x1xf32> -> vector<1x1xf32>
    %cst_76 = arith.constant 0.176776692 : f32
    %203 = vector.broadcast %cst_76 : f32 to vector<1x1xf32>
    %204 = arith.mulf %202, %203 : vector<1x1xf32>
    %cst_77 = arith.constant dense<0xFF800000> : vector<1xf32>
    %205 = vector.multi_reduction <maximumf>, %204, %cst_77 [1] : vector<1x1xf32> to vector<1xf32>
    %206 = vector.shape_cast %205 : vector<1xf32> to vector<1x1xf32>
    %207 = arith.subf %204, %206 : vector<1x1xf32>
    %208 = math.exp %207 : vector<1x1xf32>
    %cst_78 = arith.constant dense<0.000000e+00> : vector<1xf32>
    %209 = vector.multi_reduction <add>, %208, %cst_78 [1] : vector<1x1xf32> to vector<1xf32>
    %210 = vector.shape_cast %209 : vector<1xf32> to vector<1x1xf32>
    %211 = arith.divf %208, %210 : vector<1x1xf32>
    %cst_79 = arith.constant dense<0.000000e+00> : vector<1x32xf32>
    %212 = tpu.matmul %211, %201, %cst_79 {dimension_numbers = #tpu.dot_dimension_numbers<[1], [0], [0], [1], [0, 0, 1, 1], [], []>} : vector<1x1xf32>, vector<1x32xf32>, vector<1x32xf32> -> vector<1x32xf32>
    %213 = vector.extract_strided_slice %170 {offsets = [0, 96], sizes = [1, 32], strides = [1, 1]} : vector<1x384xf32> to vector<1x32xf32>
    %214 = vector.extract_strided_slice %170 {offsets = [0, 224], sizes = [1, 32], strides = [1, 1]} : vector<1x384xf32> to vector<1x32xf32>
    %215 = vector.extract_strided_slice %170 {offsets = [0, 352], sizes = [1, 32], strides = [1, 1]} : vector<1x384xf32> to vector<1x32xf32>
    %cst_80 = arith.constant dense<0.000000e+00> : vector<1x1xf32>
    %216 = tpu.matmul %213, %214, %cst_80 {dimension_numbers = #tpu.dot_dimension_numbers<[1], [1], [0], [0], [0, 0, 1, 0], [], []>} : vector<1x32xf32>, vector<1x32xf32>, vector<1x1xf32> -> vector<1x1xf32>
    %cst_81 = arith.constant 0.176776692 : f32
    %217 = vector.broadcast %cst_81 : f32 to vector<1x1xf32>
    %218 = arith.mulf %216, %217 : vector<1x1xf32>
    %cst_82 = arith.constant dense<0xFF800000> : vector<1xf32>
    %219 = vector.multi_reduction <maximumf>, %218, %cst_82 [1] : vector<1x1xf32> to vector<1xf32>
    %220 = vector.shape_cast %219 : vector<1xf32> to vector<1x1xf32>
    %221 = arith.subf %218, %220 : vector<1x1xf32>
    %222 = math.exp %221 : vector<1x1xf32>
    %cst_83 = arith.constant dense<0.000000e+00> : vector<1xf32>
    %223 = vector.multi_reduction <add>, %222, %cst_83 [1] : vector<1x1xf32> to vector<1xf32>
    %224 = vector.shape_cast %223 : vector<1xf32> to vector<1x1xf32>
    %225 = arith.divf %222, %224 : vector<1x1xf32>
    %cst_84 = arith.constant dense<0.000000e+00> : vector<1x32xf32>
    %226 = tpu.matmul %225, %215, %cst_84 {dimension_numbers = #tpu.dot_dimension_numbers<[1], [0], [0], [1], [0, 0, 1, 1], [], []>} : vector<1x1xf32>, vector<1x32xf32>, vector<1x32xf32> -> vector<1x32xf32>
    %227 = tpu.concatenate %184, %198, %212, %226 in 1 : vector<1x32xf32>, vector<1x32xf32>, vector<1x32xf32>, vector<1x32xf32> -> vector<1x128xf32>
    %cst_85 = arith.constant dense<0.000000e+00> : vector<1x128xf32>
    %228 = tpu.matmul %227, %167, %cst_85 {dimension_numbers = #tpu.dot_dimension_numbers<[1], [0], [0], [1], [0, 0, 1, 1], [], []>} : vector<1x128xf32>, vector<128x128xf32>, vector<1x128xf32> -> vector<1x128xf32>
    %229 = arith.addf %228, %168 : vector<1x128xf32>
    %230 = vector.extract_strided_slice %89 {offsets = [2, 0], sizes = [1, 128], strides = [1, 1]} : vector<3x128xf32> to vector<1x128xf32>
    %cst_86 = arith.constant 0.000000e+00 : f32
    %231 = vector.broadcast %cst_86 : f32 to vector<1x128xf32>
    %232 = arith.maximumf %230, %231 : vector<1x128xf32>
    %233 = vector.extract_strided_slice %164 {offsets = [2, 0], sizes = [1, 128], strides = [1, 1]} : vector<3x128xf32> to vector<1x128xf32>
    %cst_87 = arith.constant 0.000000e+00 : f32
    %234 = vector.broadcast %cst_87 : f32 to vector<1x128xf32>
    %235 = arith.maximumf %233, %234 : vector<1x128xf32>
    %cst_88 = arith.constant 0.000000e+00 : f32
    %236 = vector.broadcast %cst_88 : f32 to vector<1x128xf32>
    %237 = arith.maximumf %229, %236 : vector<1x128xf32>
    %238 = tpu.concatenate %232, %235, %237 in 1 : vector<1x128xf32>, vector<1x128xf32>, vector<1x128xf32> -> vector<1x384xf32>
    %c768 = arith.constant 768 : index
    %c0_89 = arith.constant 0 : index
    %239 = vector.load %arg1[%c768, %c0_89] : memref<1192x128xf32, #tpu.memory_space<vmem>>, vector<384x128xf32>
    %c1184 = arith.constant 1184 : index
    %c0_90 = arith.constant 0 : index
    %240 = vector.load %arg1[%c1184, %c0_90] : memref<1192x128xf32, #tpu.memory_space<vmem>>, vector<1x128xf32>
    %cst_91 = arith.constant dense<0.000000e+00> : vector<1x128xf32>
    %241 = tpu.matmul %238, %239, %cst_91 {dimension_numbers = #tpu.dot_dimension_numbers<[1], [0], [0], [1], [0, 0, 1, 1], [], []>} : vector<1x384xf32>, vector<384x128xf32>, vector<1x128xf32> -> vector<1x128xf32>
    %242 = arith.addf %241, %240 : vector<1x128xf32>
    %cst_92 = arith.constant 0.000000e+00 : f32
    %243 = vector.broadcast %cst_92 : f32 to vector<1x128xf32>
    %244 = arith.maximumf %242, %243 : vector<1x128xf32>
    %c0_93 = arith.constant 0 : index
    %c0_94 = arith.constant 0 : index
    %245 = vector.load %arg3[%c0_93, %c0_94] : memref<136x128xf32, #tpu.memory_space<vmem>>, vector<128x128xf32>
    %c128_95 = arith.constant 128 : index
    %c0_96 = arith.constant 0 : index
    %246 = vector.load %arg3[%c128_95, %c0_96] : memref<136x128xf32, #tpu.memory_space<vmem>>, vector<1x128xf32>
    %cst_97 = arith.constant dense<0.000000e+00> : vector<1x128xf32>
    %247 = tpu.matmul %244, %245, %cst_97 {dimension_numbers = #tpu.dot_dimension_numbers<[1], [0], [0], [1], [0, 0, 1, 1], [], []>} : vector<1x128xf32>, vector<128x128xf32>, vector<1x128xf32> -> vector<1x128xf32>
    %248 = arith.addf %247, %246 : vector<1x128xf32>
    %c0_98 = arith.constant 0 : index
    %c0_99 = arith.constant 0 : index
    %249 = vector.load %arg4[%c0_98, %c0_99] : memref<1x128xf32, #tpu.memory_space<vmem>>, vector<1x128xf32>
    tpu.vector_store %arg4[%c0_98, %c0_99], %248 {strides = array<i32>} : memref<1x128xf32, #tpu.memory_space<vmem>>, vector<1x128xf32>,
    return
  }
}

</mosaic_0001>

<llo_original>
// kernel: tpu_custom_call.1
$region0: #{tpu_custom_call.1}
  #allocation0 [shape = 'u32[]', space=smem, size = 0x4, offset = 0x4, fixed_abs, tag = 'smem constant byte address 0x4 - core index']
  #allocation1 [shape = 'u32[144,128]{1,0:T(1,128)}', space=vmem, size = 0x12000, scoped, tag = 'internal scratch']
  %s0 = inlined_call_operand.hbm [shape: f32[24,384], index: 0, kind: input, shape index: {}]
  %s1 = inlined_call_operand.hbm [shape: f32[1192,128], index: 1, kind: input, shape index: {}]
  %s2 = inlined_call_operand.hbm [shape: f32[408,384], index: 2, kind: input, shape index: {}]
  %s3 = inlined_call_operand.hbm [shape: f32[136,128], index: 3, kind: input, shape index: {}]
  %s4 = inlined_call_operand.hbm [shape: f32[1,128], index: 4, kind: output, shape index: {}]
  %s5 = sld [smem:[#allocation0]]
  $region42: #{tpu_custom_call.1} parent=0
    _
  %s7 = ssub.s32 1, %s5
  %s8 = scalar_select 0, %s7, %s5
  $region1: #{tpu_custom_call.1} parent=0
    #allocation2 [shape = 'u8[36864]{0}', space=vmem, size = 0x9000, scoped, tag = 'input window, operand 0, single buffered']
    #allocation3 [shape = 's32[1]{0}', space=sflag, size = 0x4, scoped, tag = 'scoped memory for tpu_custom_call.1']
    #allocation4 [shape = 's32[1]{0}', space=sflag, size = 0x4, scoped, tag = 'scoped memory for tpu_custom_call.1']
    #allocation5 [shape = 'u8[610304]{0}', space=vmem, size = 0x95000, scoped, tag = 'input window, operand 1, single buffered']
    #allocation6 [shape = 's32[1]{0}', space=sflag, size = 0x4, scoped, tag = 'scoped memory for tpu_custom_call.1']
    #allocation7 [shape = 'u8[626688]{0}', space=vmem, size = 0x99000, scoped, tag = 'input window, operand 2, single buffered']
    #allocation8 [shape = 'u8[69632]{0}', space=vmem, size = 0x11000, scoped, tag = 'input window, operand 3, single buffered']
    #allocation9 [shape = 's32[1]{0}', space=sflag, size = 0x4, scoped, tag = 'scoped memory for tpu_custom_call.1']
    #allocation10 [shape = 'u8[512]{0}', space=vmem, size = 0x400, scoped, tag = 'output window, operand 0, single buffered']
    %9 = vsyncpa [#allocation3], 0
    %10 = vsyncpa [#allocation6], 0
    %11 = vsyncpa [#allocation9], 0
    %12 = vsyncpa [#allocation4], 0
    // Predicated region
    $region2: #{tpu_custom_call.1} parent=1 // pred_check
      _
    $region3: #{tpu_custom_call.1} parent=1 // pred_check_branch
      %14 = sbr.rel (0) target = $region5
    $region4: #{tpu_custom_call.1} parent=1 // pred_region
      %s16 = ssub.s32 1152, 1152
      %17 = vsyncadd [#allocation3], %s16
      %s18 = sshll.u32 [#allocation2], 4
      %s19 = int_to_ptr.vmem [resolvable:$true] %s18
      %24 = dma.hbm_to_vmem [thread:$0]  %s0, 1152, %s19, [#allocation3], 384, 384, 24
    $region5: #{tpu_custom_call.1} parent=1 // pred_fallthru
      _
    // Predicated region
    $region6: #{tpu_custom_call.1} parent=1 // pred_check
      _
    $region7: #{tpu_custom_call.1} parent=1 // pred_check_branch
      %26 = sbr.rel (0) target = $region9
    $region8: #{tpu_custom_call.1} parent=1 // pred_region
      %s28 = ssub.s32 19072, 19072
      %29 = vsyncadd [#allocation6], %s28
      %s30 = sshll.u32 [#allocation5], 4
      %s31 = int_to_ptr.vmem [resolvable:$true] %s30
      %36 = dma.hbm_to_vmem [thread:$0]  %s1, 19072, %s31, [#allocation6], 128, 128, 8
    $region9: #{tpu_custom_call.1} parent=1 // pred_fallthru
      _
    // Predicated region
    $region10: #{tpu_custom_call.1} parent=1 // pred_check
      _
    $region11: #{tpu_custom_call.1} parent=1 // pred_check_branch
      %38 = sbr.rel (0) target = $region13
    $region12: #{tpu_custom_call.1} parent=1 // pred_region
      %s40 = ssub.s32 19584, 19584
      %41 = vsyncadd [#allocation6], %s40
      %s42 = sshll.u32 [#allocation7], 4
      %s43 = int_to_ptr.vmem [resolvable:$true] %s42
      %48 = dma.hbm_to_vmem [thread:$0]  %s2, 19584, %s43, [#allocation6], 384, 384, 24
    $region13: #{tpu_custom_call.1} parent=1 // pred_fallthru
      _
    // Predicated region
    $region14: #{tpu_custom_call.1} parent=1 // pred_check
      _
    $region15: #{tpu_custom_call.1} parent=1 // pred_check_branch
      %50 = sbr.rel (0) target = $region17
    $region16: #{tpu_custom_call.1} parent=1 // pred_region
      %s52 = ssub.s32 2176, 2176
      %53 = vsyncadd [#allocation9], %s52
      %s54 = sshll.u32 [#allocation8], 4
      %s55 = int_to_ptr.vmem [resolvable:$true] %s54
      %60 = dma.hbm_to_vmem [thread:$0]  %s3, 2176, %s55, [#allocation9], 128, 128, 8
    $region17: #{tpu_custom_call.1} parent=1 // pred_fallthru
      _
    // Predicated region
    $region18: #{tpu_custom_call.1} parent=1 // pred_check
      _
    $region19: #{tpu_custom_call.1} parent=1 // pred_check_branch
      %62 = sbr.rel (0) target = $region21
    $region20: #{tpu_custom_call.1} parent=1 // pred_region
      %63 = dma.done [#allocation3], 1152
    $region21: #{tpu_custom_call.1} parent=1 // pred_fallthru
      _
    // Predicated region
    $region22: #{tpu_custom_call.1} parent=1 // pred_check
      _
    $region23: #{tpu_custom_call.1} parent=1 // pred_check_branch
      %65 = sbr.rel (0) target = $region25
    $region24: #{tpu_custom_call.1} parent=1 // pred_region
      %66 = dma.done [#allocation6], 19072
    $region25: #{tpu_custom_call.1} parent=1 // pred_fallthru
      _
    // Predicated region
    $region26: #{tpu_custom_call.1} parent=1 // pred_check
      _
    $region27: #{tpu_custom_call.1} parent=1 // pred_check_branch
      %68 = sbr.rel (0) target = $region29
    $region28: #{tpu_custom_call.1} parent=1 // pred_region
      %69 = dma.done [#allocation6], 19584
    $region29: #{tpu_custom_call.1} parent=1 // pred_fallthru
      _
    // Predicated region
    $region30: #{tpu_custom_call.1} parent=1 // pred_check
      _
    $region31: #{tpu_custom_call.1} parent=1 // pred_check_branch
      %71 = sbr.rel (0) target = $region33
    $region32: #{tpu_custom_call.1} parent=1 // pred_region
      %72 = dma.done [#allocation9], 2176
    $region33: #{tpu_custom_call.1} parent=1 // pred_fallthru
      _
    %v73 = vld [vmem:[#allocation5] sm:$0xff]
    %v74 = vld [vmem:[#allocation5 + $0x8] sm:$0xff]
    %v75 = vld [vmem:[#allocation5 + $0x10] sm:$0xff]
    %v76 = vld [vmem:[#allocation5 + $0x18] sm:$0xff]
    %v77 = vld [vmem:[#allocation5 + $0x20] sm:$0xff]
    %v78 = vld [vmem:[#allocation5 + $0x28] sm:$0xff]
    %v79 = vld [vmem:[#allocation5 + $0x30] sm:$0xff]
    %v80 = vld [vmem:[#allocation5 + $0x38] sm:$0xff]
    %v81 = vld [vmem:[#allocation5 + $0x40] sm:$0xff]
    %v82 = vld [vmem:[#allocation5 + $0x48] sm:$0xff]
    %v83 = vld [vmem:[#allocation5 + $0x50] sm:$0xff]
    %v84 = vld [vmem:[#allocation5 + $0x58] sm:$0xff]
    %v85 = vld [vmem:[#allocation5 + $0x60] sm:$0xff]
    %v86 = vld [vmem:[#allocation5 + $0x68] sm:$0xff]
    %v87 = vld [vmem:[#allocation5 + $0x70] sm:$0xff]
    %v88 = vld [vmem:[#allocation5 + $0x78] sm:$0xff]
    %v89 = vld [vmem:[#allocation5 + $0x80] sm:$0xff]
    %v90 = vld [vmem:[#allocation5 + $0x88] sm:$0xff]
    %v91 = vld [vmem:[#allocation5 + $0x90] sm:$0xff]
    %v92 = vld [vmem:[#allocation5 + $0x98] sm:$0xff]
    %v93 = vld [vmem:[#allocation5 + $0xa0] sm:$0xff]
    %v94 = vld [vmem:[#allocation5 + $0xa8] sm:$0xff]
    %v95 = vld [vmem:[#allocation5 + $0xb0] sm:$0xff]
    %v96 = vld [vmem:[#allocation5 + $0xb8] sm:$0xff]
    %v97 = vld [vmem:[#allocation5 + $0xc0] sm:$0xff]
    %v98 = vld [vmem:[#allocation5 + $0xc8] sm:$0xff]
    %v99 = vld [vmem:[#allocation5 + $0xd0] sm:$0xff]
    %v100 = vld [vmem:[#allocation5 + $0xd8] sm:$0xff]
    %v101 = vld [vmem:[#allocation5 + $0xe0] sm:$0xff]
    %v102 = vld [vmem:[#allocation5 + $0xe8] sm:$0xff]
    %v103 = vld [vmem:[#allocation5 + $0xf0] sm:$0xff]
    %v104 = vld [vmem:[#allocation5 + $0xf8] sm:$0xff]
    %v105 = vld [vmem:[#allocation5 + $0x100] sm:$0xff]
    %v106 = vld [vmem:[#allocation5 + $0x108] sm:$0xff]
    %v107 = vld [vmem:[#allocation5 + $0x110] sm:$0xff]
    %v108 = vld [vmem:[#allocation5 + $0x118] sm:$0xff]
    %v109 = vld [vmem:[#allocation5 + $0x120] sm:$0xff]
    %v110 = vld [vmem:[#allocation5 + $0x128] sm:$0xff]
    %v111 = vld [vmem:[#allocation5 + $0x130] sm:$0xff]
    %v112 = vld [vmem:[#allocation5 + $0x138] sm:$0xff]
    %v113 = vld [vmem:[#allocation5 + $0x140] sm:$0xff]
    %v114 = vld [vmem:[#allocation5 + $0x148] sm:$0xff]
    %v115 = vld [vmem:[#allocation5 + $0x150] sm:$0xff]
    %v116 = vld [vmem:[#allocation5 + $0x158] sm:$0xff]
    %v117 = vld [vmem:[#allocation5 + $0x160] sm:$0xff]
    %v118 = vld [vmem:[#allocation5 + $0x168] sm:$0xff]
    %v119 = vld [vmem:[#allocation5 + $0x170] sm:$0xff]
    %v120 = vld [vmem:[#allocation5 + $0x178] sm:$0xff]
    %v121 = vld [vmem:[#allocation2] sm:$0xff]
    %v122 = vld [vmem:[#allocation2 + $0x8] sm:$0xff]
    %v123 = vld [vmem:[#allocation2 + $0x10] sm:$0xff]
    %v124 = vld [vmem:[#allocation2 + $0x18] sm:$0xff]
    %v125 = vld [vmem:[#allocation2 + $0x20] sm:$0xff]
    %v126 = vld [vmem:[#allocation2 + $0x28] sm:$0xff]
    %v127 = vld [vmem:[#allocation2 + $0x30] sm:$0xff]
    %v128 = vld [vmem:[#allocation2 + $0x38] sm:$0xff]
    %v129 = vld [vmem:[#allocation2 + $0x40] sm:$0xff]
    %130 = vmatprep.subr.mxu0 0.0
    %131 = vmatpush1.msra.mxu0 %v73
    %132 = vmatprep.subr.mxu0 0.0
    %133 = vmatpush1.msra.mxu0 %v74
    %134 = vmatprep.subr.mxu0 0.0
    %135 = vmatpush1.msra.mxu0 %v75
    %136 = vmatprep.subr.mxu0 0.0
    %137 = vmatpush1.msra.mxu0 %v76
    %138 = vmatprep.subr.mxu0 0.0
    %139 = vmatpush1.msra.mxu0 %v77
    %140 = vmatprep.subr.mxu0 0.0
    %141 = vmatpush1.msra.mxu0 %v78
    %142 = vmatprep.subr.mxu0 0.0
    %143 = vmatpush1.msra.mxu0 %v79
    %144 = vmatprep.subr.mxu0 0.0
    %145 = vmatpush1.msra.mxu0 %v80
    %146 = vmatprep.subr.mxu0 0.0
    %147 = vmatpush1.msra.mxu0 %v81
    %148 = vmatprep.subr.mxu0 0.0
    %149 = vmatpush1.msra.mxu0 %v82
    %150 = vmatprep.subr.mxu0 0.0
    %151 = vmatpush1.msra.mxu0 %v83
    %152 = vmatprep.subr.mxu0 0.0
    %153 = vmatpush1.msra.mxu0 %v84
    %154 = vmatprep.subr.mxu0 0.0
    %155 = vmatpush1.msra.mxu0 %v85
    %156 = vmatprep.subr.mxu0 0.0
    %157 = vmatpush1.msra.mxu0 %v86
    %158 = vmatprep.subr.mxu0 0.0
    %159 = vmatpush1.msra.mxu0 %v87
    %160 = vmatprep.subr.mxu0 0.0
    %161 = vmatpush1.msra.mxu0 %v88
    %162 = vmatprep.subr.mxu0 0.0
    %163 = vmatpush1.msra.mxu0 %v89
    %164 = vmatprep.subr.mxu0 0.0
    %165 = vmatpush1.msra.mxu0 %v90
    %166 = vmatprep.subr.mxu0 0.0
    %167 = vmatpush1.msra.mxu0 %v91
    %168 = vmatprep.subr.mxu0 0.0
    %169 = vmatpush1.msra.mxu0 %v92
    %170 = vmatprep.subr.mxu0 0.0
    %171 = vmatpush1.msra.mxu0 %v93
    %172 = vmatprep.subr.mxu0 0.0
    %173 = vmatpush1.msra.mxu0 %v94
    %174 = vmatprep.subr.mxu0 0.0
    %175 = vmatpush1.msra.mxu0 %v95
    %176 = vmatprep.subr.mxu0 0.0
    %177 = vmatpush1.msra.mxu0 %v96
    %178 = vmatprep.subr.mxu0 0.0
    %179 = vmatpush1.msra.mxu0 %v97
    %180 = vmatprep.subr.mxu0 0.0
    %181 = vmatpush1.msra.mxu0 %v98
    %182 = vmatprep.subr.mxu0 0.0
    %183 = vmatpush1.msra.mxu0 %v99
    %184 = vmatprep.subr.mxu0 0.0
    %185 = vmatpush1.msra.mxu0 %v100
    %186 = vmatprep.subr.mxu0 0.0
    %187 = vmatpush1.msra.mxu0 %v101
    %188 = vmatprep.subr.mxu0 0.0
    %189 = vmatpush1.msra.mxu0 %v102
    %190 = vmatprep.subr.mxu0 0.0
    %191 = vmatpush1.msra.mxu0 %v103
    %192 = vmatprep.subr.mxu0 0.0
    %193 = vmatpush1.msra.mxu0 %v104
    %194 = vmatprep.mubr.f32.mxu0 %v122
    %195 = vmatmul.mubr.f32.gmra.mrb[0].mxu0 %v121
    %v196 = vpop.f32.mrb[0].mxu0
    %v197 = vadd.f32 0.0, %v196
    %v198 = vpop.f32.mrb[0].mxu0
    %199 = vmatprep.mubr.f32.mxu0 %v125
    %200 = vmatmul.mubr.f32.gmra.mrb[0].mxu0 %v124
    %v201 = vpop.f32.mrb[0].mxu0
    %v202 = vadd.f32 0.0, %v201
    %v203 = vpop.f32.mrb[0].mxu0
    %204 = vmatprep.mubr.f32.mxu0 %v128
    %205 = vmatmul.mubr.f32.gmra.mrb[0].mxu0 %v127
    %v206 = vpop.f32.mrb[0].mxu0
    %v207 = vadd.f32 0.0, %v206
    %v208 = vpop.f32.mrb[0].mxu0
    %209 = vdwg.mxu0
    %210 = vmatprep.subr.mxu0 0.0
    %211 = vmatpush1.msra.mxu0 %v105
    %212 = vmatprep.subr.mxu0 0.0
    %213 = vmatpush1.msra.mxu0 %v106
    %214 = vmatprep.subr.mxu0 0.0
    %215 = vmatpush1.msra.mxu0 %v107
    %216 = vmatprep.subr.mxu0 0.0
    %217 = vmatpush1.msra.mxu0 %v108
    %218 = vmatprep.subr.mxu0 0.0
    %219 = vmatpush1.msra.mxu0 %v109
    %220 = vmatprep.subr.mxu0 0.0
    %221 = vmatpush1.msra.mxu0 %v110
    %222 = vmatprep.subr.mxu0 0.0
    %223 = vmatpush1.msra.mxu0 %v111
    %224 = vmatprep.subr.mxu0 0.0
    %225 = vmatpush1.msra.mxu0 %v112
    %226 = vmatprep.subr.mxu0 0.0
    %227 = vmatpush1.msra.mxu0 %v113
    %228 = vmatprep.subr.mxu0 0.0
    %229 = vmatpush1.msra.mxu0 %v114
    %230 = vmatprep.subr.mxu0 0.0
    %231 = vmatpush1.msra.mxu0 %v115
    %232 = vmatprep.subr.mxu0 0.0
    %233 = vmatpush1.msra.mxu0 %v116
    %234 = vmatprep.subr.mxu0 0.0
    %235 = vmatpush1.msra.mxu0 %v117
    %236 = vmatprep.subr.mxu0 0.0
    %237 = vmatpush1.msra.mxu0 %v118
    %238 = vmatprep.subr.mxu0 0.0
    %239 = vmatpush1.msra.mxu0 %v119
    %240 = vmatprep.subr.mxu0 0.0
    %241 = vmatpush1.msra.mxu0 %v120
    %242 = vmatprep.subr.mxu0 0.0
    %243 = vmatpush1.msra.mxu0 0.0
    %244 = vmatprep.subr.mxu0 0.0
    %245 = vmatpush1.msra.mxu0 0.0
    %246 = vmatprep.subr.mxu0 0.0
    %247 = vmatpush1.msra.mxu0 0.0
    %248 = vmatprep.subr.mxu0 0.0
    %249 = vmatpush1.msra.mxu0 0.0
    %250 = vmatprep.subr.mxu0 0.0
    %251 = vmatpush1.msra.mxu0 0.0
    %252 = vmatprep.subr.mxu0 0.0
    %253 = vmatpush1.msra.mxu0 0.0
    %254 = vmatprep.subr.mxu0 0.0
    %255 = vmatpush1.msra.mxu0 0.0
    %256 = vmatprep.subr.mxu0 0.0
    %257 = vmatpush1.msra.mxu0 0.0
    %258 = vmatprep.subr.mxu0 0.0
    %259 = vmatpush1.msra.mxu0 0.0
    %260 = vmatprep.subr.mxu0 0.0
    %261 = vmatpush1.msra.mxu0 0.0
    %262 = vmatprep.subr.mxu0 0.0
    %263 = vmatpush1.msra.mxu0 0.0
    %264 = vmatprep.subr.mxu0 0.0
    %265 = vmatpush1.msra.mxu0 0.0
    %266 = vmatprep.subr.mxu0 0.0
    %267 = vmatpush1.msra.mxu0 0.0
    %268 = vmatprep.subr.mxu0 0.0
    %269 = vmatpush1.msra.mxu0 0.0
    %270 = vmatprep.subr.mxu0 0.0
    %271 = vmatpush1.msra.mxu0 0.0
    %272 = vmatprep.subr.mxu0 0.0
    %273 = vmatpush1.msra.mxu0 0.0
    %274 = vmatprep.mubr.f32.mxu0 0.0
    %275 = vmatmul.mubr.f32.gmra.mrb[0].mxu0 %v123
    %v276 = vpop.f32.mrb[0].mxu0
    %v277 = vadd.f32 %v197, %v276
    %v278 = vpop.f32.mrb[0].mxu0
    %279 = vmatprep.mubr.f32.mxu0 0.0
    %280 = vmatmul.mubr.f32.gmra.mrb[0].mxu0 %v126
    %v281 = vpop.f32.mrb[0].mxu0
    %v282 = vadd.f32 %v202, %v281
    %v283 = vpop.f32.mrb[0].mxu0
    %284 = vmatprep.mubr.f32.mxu0 0.0
    %285 = vmatmul.mubr.f32.gmra.mrb[0].mxu0 %v129
    %v286 = vpop.f32.mrb[0].mxu0
    %v287 = vadd.f32 %v207, %v286
    %v288 = vpop.f32.mrb[0].mxu0
    %289 = vdwg.mxu0
    %v290 = vld [vmem:[#allocation5 + $0x480] sm:$0x1]
    %v291 = vmul.f32 %v277, 128.0
    %v292 = vlaneseq
    %v293 = vshrl.u32 %v292, 7
    %v294 = vsub.s32 0, %v293
    %v295 = vrot.slane %v290, %v294
    %v296 = vadd.f32 %v291, %v295
    %v297 = vmul.f32 %v282, 128.0
    %v298 = vadd.f32 %v297, %v295
    %v299 = vld [vmem:[#allocation7] sm:$0xff]
    %v300 = vld [vmem:[#allocation7 + $0x8] sm:$0xff]
    %v301 = vld [vmem:[#allocation7 + $0x10] sm:$0xff]
    %v302 = vld [vmem:[#allocation7 + $0x18] sm:$0xff]
    %v303 = vld [vmem:[#allocation7 + $0x20] sm:$0xff]
    %v304 = vld [vmem:[#allocation7 + $0x28] sm:$0xff]
    %v305 = vld [vmem:[#allocation7 + $0x30] sm:$0xff]
    %v306 = vld [vmem:[#allocation7 + $0x38] sm:$0xff]
    %v307 = vld [vmem:[#allocation7 + $0x40] sm:$0xff]
    %v308 = vld [vmem:[#allocation7 + $0x48] sm:$0xff]
    %v309 = vld [vmem:[#allocation7 + $0x50] sm:$0xff]
    %v310 = vld [vmem:[#allocation7 + $0x58] sm:$0xff]
    %v311 = vld [vmem:[#allocation7 + $0x60] sm:$0xff]
    %v312 = vld [vmem:[#allocation7 + $0x68] sm:$0xff]
    %v313 = vld [vmem:[#allocation7 + $0x70] sm:$0xff]
    %v314 = vld [vmem:[#allocation7 + $0x78] sm:$0xff]
    %v315 = vld [vmem:[#allocation7 + $0x80] sm:$0xff]
    %v316 = vld [vmem:[#allocation7 + $0x88] sm:$0xff]
    %v317 = vld [vmem:[#allocation7 + $0x90] sm:$0xff]
    %v318 = vld [vmem:[#allocation7 + $0x98] sm:$0xff]
    %v319 = vld [vmem:[#allocation7 + $0xa0] sm:$0xff]
    %v320 = vld [vmem:[#allocation7 + $0xa8] sm:$0xff]
    %v321 = vld [vmem:[#allocation7 + $0xb0] sm:$0xff]
    %v322 = vld [vmem:[#allocation7 + $0xb8] sm:$0xff]
    %v323 = vld [vmem:[#allocation7 + $0xc0] sm:$0xff]
    %v324 = vld [vmem:[#allocation7 + $0xc8] sm:$0xff]
    %v325 = vld [vmem:[#allocation7 + $0xd0] sm:$0xff]
    %v326 = vld [vmem:[#allocation7 + $0xd8] sm:$0xff]
    %v327 = vld [vmem:[#allocation7 + $0xe0] sm:$0xff]
    %v328 = vld [vmem:[#allocation7 + $0xe8] sm:$0xff]
    %v329 = vld [vmem:[#allocation7 + $0xf0] sm:$0xff]
    %v330 = vld [vmem:[#allocation7 + $0xf8] sm:$0xff]
    %v331 = vld [vmem:[#allocation7 + $0x100] sm:$0xff]
    %v332 = vld [vmem:[#allocation7 + $0x108] sm:$0xff]
    %v333 = vld [vmem:[#allocation7 + $0x110] sm:$0xff]
    %v334 = vld [vmem:[#allocation7 + $0x118] sm:$0xff]
    %v335 = vld [vmem:[#allocation7 + $0x120] sm:$0xff]
    %v336 = vld [vmem:[#allocation7 + $0x128] sm:$0xff]
    %v337 = vld [vmem:[#allocation7 + $0x130] sm:$0xff]
    %v338 = vld [vmem:[#allocation7 + $0x138] sm:$0xff]
    %v339 = vld [vmem:[#allocation7 + $0x140] sm:$0xff]
    %v340 = vld [vmem:[#allocation7 + $0x148] sm:$0xff]
    %v341 = vld [vmem:[#allocation7 + $0x150] sm:$0xff]
    %v342 = vld [vmem:[#allocation7 + $0x158] sm:$0xff]
    %v343 = vld [vmem:[#allocation7 + $0x160] sm:$0xff]
    %v344 = vld [vmem:[#allocation7 + $0x168] sm:$0xff]
    %v345 = vld [vmem:[#allocation7 + $0x170] sm:$0xff]
    %v346 = vld [vmem:[#allocation7 + $0x178] sm:$0xff]
    %s347 = scalar_lea.vmem [#allocation7], 1152
    %v348 = vld [vmem:[%s347] ss:$8 sm:$0x7]
    %v349 = vld [vmem:[#allocation5 + $0x180] sm:$0xff]
    %v350 = vld [vmem:[#allocation5 + $0x188] sm:$0xff]
    %v351 = vld [vmem:[#allocation5 + $0x190] sm:$0xff]
    %v352 = vld [vmem:[#allocation5 + $0x198] sm:$0xff]
    %v353 = vld [vmem:[#allocation5 + $0x1a0] sm:$0xff]
    %v354 = vld [vmem:[#allocation5 + $0x1a8] sm:$0xff]
    %v355 = vld [vmem:[#allocation5 + $0x1b0] sm:$0xff]
    %v356 = vld [vmem:[#allocation5 + $0x1b8] sm:$0xff]
    %v357 = vld [vmem:[#allocation5 + $0x1c0] sm:$0xff]
    %v358 = vld [vmem:[#allocation5 + $0x1c8] sm:$0xff]
    %v359 = vld [vmem:[#allocation5 + $0x1d0] sm:$0xff]
    %v360 = vld [vmem:[#allocation5 + $0x1d8] sm:$0xff]
    %v361 = vld [vmem:[#allocation5 + $0x1e0] sm:$0xff]
    %v362 = vld [vmem:[#allocation5 + $0x1e8] sm:$0xff]
    %v363 = vld [vmem:[#allocation5 + $0x1f0] sm:$0xff]
    %v364 = vld [vmem:[#allocation5 + $0x1f8] sm:$0xff]
    %v365 = vld [vmem:[#allocation5 + $0x488] sm:$0x1]
    %v367 = vlaneseq
    %v368 = vshrl.u32 %v367, 7
    %v369 = vsub.s32 0, %v368
    %v370 = vrot.slane %v348, %v369
    %v371 = vlaneseq
    %v372 = vshrl.u32 %v371, 7
    %v373 = vsub.s32 1, %v372
    %v374 = vrot.slane %v348, %v373
    %v375 = vlaneseq
    %v376 = vshrl.u32 %v375, 7
    %v377 = vsub.s32 2, %v376
    %v378 = vrot.slane %v348, %v377
    %382 = vmatprep.subr.mxu0 %v300
    %383 = vmatpush1.msra.mxu0 %v299
    %384 = vmatprep.subr.mxu0 %v303
    %385 = vmatpush1.msra.mxu0 %v302
    %386 = vmatprep.subr.mxu0 %v306
    %387 = vmatpush1.msra.mxu0 %v305
    %388 = vmatprep.subr.mxu0 %v309
    %389 = vmatpush1.msra.mxu0 %v308
    %390 = vmatprep.subr.mxu0 %v312
    %391 = vmatpush1.msra.mxu0 %v311
    %392 = vmatprep.subr.mxu0 %v315
    %393 = vmatpush1.msra.mxu0 %v314
    %394 = vmatprep.subr.mxu0 %v318
    %395 = vmatpush1.msra.mxu0 %v317
    %396 = vmatprep.subr.mxu0 %v321
    %397 = vmatpush1.msra.mxu0 %v320
    %398 = vmatprep.subr.mxu0 %v324
    %399 = vmatpush1.msra.mxu0 %v323
    %400 = vmatprep.subr.mxu0 %v327
    %401 = vmatpush1.msra.mxu0 %v326
    %402 = vmatprep.subr.mxu0 %v330
    %403 = vmatpush1.msra.mxu0 %v329
    %404 = vmatprep.subr.mxu0 %v333
    %405 = vmatpush1.msra.mxu0 %v332
    %406 = vmatprep.subr.mxu0 %v336
    %407 = vmatpush1.msra.mxu0 %v335
    %408 = vmatprep.subr.mxu0 %v339
    %409 = vmatpush1.msra.mxu0 %v338
    %410 = vmatprep.subr.mxu0 %v342
    %411 = vmatpush1.msra.mxu0 %v341
    %412 = vmatprep.subr.mxu0 %v345
    %413 = vmatpush1.msra.mxu0 %v344
    %414 = vmatprep.subr.mxu0 0.0
    %415 = vmatpush1.msra.mxu0 0.0
    %416 = vmatprep.subr.mxu0 0.0
    %417 = vmatpush1.msra.mxu0 0.0
    %418 = vmatprep.subr.mxu0 0.0
    %419 = vmatpush1.msra.mxu0 0.0
    %420 = vmatprep.subr.mxu0 0.0
    %421 = vmatpush1.msra.mxu0 0.0
    %422 = vmatprep.subr.mxu0 0.0
    %423 = vmatpush1.msra.mxu0 0.0
    %424 = vmatprep.subr.mxu0 0.0
    %425 = vmatpush1.msra.mxu0 0.0
    %426 = vmatprep.subr.mxu0 0.0
    %427 = vmatpush1.msra.mxu0 0.0
    %428 = vmatprep.subr.mxu0 0.0
    %429 = vmatpush1.msra.mxu0 0.0
    %430 = vmatprep.subr.mxu0 0.0
    %431 = vmatpush1.msra.mxu0 0.0
    %432 = vmatprep.subr.mxu0 0.0
    %433 = vmatpush1.msra.mxu0 0.0
    %434 = vmatprep.subr.mxu0 0.0
    %435 = vmatpush1.msra.mxu0 0.0
    %436 = vmatprep.subr.mxu0 0.0
    %437 = vmatpush1.msra.mxu0 0.0
    %438 = vmatprep.subr.mxu0 0.0
    %439 = vmatpush1.msra.mxu0 0.0
    %440 = vmatprep.subr.mxu0 0.0
    %441 = vmatpush1.msra.mxu0 0.0
    %442 = vmatprep.subr.mxu0 0.0
    %443 = vmatpush1.msra.mxu0 0.0
    %444 = vmatprep.subr.mxu0 0.0
    %445 = vmatpush1.msra.mxu0 0.0
    %446 = vmatprep.mubr.f32.mxu0 0.0
    %447 = vmatmul.mubr.f32.gmra.mrb[0].mxu0 %v296
    %v448 = vpop.f32.mrb[0].mxu0
    %v449 = vadd.f32 %v370, %v448
    %v450 = vpop.f32.mrb[0].mxu0
    %v451 = vadd.f32 %v374, %v450
    %452 = vdwg.mxu0
    %453 = vmatprep.subr.mxu0 0.0
    %454 = vmatpush1.msra.mxu0 %v301
    %455 = vmatprep.subr.mxu0 0.0
    %456 = vmatpush1.msra.mxu0 %v304
    %457 = vmatprep.subr.mxu0 0.0
    %458 = vmatpush1.msra.mxu0 %v307
    %459 = vmatprep.subr.mxu0 0.0
    %460 = vmatpush1.msra.mxu0 %v310
    %461 = vmatprep.subr.mxu0 0.0
    %462 = vmatpush1.msra.mxu0 %v313
    %463 = vmatprep.subr.mxu0 0.0
    %464 = vmatpush1.msra.mxu0 %v316
    %465 = vmatprep.subr.mxu0 0.0
    %466 = vmatpush1.msra.mxu0 %v319
    %467 = vmatprep.subr.mxu0 0.0
    %468 = vmatpush1.msra.mxu0 %v322
    %469 = vmatprep.subr.mxu0 0.0
    %470 = vmatpush1.msra.mxu0 %v325
    %471 = vmatprep.subr.mxu0 0.0
    %472 = vmatpush1.msra.mxu0 %v328
    %473 = vmatprep.subr.mxu0 0.0
    %474 = vmatpush1.msra.mxu0 %v331
    %475 = vmatprep.subr.mxu0 0.0
    %476 = vmatpush1.msra.mxu0 %v334
    %477 = vmatprep.subr.mxu0 0.0
    %478 = vmatpush1.msra.mxu0 %v337
    %479 = vmatprep.subr.mxu0 0.0
    %480 = vmatpush1.msra.mxu0 %v340
    %481 = vmatprep.subr.mxu0 0.0
    %482 = vmatpush1.msra.mxu0 %v343
    %483 = vmatprep.subr.mxu0 0.0
    %484 = vmatpush1.msra.mxu0 %v346
    %485 = vmatprep.subr.mxu0 0.0
    %486 = vmatpush1.msra.mxu0 0.0
    %487 = vmatprep.subr.mxu0 0.0
    %488 = vmatpush1.msra.mxu0 0.0
    %489 = vmatprep.subr.mxu0 0.0
    %490 = vmatpush1.msra.mxu0 0.0
    %491 = vmatprep.subr.mxu0 0.0
    %492 = vmatpush1.msra.mxu0 0.0
    %493 = vmatprep.subr.mxu0 0.0
    %494 = vmatpush1.msra.mxu0 0.0
    %495 = vmatprep.subr.mxu0 0.0
    %496 = vmatpush1.msra.mxu0 0.0
    %497 = vmatprep.subr.mxu0 0.0
    %498 = vmatpush1.msra.mxu0 0.0
    %499 = vmatprep.subr.mxu0 0.0
    %500 = vmatpush1.msra.mxu0 0.0
    %501 = vmatprep.subr.mxu0 0.0
    %502 = vmatpush1.msra.mxu0 0.0
    %503 = vmatprep.subr.mxu0 0.0
    %504 = vmatpush1.msra.mxu0 0.0
    %505 = vmatprep.subr.mxu0 0.0
    %506 = vmatpush1.msra.mxu0 0.0
    %507 = vmatprep.subr.mxu0 0.0
    %508 = vmatpush1.msra.mxu0 0.0
    %509 = vmatprep.subr.mxu0 0.0
    %510 = vmatpush1.msra.mxu0 0.0
    %511 = vmatprep.subr.mxu0 0.0
    %512 = vmatpush1.msra.mxu0 0.0
    %513 = vmatprep.subr.mxu0 0.0
    %514 = vmatpush1.msra.mxu0 0.0
    %515 = vmatprep.subr.mxu0 0.0
    %516 = vmatpush1.msra.mxu0 0.0
    %517 = vmatprep.mubr.f32.mxu0 0.0
    %518 = vmatmul.mubr.f32.gmra.mrb[0].mxu0 %v296
    %v519 = vpop.f32.mrb[0].mxu0
    %v520 = vadd.f32 %v378, %v519
    %v521 = vpop.f32.mrb[0].mxu0
    %522 = vdwg.mxu0
    %vm523 = vcmask 261120
    %v525 = vsel %vm523, %v449, 0
    %v528 = vsel %vm523, %v451, 0
    %530 = vmatprep.subr.mxu0 0.0
    %531 = vmatpush1.xpose.msra.mxu0 %v528
    %532 = vmatprep.subr.mxu0 0.0
    %533 = vmatpush1.xpose.msra.mxu0 0.0
    %534 = vmatprep.subr.mxu0 0.0
    %535 = vmatpush1.xpose.msra.mxu0 0.0
    %536 = vmatprep.subr.mxu0 0.0
    %537 = vmatpush1.xpose.msra.mxu0 0.0
    %538 = vmatprep.subr.mxu0 0.0
    %539 = vmatpush1.xpose.msra.mxu0 0.0
    %540 = vmatprep.subr.mxu0 0.0
    %541 = vmatpush1.xpose.msra.mxu0 0.0
    %542 = vmatprep.subr.mxu0 0.0
    %543 = vmatpush1.xpose.msra.mxu0 0.0
    %544 = vmatprep.subr.mxu0 0.0
    %545 = vmatpush1.xpose.msra.mxu0 0.0
    %546 = vmatprep.subr.mxu0 0.0
    %547 = vmatpush1.xpose.msra.mxu0 0.0
    %548 = vmatprep.subr.mxu0 0.0
    %549 = vmatpush1.xpose.msra.mxu0 0.0
    %550 = vmatprep.subr.mxu0 0.0
    %551 = vmatpush1.xpose.msra.mxu0 0.0
    %552 = vmatprep.subr.mxu0 0.0
    %553 = vmatpush1.xpose.msra.mxu0 0.0
    %554 = vmatprep.subr.mxu0 0.0
    %555 = vmatpush1.xpose.msra.mxu0 0.0
    %556 = vmatprep.subr.mxu0 0.0
    %557 = vmatpush1.xpose.msra.mxu0 0.0
    %558 = vmatprep.subr.mxu0 0.0
    %559 = vmatpush1.xpose.msra.mxu0 0.0
    %560 = vmatprep.subr.mxu0 0.0
    %561 = vmatpush1.xpose.msra.mxu0 0.0
    %562 = vmatprep.subr.mxu0 0.0
    %563 = vmatpush1.xpose.msra.mxu0 0.0
    %564 = vmatprep.subr.mxu0 0.0
    %565 = vmatpush1.xpose.msra.mxu0 0.0
    %566 = vmatprep.subr.mxu0 0.0
    %567 = vmatpush1.xpose.msra.mxu0 0.0
    %568 = vmatprep.subr.mxu0 0.0
    %569 = vmatpush1.xpose.msra.mxu0 0.0
    %570 = vmatprep.subr.mxu0 0.0
    %571 = vmatpush1.xpose.msra.mxu0 0.0
    %572 = vmatprep.subr.mxu0 0.0
    %573 = vmatpush1.xpose.msra.mxu0 0.0
    %574 = vmatprep.subr.mxu0 0.0
    %575 = vmatpush1.xpose.msra.mxu0 0.0
    %576 = vmatprep.subr.mxu0 0.0
    %577 = vmatpush1.xpose.msra.mxu0 0.0
    %578 = vmatprep.subr.mxu0 0.0
    %579 = vmatpush1.xpose.msra.mxu0 0.0
    %580 = vmatprep.subr.mxu0 0.0
    %581 = vmatpush1.xpose.msra.mxu0 0.0
    %582 = vmatprep.subr.mxu0 0.0
    %583 = vmatpush1.xpose.msra.mxu0 0.0
    %584 = vmatprep.subr.mxu0 0.0
    %585 = vmatpush1.xpose.msra.mxu0 0.0
    %586 = vmatprep.subr.mxu0 0.0
    %587 = vmatpush1.xpose.msra.mxu0 0.0
    %588 = vmatprep.subr.mxu0 0.0
    %589 = vmatpush1.xpose.msra.mxu0 0.0
    %590 = vmatprep.subr.mxu0 0.0
    %591 = vmatpush1.xpose.msra.mxu0 0.0
    %592 = vmatprep.subr.mxu0 0.0
    %593 = vmatpush1.xpose.msra.mxu0 0.0
    %594 = vmatprep.mubr.f32.mxu0 0.0
    %595 = vmatmul.mubr.f32.gmra.mrb[0].mxu0 %v525
    %v596 = vpop.f32.mrb[0].mxu0
    %v597 = vadd.f32 0.0, %v596
    %v598 = vpop.f32.mrb[0].mxu0
    %599 = vdwg.mxu0
    %v600 = vmul.f32 %v597, 0.17677669
    %vm601 = vcmask 18432
    %v602 = vsel %vm601, %v600, -inf
    %603 = vmax.xlane.f32.xlu0 %v602
    %v604 = vpop.xlane.xlu0 %603
    %v605 = vsub.f32 %v600, %v604
    %v606 = vmul.f32 %v605, 1.442695
    %v607 = vpow.pop %v606
    %v608 = vsel %vm601, %v607, 0.0
    %609 = vadd.xlane.f32.xlu0 %v608
    %v610 = vpop.xlane.xlu0 %609
    %v611 = vrcp.pop %v610
    %v612 = vmul.f32 %v607, %v611
    %vm613 = vcmask 23552
    %v615 = vsel %vm613, %v612, 0
    %vm617 = vcmask 1042432
    %v619 = vsel %vm617, %v520, 0
    %621 = vmatprep.subr.mxu0 0.0
    %622 = vmatpush1.msra.mxu0 %v619
    %623 = vmatprep.subr.mxu0 0.0
    %624 = vmatpush1.msra.mxu0 0.0
    %625 = vmatprep.subr.mxu0 0.0
    %626 = vmatpush1.msra.mxu0 0.0
    %627 = vmatprep.subr.mxu0 0.0
    %628 = vmatpush1.msra.mxu0 0.0
    %629 = vmatprep.subr.mxu0 0.0
    %630 = vmatpush1.msra.mxu0 0.0
    %631 = vmatprep.subr.mxu0 0.0
    %632 = vmatpush1.msra.mxu0 0.0
    %633 = vmatprep.subr.mxu0 0.0
    %634 = vmatpush1.msra.mxu0 0.0
    %635 = vmatprep.subr.mxu0 0.0
    %636 = vmatpush1.msra.mxu0 0.0
    %637 = vmatprep.subr.mxu0 0.0
    %638 = vmatpush1.msra.mxu0 0.0
    %639 = vmatprep.subr.mxu0 0.0
    %640 = vmatpush1.msra.mxu0 0.0
    %641 = vmatprep.subr.mxu0 0.0
    %642 = vmatpush1.msra.mxu0 0.0
    %643 = vmatprep.subr.mxu0 0.0
    %644 = vmatpush1.msra.mxu0 0.0
    %645 = vmatprep.subr.mxu0 0.0
    %646 = vmatpush1.msra.mxu0 0.0
    %647 = vmatprep.subr.mxu0 0.0
    %648 = vmatpush1.msra.mxu0 0.0
    %649 = vmatprep.subr.mxu0 0.0
    %650 = vmatpush1.msra.mxu0 0.0
    %651 = vmatprep.subr.mxu0 0.0
    %652 = vmatpush1.msra.mxu0 0.0
    %653 = vmatprep.subr.mxu0 0.0
    %654 = vmatpush1.msra.mxu0 0.0
    %655 = vmatprep.subr.mxu0 0.0
    %656 = vmatpush1.msra.mxu0 0.0
    %657 = vmatprep.subr.mxu0 0.0
    %658 = vmatpush1.msra.mxu0 0.0
    %659 = vmatprep.subr.mxu0 0.0
    %660 = vmatpush1.msra.mxu0 0.0
    %661 = vmatprep.subr.mxu0 0.0
    %662 = vmatpush1.msra.mxu0 0.0
    %663 = vmatprep.subr.mxu0 0.0
    %664 = vmatpush1.msra.mxu0 0.0
    %665 = vmatprep.subr.mxu0 0.0
    %666 = vmatpush1.msra.mxu0 0.0
    %667 = vmatprep.subr.mxu0 0.0
    %668 = vmatpush1.msra.mxu0 0.0
    %669 = vmatprep.subr.mxu0 0.0
    %670 = vmatpush1.msra.mxu0 0.0
    %671 = vmatprep.subr.mxu0 0.0
    %672 = vmatpush1.msra.mxu0 0.0
    %673 = vmatprep.subr.mxu0 0.0
    %674 = vmatpush1.msra.mxu0 0.0
    %675 = vmatprep.subr.mxu0 0.0
    %676 = vmatpush1.msra.mxu0 0.0
    %677 = vmatprep.subr.mxu0 0.0
    %678 = vmatpush1.msra.mxu0 0.0
    %679 = vmatprep.subr.mxu0 0.0
    %680 = vmatpush1.msra.mxu0 0.0
    %681 = vmatprep.subr.mxu0 0.0
    %682 = vmatpush1.msra.mxu0 0.0
    %683 = vmatprep.subr.mxu0 0.0
    %684 = vmatpush1.msra.mxu0 0.0
    %685 = vmatprep.mubr.f32.mxu0 0.0
    %686 = vmatmul.mubr.f32.gmra.mrb[0].mxu0 %v615
    %v687 = vpop.f32.mrb[0].mxu0
    %v688 = vadd.f32 0.0, %v687
    %v689 = vpop.f32.mrb[0].mxu0
    %690 = vdwg.mxu0
    %691 = vrot.lane.b32.xlu0 %v449, 96
    %v692 = vpop.permute.xlu0 %691
    %693 = vrot.lane.b32.xlu0 %v451, 96
    %v694 = vpop.permute.xlu0 %693
    %v695 = vsel %vm523, %v692, 0
    %v697 = vsel %vm523, %v694, 0
    %699 = vmatprep.subr.mxu0 0.0
    %700 = vmatpush1.xpose.msra.mxu0 %v697
    %701 = vmatprep.subr.mxu0 0.0
    %702 = vmatpush1.xpose.msra.mxu0 0.0
    %703 = vmatprep.subr.mxu0 0.0
    %704 = vmatpush1.xpose.msra.mxu0 0.0
    %705 = vmatprep.subr.mxu0 0.0
    %706 = vmatpush1.xpose.msra.mxu0 0.0
    %707 = vmatprep.subr.mxu0 0.0
    %708 = vmatpush1.xpose.msra.mxu0 0.0
    %709 = vmatprep.subr.mxu0 0.0
    %710 = vmatpush1.xpose.msra.mxu0 0.0
    %711 = vmatprep.subr.mxu0 0.0
    %712 = vmatpush1.xpose.msra.mxu0 0.0
    %713 = vmatprep.subr.mxu0 0.0
    %714 = vmatpush1.xpose.msra.mxu0 0.0
    %715 = vmatprep.subr.mxu0 0.0
    %716 = vmatpush1.xpose.msra.mxu0 0.0
    %717 = vmatprep.subr.mxu0 0.0
    %718 = vmatpush1.xpose.msra.mxu0 0.0
    %719 = vmatprep.subr.mxu0 0.0
    %720 = vmatpush1.xpose.msra.mxu0 0.0
    %721 = vmatprep.subr.mxu0 0.0
    %722 = vmatpush1.xpose.msra.mxu0 0.0
    %723 = vmatprep.subr.mxu0 0.0
    %724 = vmatpush1.xpose.msra.mxu0 0.0
    %725 = vmatprep.subr.mxu0 0.0
    %726 = vmatpush1.xpose.msra.mxu0 0.0
    %727 = vmatprep.subr.mxu0 0.0
    %728 = vmatpush1.xpose.msra.mxu0 0.0
    %729 = vmatprep.subr.mxu0 0.0
    %730 = vmatpush1.xpose.msra.mxu0 0.0
    %731 = vmatprep.subr.mxu0 0.0
    %732 = vmatpush1.xpose.msra.mxu0 0.0
    %733 = vmatprep.subr.mxu0 0.0
    %734 = vmatpush1.xpose.msra.mxu0 0.0
    %735 = vmatprep.subr.mxu0 0.0
    %736 = vmatpush1.xpose.msra.mxu0 0.0
    %737 = vmatprep.subr.mxu0 0.0
    %738 = vmatpush1.xpose.msra.mxu0 0.0
    %739 = vmatprep.subr.mxu0 0.0
    %740 = vmatpush1.xpose.msra.mxu0 0.0
    %741 = vmatprep.subr.mxu0 0.0
    %742 = vmatpush1.xpose.msra.mxu0 0.0
    %743 = vmatprep.subr.mxu0 0.0
    %744 = vmatpush1.xpose.msra.mxu0 0.0
    %745 = vmatprep.subr.mxu0 0.0
    %746 = vmatpush1.xpose.msra.mxu0 0.0
    %747 = vmatprep.subr.mxu0 0.0
    %748 = vmatpush1.xpose.msra.mxu0 0.0
    %749 = vmatprep.subr.mxu0 0.0
    %750 = vmatpush1.xpose.msra.mxu0 0.0
    %751 = vmatprep.subr.mxu0 0.0
    %752 = vmatpush1.xpose.msra.mxu0 0.0
    %753 = vmatprep.subr.mxu0 0.0
    %754 = vmatpush1.xpose.msra.mxu0 0.0
    %755 = vmatprep.subr.mxu0 0.0
    %756 = vmatpush1.xpose.msra.mxu0 0.0
    %757 = vmatprep.subr.mxu0 0.0
    %758 = vmatpush1.xpose.msra.mxu0 0.0
    %759 = vmatprep.subr.mxu0 0.0
    %760 = vmatpush1.xpose.msra.mxu0 0.0
    %761 = vmatprep.subr.mxu0 0.0
    %762 = vmatpush1.xpose.msra.mxu0 0.0
    %763 = vmatprep.mubr.f32.mxu0 0.0
    %764 = vmatmul.mubr.f32.gmra.mrb[0].mxu0 %v695
    %v765 = vpop.f32.mrb[0].mxu0
    %v766 = vadd.f32 0.0, %v765
    %v767 = vpop.f32.mrb[0].mxu0
    %768 = vdwg.mxu0
    %v769 = vmul.f32 %v766, 0.17677669
    %v770 = vsel %vm601, %v769, -inf
    %771 = vmax.xlane.f32.xlu0 %v770
    %v772 = vpop.xlane.xlu0 %771
    %v773 = vsub.f32 %v769, %v772
    %v774 = vmul.f32 %v773, 1.442695
    %v775 = vpow.pop %v774
    %v776 = vsel %vm601, %v775, 0.0
    %777 = vadd.xlane.f32.xlu0 %v776
    %v778 = vpop.xlane.xlu0 %777
    %v779 = vrcp.pop %v778
    %v780 = vmul.f32 %v775, %v779
    %781 = vrot.lane.b32.xlu0 %v520, 96
    %v782 = vpop.permute.xlu0 %781
    %v784 = vsel %vm613, %v780, 0
    %v786 = vsel %vm617, %v782, 0
    %788 = vmatprep.subr.mxu0 0.0
    %789 = vmatpush1.msra.mxu0 %v786
    %790 = vmatprep.subr.mxu0 0.0
    %791 = vmatpush1.msra.mxu0 0.0
    %792 = vmatprep.subr.mxu0 0.0
    %793 = vmatpush1.msra.mxu0 0.0
    %794 = vmatprep.subr.mxu0 0.0
    %795 = vmatpush1.msra.mxu0 0.0
    %796 = vmatprep.subr.mxu0 0.0
    %797 = vmatpush1.msra.mxu0 0.0
    %798 = vmatprep.subr.mxu0 0.0
    %799 = vmatpush1.msra.mxu0 0.0
    %800 = vmatprep.subr.mxu0 0.0
    %801 = vmatpush1.msra.mxu0 0.0
    %802 = vmatprep.subr.mxu0 0.0
    %803 = vmatpush1.msra.mxu0 0.0
    %804 = vmatprep.subr.mxu0 0.0
    %805 = vmatpush1.msra.mxu0 0.0
    %806 = vmatprep.subr.mxu0 0.0
    %807 = vmatpush1.msra.mxu0 0.0
    %808 = vmatprep.subr.mxu0 0.0
    %809 = vmatpush1.msra.mxu0 0.0
    %810 = vmatprep.subr.mxu0 0.0
    %811 = vmatpush1.msra.mxu0 0.0
    %812 = vmatprep.subr.mxu0 0.0
    %813 = vmatpush1.msra.mxu0 0.0
    %814 = vmatprep.subr.mxu0 0.0
    %815 = vmatpush1.msra.mxu0 0.0
    %816 = vmatprep.subr.mxu0 0.0
    %817 = vmatpush1.msra.mxu0 0.0
    %818 = vmatprep.subr.mxu0 0.0
    %819 = vmatpush1.msra.mxu0 0.0
    %820 = vmatprep.subr.mxu0 0.0
    %821 = vmatpush1.msra.mxu0 0.0
    %822 = vmatprep.subr.mxu0 0.0
    %823 = vmatpush1.msra.mxu0 0.0
    %824 = vmatprep.subr.mxu0 0.0
    %825 = vmatpush1.msra.mxu0 0.0
    %826 = vmatprep.subr.mxu0 0.0
    %827 = vmatpush1.msra.mxu0 0.0
    %828 = vmatprep.subr.mxu0 0.0
    %829 = vmatpush1.msra.mxu0 0.0
    %830 = vmatprep.subr.mxu0 0.0
    %831 = vmatpush1.msra.mxu0 0.0
    %832 = vmatprep.subr.mxu0 0.0
    %833 = vmatpush1.msra.mxu0 0.0
    %834 = vmatprep.subr.mxu0 0.0
    %835 = vmatpush1.msra.mxu0 0.0
    %836 = vmatprep.subr.mxu0 0.0
    %837 = vmatpush1.msra.mxu0 0.0
    %838 = vmatprep.subr.mxu0 0.0
    %839 = vmatpush1.msra.mxu0 0.0
    %840 = vmatprep.subr.mxu0 0.0
    %841 = vmatpush1.msra.mxu0 0.0
    %842 = vmatprep.subr.mxu0 0.0
    %843 = vmatpush1.msra.mxu0 0.0
    %844 = vmatprep.subr.mxu0 0.0
    %845 = vmatpush1.msra.mxu0 0.0
    %846 = vmatprep.subr.mxu0 0.0
    %847 = vmatpush1.msra.mxu0 0.0
    %848 = vmatprep.subr.mxu0 0.0
    %849 = vmatpush1.msra.mxu0 0.0
    %850 = vmatprep.subr.mxu0 0.0
    %851 = vmatpush1.msra.mxu0 0.0
    %852 = vmatprep.mubr.f32.mxu0 0.0
    %853 = vmatmul.mubr.f32.gmra.mrb[0].mxu0 %v784
    %v854 = vpop.f32.mrb[0].mxu0
    %v855 = vadd.f32 0.0, %v854
    %v856 = vpop.f32.mrb[0].mxu0
    %857 = vdwg.mxu0
    %858 = vrot.lane.b32.xlu0 %v449, 64
    %v859 = vpop.permute.xlu0 %858
    %860 = vrot.lane.b32.xlu0 %v451, 64
    %v861 = vpop.permute.xlu0 %860
    %v862 = vsel %vm523, %v859, 0
    %v864 = vsel %vm523, %v861, 0
    %866 = vmatprep.subr.mxu0 0.0
    %867 = vmatpush1.xpose.msra.mxu0 %v864
    %868 = vmatprep.subr.mxu0 0.0
    %869 = vmatpush1.xpose.msra.mxu0 0.0
    %870 = vmatprep.subr.mxu0 0.0
    %871 = vmatpush1.xpose.msra.mxu0 0.0
    %872 = vmatprep.subr.mxu0 0.0
    %873 = vmatpush1.xpose.msra.mxu0 0.0
    %874 = vmatprep.subr.mxu0 0.0
    %875 = vmatpush1.xpose.msra.mxu0 0.0
    %876 = vmatprep.subr.mxu0 0.0
    %877 = vmatpush1.xpose.msra.mxu0 0.0
    %878 = vmatprep.subr.mxu0 0.0
    %879 = vmatpush1.xpose.msra.mxu0 0.0
    %880 = vmatprep.subr.mxu0 0.0
    %881 = vmatpush1.xpose.msra.mxu0 0.0
    %882 = vmatprep.subr.mxu0 0.0
    %883 = vmatpush1.xpose.msra.mxu0 0.0
    %884 = vmatprep.subr.mxu0 0.0
    %885 = vmatpush1.xpose.msra.mxu0 0.0
    %886 = vmatprep.subr.mxu0 0.0
    %887 = vmatpush1.xpose.msra.mxu0 0.0
    %888 = vmatprep.subr.mxu0 0.0
    %889 = vmatpush1.xpose.msra.mxu0 0.0
    %890 = vmatprep.subr.mxu0 0.0
    %891 = vmatpush1.xpose.msra.mxu0 0.0
    %892 = vmatprep.subr.mxu0 0.0
    %893 = vmatpush1.xpose.msra.mxu0 0.0
    %894 = vmatprep.subr.mxu0 0.0
    %895 = vmatpush1.xpose.msra.mxu0 0.0
    %896 = vmatprep.subr.mxu0 0.0
    %897 = vmatpush1.xpose.msra.mxu0 0.0
    %898 = vmatprep.subr.mxu0 0.0
    %899 = vmatpush1.xpose.msra.mxu0 0.0
    %900 = vmatprep.subr.mxu0 0.0
    %901 = vmatpush1.xpose.msra.mxu0 0.0
    %902 = vmatprep.subr.mxu0 0.0
    %903 = vmatpush1.xpose.msra.mxu0 0.0
    %904 = vmatprep.subr.mxu0 0.0
    %905 = vmatpush1.xpose.msra.mxu0 0.0
    %906 = vmatprep.subr.mxu0 0.0
    %907 = vmatpush1.xpose.msra.mxu0 0.0
    %908 = vmatprep.subr.mxu0 0.0
    %909 = vmatpush1.xpose.msra.mxu0 0.0
    %910 = vmatprep.subr.mxu0 0.0
    %911 = vmatpush1.xpose.msra.mxu0 0.0
    %912 = vmatprep.subr.mxu0 0.0
    %913 = vmatpush1.xpose.msra.mxu0 0.0
    %914 = vmatprep.subr.mxu0 0.0
    %915 = vmatpush1.xpose.msra.mxu0 0.0
    %916 = vmatprep.subr.mxu0 0.0
    %917 = vmatpush1.xpose.msra.mxu0 0.0
    %918 = vmatprep.subr.mxu0 0.0
    %919 = vmatpush1.xpose.msra.mxu0 0.0
    %920 = vmatprep.subr.mxu0 0.0
    %921 = vmatpush1.xpose.msra.mxu0 0.0
    %922 = vmatprep.subr.mxu0 0.0
    %923 = vmatpush1.xpose.msra.mxu0 0.0
    %924 = vmatprep.subr.mxu0 0.0
    %925 = vmatpush1.xpose.msra.mxu0 0.0
    %926 = vmatprep.subr.mxu0 0.0
    %927 = vmatpush1.xpose.msra.mxu0 0.0
    %928 = vmatprep.subr.mxu0 0.0
    %929 = vmatpush1.xpose.msra.mxu0 0.0
    %930 = vmatprep.mubr.f32.mxu0 0.0
    %931 = vmatmul.mubr.f32.gmra.mrb[0].mxu0 %v862
    %v932 = vpop.f32.mrb[0].mxu0
    %v933 = vadd.f32 0.0, %v932
    %v934 = vpop.f32.mrb[0].mxu0
    %935 = vdwg.mxu0
    %v936 = vmul.f32 %v933, 0.17677669
    %v937 = vsel %vm601, %v936, -inf
    %938 = vmax.xlane.f32.xlu0 %v937
    %v939 = vpop.xlane.xlu0 %938
    %v940 = vsub.f32 %v936, %v939
    %v941 = vmul.f32 %v940, 1.442695
    %v942 = vpow.pop %v941
    %v943 = vsel %vm601, %v942, 0.0
    %944 = vadd.xlane.f32.xlu0 %v943
    %v945 = vpop.xlane.xlu0 %944
    %v946 = vrcp.pop %v945
    %v947 = vmul.f32 %v942, %v946
    %948 = vrot.lane.b32.xlu0 %v520, 64
    %v949 = vpop.permute.xlu0 %948
    %v951 = vsel %vm613, %v947, 0
    %v953 = vsel %vm617, %v949, 0
    %955 = vmatprep.subr.mxu0 0.0
    %956 = vmatpush1.msra.mxu0 %v953
    %957 = vmatprep.subr.mxu0 0.0
    %958 = vmatpush1.msra.mxu0 0.0
    %959 = vmatprep.subr.mxu0 0.0
    %960 = vmatpush1.msra.mxu0 0.0
    %961 = vmatprep.subr.mxu0 0.0
    %962 = vmatpush1.msra.mxu0 0.0
    %963 = vmatprep.subr.mxu0 0.0
    %964 = vmatpush1.msra.mxu0 0.0
    %965 = vmatprep.subr.mxu0 0.0
    %966 = vmatpush1.msra.mxu0 0.0
    %967 = vmatprep.subr.mxu0 0.0
    %968 = vmatpush1.msra.mxu0 0.0
    %969 = vmatprep.subr.mxu0 0.0
    %970 = vmatpush1.msra.mxu0 0.0
    %971 = vmatprep.subr.mxu0 0.0
    %972 = vmatpush1.msra.mxu0 0.0
    %973 = vmatprep.subr.mxu0 0.0
    %974 = vmatpush1.msra.mxu0 0.0
    %975 = vmatprep.subr.mxu0 0.0
    %976 = vmatpush1.msra.mxu0 0.0
    %977 = vmatprep.subr.mxu0 0.0
    %978 = vmatpush1.msra.mxu0 0.0
    %979 = vmatprep.subr.mxu0 0.0
    %980 = vmatpush1.msra.mxu0 0.0
    %981 = vmatprep.subr.mxu0 0.0
    %982 = vmatpush1.msra.mxu0 0.0
    %983 = vmatprep.subr.mxu0 0.0
    %984 = vmatpush1.msra.mxu0 0.0
    %985 = vmatprep.subr.mxu0 0.0
    %986 = vmatpush1.msra.mxu0 0.0
    %987 = vmatprep.subr.mxu0 0.0
    %988 = vmatpush1.msra.mxu0 0.0
    %989 = vmatprep.subr.mxu0 0.0
    %990 = vmatpush1.msra.mxu0 0.0
    %991 = vmatprep.subr.mxu0 0.0
    %992 = vmatpush1.msra.mxu0 0.0
    %993 = vmatprep.subr.mxu0 0.0
    %994 = vmatpush1.msra.mxu0 0.0
    %995 = vmatprep.subr.mxu0 0.0
    %996 = vmatpush1.msra.mxu0 0.0
    %997 = vmatprep.subr.mxu0 0.0
    %998 = vmatpush1.msra.mxu0 0.0
    %999 = vmatprep.subr.mxu0 0.0
    %1000 = vmatpush1.msra.mxu0 0.0
    %1001 = vmatprep.subr.mxu0 0.0
    %1002 = vmatpush1.msra.mxu0 0.0
    %1003 = vmatprep.subr.mxu0 0.0
    %1004 = vmatpush1.msra.mxu0 0.0
    %1005 = vmatprep.subr.mxu0 0.0
    %1006 = vmatpush1.msra.mxu0 0.0
    %1007 = vmatprep.subr.mxu0 0.0
    %1008 = vmatpush1.msra.mxu0 0.0
    %1009 = vmatprep.subr.mxu0 0.0
    %1010 = vmatpush1.msra.mxu0 0.0
    %1011 = vmatprep.subr.mxu0 0.0
    %1012 = vmatpush1.msra.mxu0 0.0
    %1013 = vmatprep.subr.mxu0 0.0
    %1014 = vmatpush1.msra.mxu0 0.0
    %1015 = vmatprep.subr.mxu0 0.0
    %1016 = vmatpush1.msra.mxu0 0.0
    %1017 = vmatprep.subr.mxu0 0.0
    %1018 = vmatpush1.msra.mxu0 0.0
    %1019 = vmatprep.mubr.f32.mxu0 0.0
    %1020 = vmatmul.mubr.f32.gmra.mrb[0].mxu0 %v951
    %v1021 = vpop.f32.mrb[0].mxu0
    %v1022 = vadd.f32 0.0, %v1021
    %v1023 = vpop.f32.mrb[0].mxu0
    %1024 = vdwg.mxu0
    %1025 = vrot.lane.b32.xlu0 %v449, 32
    %v1026 = vpop.permute.xlu0 %1025
    %1027 = vrot.lane.b32.xlu0 %v451, 32
    %v1028 = vpop.permute.xlu0 %1027
    %v1029 = vsel %vm523, %v1026, 0
    %v1031 = vsel %vm523, %v1028, 0
    %1033 = vmatprep.subr.mxu0 0.0
    %1034 = vmatpush1.xpose.msra.mxu0 %v1031
    %1035 = vmatprep.subr.mxu0 0.0
    %1036 = vmatpush1.xpose.msra.mxu0 0.0
    %1037 = vmatprep.subr.mxu0 0.0
    %1038 = vmatpush1.xpose.msra.mxu0 0.0
    %1039 = vmatprep.subr.mxu0 0.0
    %1040 = vmatpush1.xpose.msra.mxu0 0.0
    %1041 = vmatprep.subr.mxu0 0.0
    %1042 = vmatpush1.xpose.msra.mxu0 0.0
    %1043 = vmatprep.subr.mxu0 0.0
    %1044 = vmatpush1.xpose.msra.mxu0 0.0
    %1045 = vmatprep.subr.mxu0 0.0
    %1046 = vmatpush1.xpose.msra.mxu0 0.0
    %1047 = vmatprep.subr.mxu0 0.0
    %1048 = vmatpush1.xpose.msra.mxu0 0.0
    %1049 = vmatprep.subr.mxu0 0.0
    %1050 = vmatpush1.xpose.msra.mxu0 0.0
    %1051 = vmatprep.subr.mxu0 0.0
    %1052 = vmatpush1.xpose.msra.mxu0 0.0
    %1053 = vmatprep.subr.mxu0 0.0
    %1054 = vmatpush1.xpose.msra.mxu0 0.0
    %1055 = vmatprep.subr.mxu0 0.0
    %1056 = vmatpush1.xpose.msra.mxu0 0.0
    %1057 = vmatprep.subr.mxu0 0.0
    %1058 = vmatpush1.xpose.msra.mxu0 0.0
    %1059 = vmatprep.subr.mxu0 0.0
    %1060 = vmatpush1.xpose.msra.mxu0 0.0
    %1061 = vmatprep.subr.mxu0 0.0
    %1062 = vmatpush1.xpose.msra.mxu0 0.0
    %1063 = vmatprep.subr.mxu0 0.0
    %1064 = vmatpush1.xpose.msra.mxu0 0.0
    %1065 = vmatprep.subr.mxu0 0.0
    %1066 = vmatpush1.xpose.msra.mxu0 0.0
    %1067 = vmatprep.subr.mxu0 0.0
    %1068 = vmatpush1.xpose.msra.mxu0 0.0
    %1069 = vmatprep.subr.mxu0 0.0
    %1070 = vmatpush1.xpose.msra.mxu0 0.0
    %1071 = vmatprep.subr.mxu0 0.0
    %1072 = vmatpush1.xpose.msra.mxu0 0.0
    %1073 = vmatprep.subr.mxu0 0.0
    %1074 = vmatpush1.xpose.msra.mxu0 0.0
    %1075 = vmatprep.subr.mxu0 0.0
    %1076 = vmatpush1.xpose.msra.mxu0 0.0
    %1077 = vmatprep.subr.mxu0 0.0
    %1078 = vmatpush1.xpose.msra.mxu0 0.0
    %1079 = vmatprep.subr.mxu0 0.0
    %1080 = vmatpush1.xpose.msra.mxu0 0.0
    %1081 = vmatprep.subr.mxu0 0.0
    %1082 = vmatpush1.xpose.msra.mxu0 0.0
    %1083 = vmatprep.subr.mxu0 0.0
    %1084 = vmatpush1.xpose.msra.mxu0 0.0
    %1085 = vmatprep.subr.mxu0 0.0
    %1086 = vmatpush1.xpose.msra.mxu0 0.0
    %1087 = vmatprep.subr.mxu0 0.0
    %1088 = vmatpush1.xpose.msra.mxu0 0.0
    %1089 = vmatprep.subr.mxu0 0.0
    %1090 = vmatpush1.xpose.msra.mxu0 0.0
    %1091 = vmatprep.subr.mxu0 0.0
    %1092 = vmatpush1.xpose.msra.mxu0 0.0
    %1093 = vmatprep.subr.mxu0 0.0
    %1094 = vmatpush1.xpose.msra.mxu0 0.0
    %1095 = vmatprep.subr.mxu0 0.0
    %1096 = vmatpush1.xpose.msra.mxu0 0.0
    %1097 = vmatprep.mubr.f32.mxu0 0.0
    %1098 = vmatmul.mubr.f32.gmra.mrb[0].mxu0 %v1029
    %v1099 = vpop.f32.mrb[0].mxu0
    %v1100 = vadd.f32 0.0, %v1099
    %v1101 = vpop.f32.mrb[0].mxu0
    %1102 = vdwg.mxu0
    %v1103 = vmul.f32 %v1100, 0.17677669
    %v1104 = vsel %vm601, %v1103, -inf
    %1105 = vmax.xlane.f32.xlu0 %v1104
    %v1106 = vpop.xlane.xlu0 %1105
    %v1107 = vsub.f32 %v1103, %v1106
    %v1108 = vmul.f32 %v1107, 1.442695
    %v1109 = vpow.pop %v1108
    %v1110 = vsel %vm601, %v1109, 0.0
    %1111 = vadd.xlane.f32.xlu0 %v1110
    %v1112 = vpop.xlane.xlu0 %1111
    %v1113 = vrcp.pop %v1112
    %v1114 = vmul.f32 %v1109, %v1113
    %1115 = vrot.lane.b32.xlu0 %v520, 32
    %v1116 = vpop.permute.xlu0 %1115
    %v1118 = vsel %vm613, %v1114, 0
    %v1120 = vsel %vm617, %v1116, 0
    %1122 = vmatprep.subr.mxu0 0.0
    %1123 = vmatpush1.msra.mxu0 %v1120
    %1124 = vmatprep.subr.mxu0 0.0
    %1125 = vmatpush1.msra.mxu0 0.0
    %1126 = vmatprep.subr.mxu0 0.0
    %1127 = vmatpush1.msra.mxu0 0.0
    %1128 = vmatprep.subr.mxu0 0.0
    %1129 = vmatpush1.msra.mxu0 0.0
    %1130 = vmatprep.subr.mxu0 0.0
    %1131 = vmatpush1.msra.mxu0 0.0
    %1132 = vmatprep.subr.mxu0 0.0
    %1133 = vmatpush1.msra.mxu0 0.0
    %1134 = vmatprep.subr.mxu0 0.0
    %1135 = vmatpush1.msra.mxu0 0.0
    %1136 = vmatprep.subr.mxu0 0.0
    %1137 = vmatpush1.msra.mxu0 0.0
    %1138 = vmatprep.subr.mxu0 0.0
    %1139 = vmatpush1.msra.mxu0 0.0
    %1140 = vmatprep.subr.mxu0 0.0
    %1141 = vmatpush1.msra.mxu0 0.0
    %1142 = vmatprep.subr.mxu0 0.0
    %1143 = vmatpush1.msra.mxu0 0.0
    %1144 = vmatprep.subr.mxu0 0.0
    %1145 = vmatpush1.msra.mxu0 0.0
    %1146 = vmatprep.subr.mxu0 0.0
    %1147 = vmatpush1.msra.mxu0 0.0
    %1148 = vmatprep.subr.mxu0 0.0
    %1149 = vmatpush1.msra.mxu0 0.0
    %1150 = vmatprep.subr.mxu0 0.0
    %1151 = vmatpush1.msra.mxu0 0.0
    %1152 = vmatprep.subr.mxu0 0.0
    %1153 = vmatpush1.msra.mxu0 0.0
    %1154 = vmatprep.subr.mxu0 0.0
    %1155 = vmatpush1.msra.mxu0 0.0
    %1156 = vmatprep.subr.mxu0 0.0
    %1157 = vmatpush1.msra.mxu0 0.0
    %1158 = vmatprep.subr.mxu0 0.0
    %1159 = vmatpush1.msra.mxu0 0.0
    %1160 = vmatprep.subr.mxu0 0.0
    %1161 = vmatpush1.msra.mxu0 0.0
    %1162 = vmatprep.subr.mxu0 0.0
    %1163 = vmatpush1.msra.mxu0 0.0
    %1164 = vmatprep.subr.mxu0 0.0
    %1165 = vmatpush1.msra.mxu0 0.0
    %1166 = vmatprep.subr.mxu0 0.0
    %1167 = vmatpush1.msra.mxu0 0.0
    %1168 = vmatprep.subr.mxu0 0.0
    %1169 = vmatpush1.msra.mxu0 0.0
    %1170 = vmatprep.subr.mxu0 0.0
    %1171 = vmatpush1.msra.mxu0 0.0
    %1172 = vmatprep.subr.mxu0 0.0
    %1173 = vmatpush1.msra.mxu0 0.0
    %1174 = vmatprep.subr.mxu0 0.0
    %1175 = vmatpush1.msra.mxu0 0.0
    %1176 = vmatprep.subr.mxu0 0.0
    %1177 = vmatpush1.msra.mxu0 0.0
    %1178 = vmatprep.subr.mxu0 0.0
    %1179 = vmatpush1.msra.mxu0 0.0
    %1180 = vmatprep.subr.mxu0 0.0
    %1181 = vmatpush1.msra.mxu0 0.0
    %1182 = vmatprep.subr.mxu0 0.0
    %1183 = vmatpush1.msra.mxu0 0.0
    %1184 = vmatprep.subr.mxu0 0.0
    %1185 = vmatpush1.msra.mxu0 0.0
    %1186 = vmatprep.mubr.f32.mxu0 0.0
    %1187 = vmatmul.mubr.f32.gmra.mrb[0].mxu0 %v1118
    %v1188 = vpop.f32.mrb[0].mxu0
    %v1189 = vadd.f32 0.0, %v1188
    %v1190 = vpop.f32.mrb[0].mxu0
    %1191 = vdwg.mxu0
    %1193 = vrot.lane.b32.xlu0 %v855, 32
    %v1194 = vpop.permute.xlu0 %1193
    %1197 = vrot.lane.b32.xlu0 %v1022, 64
    %v1198 = vpop.permute.xlu0 %1197
    %1201 = vrot.lane.b32.xlu0 %v1189, 96
    %v1202 = vpop.permute.xlu0 %1201
    %v1204 = vsel %vm523, %v688, %v1194
    %vm1205 = vcmask 523264
    %v1206 = vsel %vm1205, %v1204, %v1198
    %vm1207 = vcmask 785408
    %v1208 = vsel %vm1207, %v1206, %v1202
    %v1209 = vlaneseq
    %v1210 = vshrl.u32 %v1209, 7
    %v1211 = vsub.s32 0, %v1210
    %v1212 = vrot.slane %v365, %v1211
    %1213 = vmatprep.subr.mxu0 0.0
    %1214 = vmatpush1.msra.mxu0 %v349
    %1215 = vmatprep.subr.mxu0 0.0
    %1216 = vmatpush1.msra.mxu0 %v350
    %1217 = vmatprep.subr.mxu0 0.0
    %1218 = vmatpush1.msra.mxu0 %v351
    %1219 = vmatprep.subr.mxu0 0.0
    %1220 = vmatpush1.msra.mxu0 %v352
    %1221 = vmatprep.subr.mxu0 0.0
    %1222 = vmatpush1.msra.mxu0 %v353
    %1223 = vmatprep.subr.mxu0 0.0
    %1224 = vmatpush1.msra.mxu0 %v354
    %1225 = vmatprep.subr.mxu0 0.0
    %1226 = vmatpush1.msra.mxu0 %v355
    %1227 = vmatprep.subr.mxu0 0.0
    %1228 = vmatpush1.msra.mxu0 %v356
    %1229 = vmatprep.subr.mxu0 0.0
    %1230 = vmatpush1.msra.mxu0 %v357
    %1231 = vmatprep.subr.mxu0 0.0
    %1232 = vmatpush1.msra.mxu0 %v358
    %1233 = vmatprep.subr.mxu0 0.0
    %1234 = vmatpush1.msra.mxu0 %v359
    %1235 = vmatprep.subr.mxu0 0.0
    %1236 = vmatpush1.msra.mxu0 %v360
    %1237 = vmatprep.subr.mxu0 0.0
    %1238 = vmatpush1.msra.mxu0 %v361
    %1239 = vmatprep.subr.mxu0 0.0
    %1240 = vmatpush1.msra.mxu0 %v362
    %1241 = vmatprep.subr.mxu0 0.0
    %1242 = vmatpush1.msra.mxu0 %v363
    %1243 = vmatprep.subr.mxu0 0.0
    %1244 = vmatpush1.msra.mxu0 %v364
    %1245 = vmatprep.subr.mxu0 0.0
    %1246 = vmatpush1.msra.mxu0 0.0
    %1247 = vmatprep.subr.mxu0 0.0
    %1248 = vmatpush1.msra.mxu0 0.0
    %1249 = vmatprep.subr.mxu0 0.0
    %1250 = vmatpush1.msra.mxu0 0.0
    %1251 = vmatprep.subr.mxu0 0.0
    %1252 = vmatpush1.msra.mxu0 0.0
    %1253 = vmatprep.subr.mxu0 0.0
    %1254 = vmatpush1.msra.mxu0 0.0
    %1255 = vmatprep.subr.mxu0 0.0
    %1256 = vmatpush1.msra.mxu0 0.0
    %1257 = vmatprep.subr.mxu0 0.0
    %1258 = vmatpush1.msra.mxu0 0.0
    %1259 = vmatprep.subr.mxu0 0.0
    %1260 = vmatpush1.msra.mxu0 0.0
    %1261 = vmatprep.subr.mxu0 0.0
    %1262 = vmatpush1.msra.mxu0 0.0
    %1263 = vmatprep.subr.mxu0 0.0
    %1264 = vmatpush1.msra.mxu0 0.0
    %1265 = vmatprep.subr.mxu0 0.0
    %1266 = vmatpush1.msra.mxu0 0.0
    %1267 = vmatprep.subr.mxu0 0.0
    %1268 = vmatpush1.msra.mxu0 0.0
    %1269 = vmatprep.subr.mxu0 0.0
    %1270 = vmatpush1.msra.mxu0 0.0
    %1271 = vmatprep.subr.mxu0 0.0
    %1272 = vmatpush1.msra.mxu0 0.0
    %1273 = vmatprep.subr.mxu0 0.0
    %1274 = vmatpush1.msra.mxu0 0.0
    %1275 = vmatprep.subr.mxu0 0.0
    %1276 = vmatpush1.msra.mxu0 0.0
    %1277 = vmatprep.mubr.f32.mxu0 0.0
    %1278 = vmatmul.mubr.f32.gmra.mrb[0].mxu0 %v1208
    %v1279 = vpop.f32.mrb[0].mxu0
    %v1280 = vadd.f32 %v1212, %v1279
    %v1281 = vpop.f32.mrb[0].mxu0
    %1282 = vdwg.mxu0
    %v1283 = vld [vmem:[#allocation7 + $0x180] sm:$0xff]
    %v1284 = vld [vmem:[#allocation7 + $0x188] sm:$0xff]
    %v1285 = vld [vmem:[#allocation7 + $0x190] sm:$0xff]
    %v1286 = vld [vmem:[#allocation7 + $0x198] sm:$0xff]
    %v1287 = vld [vmem:[#allocation7 + $0x1a0] sm:$0xff]
    %v1288 = vld [vmem:[#allocation7 + $0x1a8] sm:$0xff]
    %v1289 = vld [vmem:[#allocation7 + $0x1b0] sm:$0xff]
    %v1290 = vld [vmem:[#allocation7 + $0x1b8] sm:$0xff]
    %v1291 = vld [vmem:[#allocation7 + $0x1c0] sm:$0xff]
    %v1292 = vld [vmem:[#allocation7 + $0x1c8] sm:$0xff]
    %v1293 = vld [vmem:[#allocation7 + $0x1d0] sm:$0xff]
    %v1294 = vld [vmem:[#allocation7 + $0x1d8] sm:$0xff]
    %v1295 = vld [vmem:[#allocation7 + $0x1e0] sm:$0xff]
    %v1296 = vld [vmem:[#allocation7 + $0x1e8] sm:$0xff]
    %v1297 = vld [vmem:[#allocation7 + $0x1f0] sm:$0xff]
    %v1298 = vld [vmem:[#allocation7 + $0x1f8] sm:$0xff]
    %v1299 = vld [vmem:[#allocation7 + $0x200] sm:$0xff]
    %v1300 = vld [vmem:[#allocation7 + $0x208] sm:$0xff]
    %v1301 = vld [vmem:[#allocation7 + $0x210] sm:$0xff]
    %v1302 = vld [vmem:[#allocation7 + $0x218] sm:$0xff]
    %v1303 = vld [vmem:[#allocation7 + $0x220] sm:$0xff]
    %v1304 = vld [vmem:[#allocation7 + $0x228] sm:$0xff]
    %v1305 = vld [vmem:[#allocation7 + $0x230] sm:$0xff]
    %v1306 = vld [vmem:[#allocation7 + $0x238] sm:$0xff]
    %v1307 = vld [vmem:[#allocation7 + $0x240] sm:$0xff]
    %v1308 = vld [vmem:[#allocation7 + $0x248] sm:$0xff]
    %v1309 = vld [vmem:[#allocation7 + $0x250] sm:$0xff]
    %v1310 = vld [vmem:[#allocation7 + $0x258] sm:$0xff]
    %v1311 = vld [vmem:[#allocation7 + $0x260] sm:$0xff]
    %v1312 = vld [vmem:[#allocation7 + $0x268] sm:$0xff]
    %v1313 = vld [vmem:[#allocation7 + $0x270] sm:$0xff]
    %v1314 = vld [vmem:[#allocation7 + $0x278] sm:$0xff]
    %v1315 = vld [vmem:[#allocation7 + $0x280] sm:$0xff]
    %v1316 = vld [vmem:[#allocation7 + $0x288] sm:$0xff]
    %v1317 = vld [vmem:[#allocation7 + $0x290] sm:$0xff]
    %v1318 = vld [vmem:[#allocation7 + $0x298] sm:$0xff]
    %v1319 = vld [vmem:[#allocation7 + $0x2a0] sm:$0xff]
    %v1320 = vld [vmem:[#allocation7 + $0x2a8] sm:$0xff]
    %v1321 = vld [vmem:[#allocation7 + $0x2b0] sm:$0xff]
    %v1322 = vld [vmem:[#allocation7 + $0x2b8] sm:$0xff]
    %v1323 = vld [vmem:[#allocation7 + $0x2c0] sm:$0xff]
    %v1324 = vld [vmem:[#allocation7 + $0x2c8] sm:$0xff]
    %v1325 = vld [vmem:[#allocation7 + $0x2d0] sm:$0xff]
    %v1326 = vld [vmem:[#allocation7 + $0x2d8] sm:$0xff]
    %v1327 = vld [vmem:[#allocation7 + $0x2e0] sm:$0xff]
    %v1328 = vld [vmem:[#allocation7 + $0x2e8] sm:$0xff]
    %v1329 = vld [vmem:[#allocation7 + $0x2f0] sm:$0xff]
    %v1330 = vld [vmem:[#allocation7 + $0x2f8] sm:$0xff]
    %s1331 = scalar_lea.vmem [#allocation7], 1176
    %v1332 = vld [vmem:[%s1331] ss:$8 sm:$0x7]
    %v1333 = vld [vmem:[#allocation5 + $0x200] sm:$0xff]
    %v1334 = vld [vmem:[#allocation5 + $0x208] sm:$0xff]
    %v1335 = vld [vmem:[#allocation5 + $0x210] sm:$0xff]
    %v1336 = vld [vmem:[#allocation5 + $0x218] sm:$0xff]
    %v1337 = vld [vmem:[#allocation5 + $0x220] sm:$0xff]
    %v1338 = vld [vmem:[#allocation5 + $0x228] sm:$0xff]
    %v1339 = vld [vmem:[#allocation5 + $0x230] sm:$0xff]
    %v1340 = vld [vmem:[#allocation5 + $0x238] sm:$0xff]
    %v1341 = vld [vmem:[#allocation5 + $0x240] sm:$0xff]
    %v1342 = vld [vmem:[#allocation5 + $0x248] sm:$0xff]
    %v1343 = vld [vmem:[#allocation5 + $0x250] sm:$0xff]
    %v1344 = vld [vmem:[#allocation5 + $0x258] sm:$0xff]
    %v1345 = vld [vmem:[#allocation5 + $0x260] sm:$0xff]
    %v1346 = vld [vmem:[#allocation5 + $0x268] sm:$0xff]
    %v1347 = vld [vmem:[#allocation5 + $0x270] sm:$0xff]
    %v1348 = vld [vmem:[#allocation5 + $0x278] sm:$0xff]
    %v1349 = vld [vmem:[#allocation5 + $0x490] sm:$0x1]
    %v1351 = vlaneseq
    %v1352 = vshrl.u32 %v1351, 7
    %v1353 = vsub.s32 0, %v1352
    %v1354 = vrot.slane %v1332, %v1353
    %v1355 = vlaneseq
    %v1356 = vshrl.u32 %v1355, 7
    %v1357 = vsub.s32 1, %v1356
    %v1358 = vrot.slane %v1332, %v1357
    %v1359 = vlaneseq
    %v1360 = vshrl.u32 %v1359, 7
    %v1361 = vsub.s32 2, %v1360
    %v1362 = vrot.slane %v1332, %v1361
    %1366 = vmatprep.subr.mxu0 %v1284
    %1367 = vmatpush1.msra.mxu0 %v1283
    %1368 = vmatprep.subr.mxu0 %v1287
    %1369 = vmatpush1.msra.mxu0 %v1286
    %1370 = vmatprep.subr.mxu0 %v1290
    %1371 = vmatpush1.msra.mxu0 %v1289
    %1372 = vmatprep.subr.mxu0 %v1293
    %1373 = vmatpush1.msra.mxu0 %v1292
    %1374 = vmatprep.subr.mxu0 %v1296
    %1375 = vmatpush1.msra.mxu0 %v1295
    %1376 = vmatprep.subr.mxu0 %v1299
    %1377 = vmatpush1.msra.mxu0 %v1298
    %1378 = vmatprep.subr.mxu0 %v1302
    %1379 = vmatpush1.msra.mxu0 %v1301
    %1380 = vmatprep.subr.mxu0 %v1305
    %1381 = vmatpush1.msra.mxu0 %v1304
    %1382 = vmatprep.subr.mxu0 %v1308
    %1383 = vmatpush1.msra.mxu0 %v1307
    %1384 = vmatprep.subr.mxu0 %v1311
    %1385 = vmatpush1.msra.mxu0 %v1310
    %1386 = vmatprep.subr.mxu0 %v1314
    %1387 = vmatpush1.msra.mxu0 %v1313
    %1388 = vmatprep.subr.mxu0 %v1317
    %1389 = vmatpush1.msra.mxu0 %v1316
    %1390 = vmatprep.subr.mxu0 %v1320
    %1391 = vmatpush1.msra.mxu0 %v1319
    %1392 = vmatprep.subr.mxu0 %v1323
    %1393 = vmatpush1.msra.mxu0 %v1322
    %1394 = vmatprep.subr.mxu0 %v1326
    %1395 = vmatpush1.msra.mxu0 %v1325
    %1396 = vmatprep.subr.mxu0 %v1329
    %1397 = vmatpush1.msra.mxu0 %v1328
    %1398 = vmatprep.subr.mxu0 0.0
    %1399 = vmatpush1.msra.mxu0 0.0
    %1400 = vmatprep.subr.mxu0 0.0
    %1401 = vmatpush1.msra.mxu0 0.0
    %1402 = vmatprep.subr.mxu0 0.0
    %1403 = vmatpush1.msra.mxu0 0.0
    %1404 = vmatprep.subr.mxu0 0.0
    %1405 = vmatpush1.msra.mxu0 0.0
    %1406 = vmatprep.subr.mxu0 0.0
    %1407 = vmatpush1.msra.mxu0 0.0
    %1408 = vmatprep.subr.mxu0 0.0
    %1409 = vmatpush1.msra.mxu0 0.0
    %1410 = vmatprep.subr.mxu0 0.0
    %1411 = vmatpush1.msra.mxu0 0.0
    %1412 = vmatprep.subr.mxu0 0.0
    %1413 = vmatpush1.msra.mxu0 0.0
    %1414 = vmatprep.subr.mxu0 0.0
    %1415 = vmatpush1.msra.mxu0 0.0
    %1416 = vmatprep.subr.mxu0 0.0
    %1417 = vmatpush1.msra.mxu0 0.0
    %1418 = vmatprep.subr.mxu0 0.0
    %1419 = vmatpush1.msra.mxu0 0.0
    %1420 = vmatprep.subr.mxu0 0.0
    %1421 = vmatpush1.msra.mxu0 0.0
    %1422 = vmatprep.subr.mxu0 0.0
    %1423 = vmatpush1.msra.mxu0 0.0
    %1424 = vmatprep.subr.mxu0 0.0
    %1425 = vmatpush1.msra.mxu0 0.0
    %1426 = vmatprep.subr.mxu0 0.0
    %1427 = vmatpush1.msra.mxu0 0.0
    %1428 = vmatprep.subr.mxu0 0.0
    %1429 = vmatpush1.msra.mxu0 0.0
    %1430 = vmatprep.mubr.f32.mxu0 0.0
    %1431 = vmatmul.mubr.f32.gmra.mrb[0].mxu0 %v298
    %v1432 = vpop.f32.mrb[0].mxu0
    %v1433 = vadd.f32 %v1354, %v1432
    %v1434 = vpop.f32.mrb[0].mxu0
    %v1435 = vadd.f32 %v1358, %v1434
    %1436 = vdwg.mxu0
    %1437 = vmatprep.subr.mxu0 0.0
    %1438 = vmatpush1.msra.mxu0 %v1285
    %1439 = vmatprep.subr.mxu0 0.0
    %1440 = vmatpush1.msra.mxu0 %v1288
    %1441 = vmatprep.subr.mxu0 0.0
    %1442 = vmatpush1.msra.mxu0 %v1291
    %1443 = vmatprep.subr.mxu0 0.0
    %1444 = vmatpush1.msra.mxu0 %v1294
    %1445 = vmatprep.subr.mxu0 0.0
    %1446 = vmatpush1.msra.mxu0 %v1297
    %1447 = vmatprep.subr.mxu0 0.0
    %1448 = vmatpush1.msra.mxu0 %v1300
    %1449 = vmatprep.subr.mxu0 0.0
    %1450 = vmatpush1.msra.mxu0 %v1303
    %1451 = vmatprep.subr.mxu0 0.0
    %1452 = vmatpush1.msra.mxu0 %v1306
    %1453 = vmatprep.subr.mxu0 0.0
    %1454 = vmatpush1.msra.mxu0 %v1309
    %1455 = vmatprep.subr.mxu0 0.0
    %1456 = vmatpush1.msra.mxu0 %v1312
    %1457 = vmatprep.subr.mxu0 0.0
    %1458 = vmatpush1.msra.mxu0 %v1315
    %1459 = vmatprep.subr.mxu0 0.0
    %1460 = vmatpush1.msra.mxu0 %v1318
    %1461 = vmatprep.subr.mxu0 0.0
    %1462 = vmatpush1.msra.mxu0 %v1321
    %1463 = vmatprep.subr.mxu0 0.0
    %1464 = vmatpush1.msra.mxu0 %v1324
    %1465 = vmatprep.subr.mxu0 0.0
    %1466 = vmatpush1.msra.mxu0 %v1327
    %1467 = vmatprep.subr.mxu0 0.0
    %1468 = vmatpush1.msra.mxu0 %v1330
    %1469 = vmatprep.subr.mxu0 0.0
    %1470 = vmatpush1.msra.mxu0 0.0
    %1471 = vmatprep.subr.mxu0 0.0
    %1472 = vmatpush1.msra.mxu0 0.0
    %1473 = vmatprep.subr.mxu0 0.0
    %1474 = vmatpush1.msra.mxu0 0.0
    %1475 = vmatprep.subr.mxu0 0.0
    %1476 = vmatpush1.msra.mxu0 0.0
    %1477 = vmatprep.subr.mxu0 0.0
    %1478 = vmatpush1.msra.mxu0 0.0
    %1479 = vmatprep.subr.mxu0 0.0
    %1480 = vmatpush1.msra.mxu0 0.0
    %1481 = vmatprep.subr.mxu0 0.0
    %1482 = vmatpush1.msra.mxu0 0.0
    %1483 = vmatprep.subr.mxu0 0.0
    %1484 = vmatpush1.msra.mxu0 0.0
    %1485 = vmatprep.subr.mxu0 0.0
    %1486 = vmatpush1.msra.mxu0 0.0
    %1487 = vmatprep.subr.mxu0 0.0
    %1488 = vmatpush1.msra.mxu0 0.0
    %1489 = vmatprep.subr.mxu0 0.0
    %1490 = vmatpush1.msra.mxu0 0.0
    %1491 = vmatprep.subr.mxu0 0.0
    %1492 = vmatpush1.msra.mxu0 0.0
    %1493 = vmatprep.subr.mxu0 0.0
    %1494 = vmatpush1.msra.mxu0 0.0
    %1495 = vmatprep.subr.mxu0 0.0
    %1496 = vmatpush1.msra.mxu0 0.0
    %1497 = vmatprep.subr.mxu0 0.0
    %1498 = vmatpush1.msra.mxu0 0.0
    %1499 = vmatprep.subr.mxu0 0.0
    %1500 = vmatpush1.msra.mxu0 0.0
    %1501 = vmatprep.mubr.f32.mxu0 0.0
    %1502 = vmatmul.mubr.f32.gmra.mrb[0].mxu0 %v298
    %v1503 = vpop.f32.mrb[0].mxu0
    %v1504 = vadd.f32 %v1362, %v1503
    %v1505 = vpop.f32.mrb[0].mxu0
    %1506 = vdwg.mxu0
    %v1508 = vsel %vm523, %v1433, 0
    %v1511 = vsel %vm523, %v1435, 0
    %1513 = vmatprep.subr.mxu0 0.0
    %1514 = vmatpush1.xpose.msra.mxu0 %v1511
    %1515 = vmatprep.subr.mxu0 0.0
    %1516 = vmatpush1.xpose.msra.mxu0 0.0
    %1517 = vmatprep.subr.mxu0 0.0
    %1518 = vmatpush1.xpose.msra.mxu0 0.0
    %1519 = vmatprep.subr.mxu0 0.0
    %1520 = vmatpush1.xpose.msra.mxu0 0.0
    %1521 = vmatprep.subr.mxu0 0.0
    %1522 = vmatpush1.xpose.msra.mxu0 0.0
    %1523 = vmatprep.subr.mxu0 0.0
    %1524 = vmatpush1.xpose.msra.mxu0 0.0
    %1525 = vmatprep.subr.mxu0 0.0
    %1526 = vmatpush1.xpose.msra.mxu0 0.0
    %1527 = vmatprep.subr.mxu0 0.0
    %1528 = vmatpush1.xpose.msra.mxu0 0.0
    %1529 = vmatprep.subr.mxu0 0.0
    %1530 = vmatpush1.xpose.msra.mxu0 0.0
    %1531 = vmatprep.subr.mxu0 0.0
    %1532 = vmatpush1.xpose.msra.mxu0 0.0
    %1533 = vmatprep.subr.mxu0 0.0
    %1534 = vmatpush1.xpose.msra.mxu0 0.0
    %1535 = vmatprep.subr.mxu0 0.0
    %1536 = vmatpush1.xpose.msra.mxu0 0.0
    %1537 = vmatprep.subr.mxu0 0.0
    %1538 = vmatpush1.xpose.msra.mxu0 0.0
    %1539 = vmatprep.subr.mxu0 0.0
    %1540 = vmatpush1.xpose.msra.mxu0 0.0
    %1541 = vmatprep.subr.mxu0 0.0
    %1542 = vmatpush1.xpose.msra.mxu0 0.0
    %1543 = vmatprep.subr.mxu0 0.0
    %1544 = vmatpush1.xpose.msra.mxu0 0.0
    %1545 = vmatprep.subr.mxu0 0.0
    %1546 = vmatpush1.xpose.msra.mxu0 0.0
    %1547 = vmatprep.subr.mxu0 0.0
    %1548 = vmatpush1.xpose.msra.mxu0 0.0
    %1549 = vmatprep.subr.mxu0 0.0
    %1550 = vmatpush1.xpose.msra.mxu0 0.0
    %1551 = vmatprep.subr.mxu0 0.0
    %1552 = vmatpush1.xpose.msra.mxu0 0.0
    %1553 = vmatprep.subr.mxu0 0.0
    %1554 = vmatpush1.xpose.msra.mxu0 0.0
    %1555 = vmatprep.subr.mxu0 0.0
    %1556 = vmatpush1.xpose.msra.mxu0 0.0
    %1557 = vmatprep.subr.mxu0 0.0
    %1558 = vmatpush1.xpose.msra.mxu0 0.0
    %1559 = vmatprep.subr.mxu0 0.0
    %1560 = vmatpush1.xpose.msra.mxu0 0.0
    %1561 = vmatprep.subr.mxu0 0.0
    %1562 = vmatpush1.xpose.msra.mxu0 0.0
    %1563 = vmatprep.subr.mxu0 0.0
    %1564 = vmatpush1.xpose.msra.mxu0 0.0
    %1565 = vmatprep.subr.mxu0 0.0
    %1566 = vmatpush1.xpose.msra.mxu0 0.0
    %1567 = vmatprep.subr.mxu0 0.0
    %1568 = vmatpush1.xpose.msra.mxu0 0.0
    %1569 = vmatprep.subr.mxu0 0.0
    %1570 = vmatpush1.xpose.msra.mxu0 0.0
    %1571 = vmatprep.subr.mxu0 0.0
    %1572 = vmatpush1.xpose.msra.mxu0 0.0
    %1573 = vmatprep.subr.mxu0 0.0
    %1574 = vmatpush1.xpose.msra.mxu0 0.0
    %1575 = vmatprep.subr.mxu0 0.0
    %1576 = vmatpush1.xpose.msra.mxu0 0.0
    %1577 = vmatprep.mubr.f32.mxu0 0.0
    %1578 = vmatmul.mubr.f32.gmra.mrb[0].mxu0 %v1508
    %v1579 = vpop.f32.mrb[0].mxu0
    %v1580 = vadd.f32 0.0, %v1579
    %v1581 = vpop.f32.mrb[0].mxu0
    %1582 = vdwg.mxu0
    %v1583 = vmul.f32 %v1580, 0.17677669
    %v1584 = vsel %vm601, %v1583, -inf
    %1585 = vmax.xlane.f32.xlu0 %v1584
    %v1586 = vpop.xlane.xlu0 %1585
    %v1587 = vsub.f32 %v1583, %v1586
    %v1588 = vmul.f32 %v1587, 1.442695
    %v1589 = vpow.pop %v1588
    %v1590 = vsel %vm601, %v1589, 0.0
    %1591 = vadd.xlane.f32.xlu0 %v1590
    %v1592 = vpop.xlane.xlu0 %1591
    %v1593 = vrcp.pop %v1592
    %v1594 = vmul.f32 %v1589, %v1593
    %v1596 = vsel %vm613, %v1594, 0
    %v1599 = vsel %vm617, %v1504, 0
    %1601 = vmatprep.subr.mxu0 0.0
    %1602 = vmatpush1.msra.mxu0 %v1599
    %1603 = vmatprep.subr.mxu0 0.0
    %1604 = vmatpush1.msra.mxu0 0.0
    %1605 = vmatprep.subr.mxu0 0.0
    %1606 = vmatpush1.msra.mxu0 0.0
    %1607 = vmatprep.subr.mxu0 0.0
    %1608 = vmatpush1.msra.mxu0 0.0
    %1609 = vmatprep.subr.mxu0 0.0
    %1610 = vmatpush1.msra.mxu0 0.0
    %1611 = vmatprep.subr.mxu0 0.0
    %1612 = vmatpush1.msra.mxu0 0.0
    %1613 = vmatprep.subr.mxu0 0.0
    %1614 = vmatpush1.msra.mxu0 0.0
    %1615 = vmatprep.subr.mxu0 0.0
    %1616 = vmatpush1.msra.mxu0 0.0
    %1617 = vmatprep.subr.mxu0 0.0
    %1618 = vmatpush1.msra.mxu0 0.0
    %1619 = vmatprep.subr.mxu0 0.0
    %1620 = vmatpush1.msra.mxu0 0.0
    %1621 = vmatprep.subr.mxu0 0.0
    %1622 = vmatpush1.msra.mxu0 0.0
    %1623 = vmatprep.subr.mxu0 0.0
    %1624 = vmatpush1.msra.mxu0 0.0
    %1625 = vmatprep.subr.mxu0 0.0
    %1626 = vmatpush1.msra.mxu0 0.0
    %1627 = vmatprep.subr.mxu0 0.0
    %1628 = vmatpush1.msra.mxu0 0.0
    %1629 = vmatprep.subr.mxu0 0.0
    %1630 = vmatpush1.msra.mxu0 0.0
    %1631 = vmatprep.subr.mxu0 0.0
    %1632 = vmatpush1.msra.mxu0 0.0
    %1633 = vmatprep.subr.mxu0 0.0
    %1634 = vmatpush1.msra.mxu0 0.0
    %1635 = vmatprep.subr.mxu0 0.0
    %1636 = vmatpush1.msra.mxu0 0.0
    %1637 = vmatprep.subr.mxu0 0.0
    %1638 = vmatpush1.msra.mxu0 0.0
    %1639 = vmatprep.subr.mxu0 0.0
    %1640 = vmatpush1.msra.mxu0 0.0
    %1641 = vmatprep.subr.mxu0 0.0
    %1642 = vmatpush1.msra.mxu0 0.0
    %1643 = vmatprep.subr.mxu0 0.0
    %1644 = vmatpush1.msra.mxu0 0.0
    %1645 = vmatprep.subr.mxu0 0.0
    %1646 = vmatpush1.msra.mxu0 0.0
    %1647 = vmatprep.subr.mxu0 0.0
    %1648 = vmatpush1.msra.mxu0 0.0
    %1649 = vmatprep.subr.mxu0 0.0
    %1650 = vmatpush1.msra.mxu0 0.0
    %1651 = vmatprep.subr.mxu0 0.0
    %1652 = vmatpush1.msra.mxu0 0.0
    %1653 = vmatprep.subr.mxu0 0.0
    %1654 = vmatpush1.msra.mxu0 0.0
    %1655 = vmatprep.subr.mxu0 0.0
    %1656 = vmatpush1.msra.mxu0 0.0
    %1657 = vmatprep.subr.mxu0 0.0
    %1658 = vmatpush1.msra.mxu0 0.0
    %1659 = vmatprep.subr.mxu0 0.0
    %1660 = vmatpush1.msra.mxu0 0.0
    %1661 = vmatprep.subr.mxu0 0.0
    %1662 = vmatpush1.msra.mxu0 0.0
    %1663 = vmatprep.subr.mxu0 0.0
    %1664 = vmatpush1.msra.mxu0 0.0
    %1665 = vmatprep.mubr.f32.mxu0 0.0
    %1666 = vmatmul.mubr.f32.gmra.mrb[0].mxu0 %v1596
    %v1667 = vpop.f32.mrb[0].mxu0
    %v1668 = vadd.f32 0.0, %v1667
    %v1669 = vpop.f32.mrb[0].mxu0
    %1670 = vdwg.mxu0
    %1671 = vrot.lane.b32.xlu0 %v1433, 96
    %v1672 = vpop.permute.xlu0 %1671
    %1673 = vrot.lane.b32.xlu0 %v1435, 96
    %v1674 = vpop.permute.xlu0 %1673
    %v1675 = vsel %vm523, %v1672, 0
    %v1677 = vsel %vm523, %v1674, 0
    %1679 = vmatprep.subr.mxu0 0.0
    %1680 = vmatpush1.xpose.msra.mxu0 %v1677
    %1681 = vmatprep.subr.mxu0 0.0
    %1682 = vmatpush1.xpose.msra.mxu0 0.0
    %1683 = vmatprep.subr.mxu0 0.0
    %1684 = vmatpush1.xpose.msra.mxu0 0.0
    %1685 = vmatprep.subr.mxu0 0.0
    %1686 = vmatpush1.xpose.msra.mxu0 0.0
    %1687 = vmatprep.subr.mxu0 0.0
    %1688 = vmatpush1.xpose.msra.mxu0 0.0
    %1689 = vmatprep.subr.mxu0 0.0
    %1690 = vmatpush1.xpose.msra.mxu0 0.0
    %1691 = vmatprep.subr.mxu0 0.0
    %1692 = vmatpush1.xpose.msra.mxu0 0.0
    %1693 = vmatprep.subr.mxu0 0.0
    %1694 = vmatpush1.xpose.msra.mxu0 0.0
    %1695 = vmatprep.subr.mxu0 0.0
    %1696 = vmatpush1.xpose.msra.mxu0 0.0
    %1697 = vmatprep.subr.mxu0 0.0
    %1698 = vmatpush1.xpose.msra.mxu0 0.0
    %1699 = vmatprep.subr.mxu0 0.0
    %1700 = vmatpush1.xpose.msra.mxu0 0.0
    %1701 = vmatprep.subr.mxu0 0.0
    %1702 = vmatpush1.xpose.msra.mxu0 0.0
    %1703 = vmatprep.subr.mxu0 0.0
    %1704 = vmatpush1.xpose.msra.mxu0 0.0
    %1705 = vmatprep.subr.mxu0 0.0
    %1706 = vmatpush1.xpose.msra.mxu0 0.0
    %1707 = vmatprep.subr.mxu0 0.0
    %1708 = vmatpush1.xpose.msra.mxu0 0.0
    %1709 = vmatprep.subr.mxu0 0.0
    %1710 = vmatpush1.xpose.msra.mxu0 0.0
    %1711 = vmatprep.subr.mxu0 0.0
    %1712 = vmatpush1.xpose.msra.mxu0 0.0
    %1713 = vmatprep.subr.mxu0 0.0
    %1714 = vmatpush1.xpose.msra.mxu0 0.0
    %1715 = vmatprep.subr.mxu0 0.0
    %1716 = vmatpush1.xpose.msra.mxu0 0.0
    %1717 = vmatprep.subr.mxu0 0.0
    %1718 = vmatpush1.xpose.msra.mxu0 0.0
    %1719 = vmatprep.subr.mxu0 0.0
    %1720 = vmatpush1.xpose.msra.mxu0 0.0
    %1721 = vmatprep.subr.mxu0 0.0
    %1722 = vmatpush1.xpose.msra.mxu0 0.0
    %1723 = vmatprep.subr.mxu0 0.0
    %1724 = vmatpush1.xpose.msra.mxu0 0.0
    %1725 = vmatprep.subr.mxu0 0.0
    %1726 = vmatpush1.xpose.msra.mxu0 0.0
    %1727 = vmatprep.subr.mxu0 0.0
    %1728 = vmatpush1.xpose.msra.mxu0 0.0
    %1729 = vmatprep.subr.mxu0 0.0
    %1730 = vmatpush1.xpose.msra.mxu0 0.0
    %1731 = vmatprep.subr.mxu0 0.0
    %1732 = vmatpush1.xpose.msra.mxu0 0.0
    %1733 = vmatprep.subr.mxu0 0.0
    %1734 = vmatpush1.xpose.msra.mxu0 0.0
    %1735 = vmatprep.subr.mxu0 0.0
    %1736 = vmatpush1.xpose.msra.mxu0 0.0
    %1737 = vmatprep.subr.mxu0 0.0
    %1738 = vmatpush1.xpose.msra.mxu0 0.0
    %1739 = vmatprep.subr.mxu0 0.0
    %1740 = vmatpush1.xpose.msra.mxu0 0.0
    %1741 = vmatprep.subr.mxu0 0.0
    %1742 = vmatpush1.xpose.msra.mxu0 0.0
    %1743 = vmatprep.mubr.f32.mxu0 0.0
    %1744 = vmatmul.mubr.f32.gmra.mrb[0].mxu0 %v1675
    %v1745 = vpop.f32.mrb[0].mxu0
    %v1746 = vadd.f32 0.0, %v1745
    %v1747 = vpop.f32.mrb[0].mxu0
    %1748 = vdwg.mxu0
    %v1749 = vmul.f32 %v1746, 0.17677669
    %v1750 = vsel %vm601, %v1749, -inf
    %1751 = vmax.xlane.f32.xlu0 %v1750
    %v1752 = vpop.xlane.xlu0 %1751
    %v1753 = vsub.f32 %v1749, %v1752
    %v1754 = vmul.f32 %v1753, 1.442695
    %v1755 = vpow.pop %v1754
    %v1756 = vsel %vm601, %v1755, 0.0
    %1757 = vadd.xlane.f32.xlu0 %v1756
    %v1758 = vpop.xlane.xlu0 %1757
    %v1759 = vrcp.pop %v1758
    %v1760 = vmul.f32 %v1755, %v1759
    %1761 = vrot.lane.b32.xlu0 %v1504, 96
    %v1762 = vpop.permute.xlu0 %1761
    %v1764 = vsel %vm613, %v1760, 0
    %v1766 = vsel %vm617, %v1762, 0
    %1768 = vmatprep.subr.mxu0 0.0
    %1769 = vmatpush1.msra.mxu0 %v1766
    %1770 = vmatprep.subr.mxu0 0.0
    %1771 = vmatpush1.msra.mxu0 0.0
    %1772 = vmatprep.subr.mxu0 0.0
    %1773 = vmatpush1.msra.mxu0 0.0
    %1774 = vmatprep.subr.mxu0 0.0
    %1775 = vmatpush1.msra.mxu0 0.0
    %1776 = vmatprep.subr.mxu0 0.0
    %1777 = vmatpush1.msra.mxu0 0.0
    %1778 = vmatprep.subr.mxu0 0.0
    %1779 = vmatpush1.msra.mxu0 0.0
    %1780 = vmatprep.subr.mxu0 0.0
    %1781 = vmatpush1.msra.mxu0 0.0
    %1782 = vmatprep.subr.mxu0 0.0
    %1783 = vmatpush1.msra.mxu0 0.0
    %1784 = vmatprep.subr.mxu0 0.0
    %1785 = vmatpush1.msra.mxu0 0.0
    %1786 = vmatprep.subr.mxu0 0.0
    %1787 = vmatpush1.msra.mxu0 0.0
    %1788 = vmatprep.subr.mxu0 0.0
    %1789 = vmatpush1.msra.mxu0 0.0
    %1790 = vmatprep.subr.mxu0 0.0
    %1791 = vmatpush1.msra.mxu0 0.0
    %1792 = vmatprep.subr.mxu0 0.0
    %1793 = vmatpush1.msra.mxu0 0.0
    %1794 = vmatprep.subr.mxu0 0.0
    %1795 = vmatpush1.msra.mxu0 0.0
    %1796 = vmatprep.subr.mxu0 0.0
    %1797 = vmatpush1.msra.mxu0 0.0
    %1798 = vmatprep.subr.mxu0 0.0
    %1799 = vmatpush1.msra.mxu0 0.0
    %1800 = vmatprep.subr.mxu0 0.0
    %1801 = vmatpush1.msra.mxu0 0.0
    %1802 = vmatprep.subr.mxu0 0.0
    %1803 = vmatpush1.msra.mxu0 0.0
    %1804 = vmatprep.subr.mxu0 0.0
    %1805 = vmatpush1.msra.mxu0 0.0
    %1806 = vmatprep.subr.mxu0 0.0
    %1807 = vmatpush1.msra.mxu0 0.0
    %1808 = vmatprep.subr.mxu0 0.0
    %1809 = vmatpush1.msra.mxu0 0.0
    %1810 = vmatprep.subr.mxu0 0.0
    %1811 = vmatpush1.msra.mxu0 0.0
    %1812 = vmatprep.subr.mxu0 0.0
    %1813 = vmatpush1.msra.mxu0 0.0
    %1814 = vmatprep.subr.mxu0 0.0
    %1815 = vmatpush1.msra.mxu0 0.0
    %1816 = vmatprep.subr.mxu0 0.0
    %1817 = vmatpush1.msra.mxu0 0.0
    %1818 = vmatprep.subr.mxu0 0.0
    %1819 = vmatpush1.msra.mxu0 0.0
    %1820 = vmatprep.subr.mxu0 0.0
    %1821 = vmatpush1.msra.mxu0 0.0
    %1822 = vmatprep.subr.mxu0 0.0
    %1823 = vmatpush1.msra.mxu0 0.0
    %1824 = vmatprep.subr.mxu0 0.0
    %1825 = vmatpush1.msra.mxu0 0.0
    %1826 = vmatprep.subr.mxu0 0.0
    %1827 = vmatpush1.msra.mxu0 0.0
    %1828 = vmatprep.subr.mxu0 0.0
    %1829 = vmatpush1.msra.mxu0 0.0
    %1830 = vmatprep.subr.mxu0 0.0
    %1831 = vmatpush1.msra.mxu0 0.0
    %1832 = vmatprep.mubr.f32.mxu0 0.0
    %1833 = vmatmul.mubr.f32.gmra.mrb[0].mxu0 %v1764
    %v1834 = vpop.f32.mrb[0].mxu0
    %v1835 = vadd.f32 0.0, %v1834
    %v1836 = vpop.f32.mrb[0].mxu0
    %1837 = vdwg.mxu0
    %1838 = vrot.lane.b32.xlu0 %v1433, 64
    %v1839 = vpop.permute.xlu0 %1838
    %1840 = vrot.lane.b32.xlu0 %v1435, 64
    %v1841 = vpop.permute.xlu0 %1840
    %v1842 = vsel %vm523, %v1839, 0
    %v1844 = vsel %vm523, %v1841, 0
    %1846 = vmatprep.subr.mxu0 0.0
    %1847 = vmatpush1.xpose.msra.mxu0 %v1844
    %1848 = vmatprep.subr.mxu0 0.0
    %1849 = vmatpush1.xpose.msra.mxu0 0.0
    %1850 = vmatprep.subr.mxu0 0.0
    %1851 = vmatpush1.xpose.msra.mxu0 0.0
    %1852 = vmatprep.subr.mxu0 0.0
    %1853 = vmatpush1.xpose.msra.mxu0 0.0
    %1854 = vmatprep.subr.mxu0 0.0
    %1855 = vmatpush1.xpose.msra.mxu0 0.0
    %1856 = vmatprep.subr.mxu0 0.0
    %1857 = vmatpush1.xpose.msra.mxu0 0.0
    %1858 = vmatprep.subr.mxu0 0.0
    %1859 = vmatpush1.xpose.msra.mxu0 0.0
    %1860 = vmatprep.subr.mxu0 0.0
    %1861 = vmatpush1.xpose.msra.mxu0 0.0
    %1862 = vmatprep.subr.mxu0 0.0
    %1863 = vmatpush1.xpose.msra.mxu0 0.0
    %1864 = vmatprep.subr.mxu0 0.0
    %1865 = vmatpush1.xpose.msra.mxu0 0.0
    %1866 = vmatprep.subr.mxu0 0.0
    %1867 = vmatpush1.xpose.msra.mxu0 0.0
    %1868 = vmatprep.subr.mxu0 0.0
    %1869 = vmatpush1.xpose.msra.mxu0 0.0
    %1870 = vmatprep.subr.mxu0 0.0
    %1871 = vmatpush1.xpose.msra.mxu0 0.0
    %1872 = vmatprep.subr.mxu0 0.0
    %1873 = vmatpush1.xpose.msra.mxu0 0.0
    %1874 = vmatprep.subr.mxu0 0.0
    %1875 = vmatpush1.xpose.msra.mxu0 0.0
    %1876 = vmatprep.subr.mxu0 0.0
    %1877 = vmatpush1.xpose.msra.mxu0 0.0
    %1878 = vmatprep.subr.mxu0 0.0
    %1879 = vmatpush1.xpose.msra.mxu0 0.0
    %1880 = vmatprep.subr.mxu0 0.0
    %1881 = vmatpush1.xpose.msra.mxu0 0.0
    %1882 = vmatprep.subr.mxu0 0.0
    %1883 = vmatpush1.xpose.msra.mxu0 0.0
    %1884 = vmatprep.subr.mxu0 0.0
    %1885 = vmatpush1.xpose.msra.mxu0 0.0
    %1886 = vmatprep.subr.mxu0 0.0
    %1887 = vmatpush1.xpose.msra.mxu0 0.0
    %1888 = vmatprep.subr.mxu0 0.0
    %1889 = vmatpush1.xpose.msra.mxu0 0.0
    %1890 = vmatprep.subr.mxu0 0.0
    %1891 = vmatpush1.xpose.msra.mxu0 0.0
    %1892 = vmatprep.subr.mxu0 0.0
    %1893 = vmatpush1.xpose.msra.mxu0 0.0
    %1894 = vmatprep.subr.mxu0 0.0
    %1895 = vmatpush1.xpose.msra.mxu0 0.0
    %1896 = vmatprep.subr.mxu0 0.0
    %1897 = vmatpush1.xpose.msra.mxu0 0.0
    %1898 = vmatprep.subr.mxu0 0.0
    %1899 = vmatpush1.xpose.msra.mxu0 0.0
    %1900 = vmatprep.subr.mxu0 0.0
    %1901 = vmatpush1.xpose.msra.mxu0 0.0
    %1902 = vmatprep.subr.mxu0 0.0
    %1903 = vmatpush1.xpose.msra.mxu0 0.0
    %1904 = vmatprep.subr.mxu0 0.0
    %1905 = vmatpush1.xpose.msra.mxu0 0.0
    %1906 = vmatprep.subr.mxu0 0.0
    %1907 = vmatpush1.xpose.msra.mxu0 0.0
    %1908 = vmatprep.subr.mxu0 0.0
    %1909 = vmatpush1.xpose.msra.mxu0 0.0
    %1910 = vmatprep.mubr.f32.mxu0 0.0
    %1911 = vmatmul.mubr.f32.gmra.mrb[0].mxu0 %v1842
    %v1912 = vpop.f32.mrb[0].mxu0
    %v1913 = vadd.f32 0.0, %v1912
    %v1914 = vpop.f32.mrb[0].mxu0
    %1915 = vdwg.mxu0
    %v1916 = vmul.f32 %v1913, 0.17677669
    %v1917 = vsel %vm601, %v1916, -inf
    %1918 = vmax.xlane.f32.xlu0 %v1917
    %v1919 = vpop.xlane.xlu0 %1918
    %v1920 = vsub.f32 %v1916, %v1919
    %v1921 = vmul.f32 %v1920, 1.442695
    %v1922 = vpow.pop %v1921
    %v1923 = vsel %vm601, %v1922, 0.0
    %1924 = vadd.xlane.f32.xlu0 %v1923
    %v1925 = vpop.xlane.xlu0 %1924
    %v1926 = vrcp.pop %v1925
    %v1927 = vmul.f32 %v1922, %v1926
    %1928 = vrot.lane.b32.xlu0 %v1504, 64
    %v1929 = vpop.permute.xlu0 %1928
    %v1931 = vsel %vm613, %v1927, 0
    %v1933 = vsel %vm617, %v1929, 0
    %1935 = vmatprep.subr.mxu0 0.0
    %1936 = vmatpush1.msra.mxu0 %v1933
    %1937 = vmatprep.subr.mxu0 0.0
    %1938 = vmatpush1.msra.mxu0 0.0
    %1939 = vmatprep.subr.mxu0 0.0
    %1940 = vmatpush1.msra.mxu0 0.0
    %1941 = vmatprep.subr.mxu0 0.0
    %1942 = vmatpush1.msra.mxu0 0.0
    %1943 = vmatprep.subr.mxu0 0.0
    %1944 = vmatpush1.msra.mxu0 0.0
    %1945 = vmatprep.subr.mxu0 0.0
    %1946 = vmatpush1.msra.mxu0 0.0
    %1947 = vmatprep.subr.mxu0 0.0
    %1948 = vmatpush1.msra.mxu0 0.0
    %1949 = vmatprep.subr.mxu0 0.0
    %1950 = vmatpush1.msra.mxu0 0.0
    %1951 = vmatprep.subr.mxu0 0.0
    %1952 = vmatpush1.msra.mxu0 0.0
    %1953 = vmatprep.subr.mxu0 0.0
    %1954 = vmatpush1.msra.mxu0 0.0
    %1955 = vmatprep.subr.mxu0 0.0
    %1956 = vmatpush1.msra.mxu0 0.0
    %1957 = vmatprep.subr.mxu0 0.0
    %1958 = vmatpush1.msra.mxu0 0.0
    %1959 = vmatprep.subr.mxu0 0.0
    %1960 = vmatpush1.msra.mxu0 0.0
    %1961 = vmatprep.subr.mxu0 0.0
    %1962 = vmatpush1.msra.mxu0 0.0
    %1963 = vmatprep.subr.mxu0 0.0
    %1964 = vmatpush1.msra.mxu0 0.0
    %1965 = vmatprep.subr.mxu0 0.0
    %1966 = vmatpush1.msra.mxu0 0.0
    %1967 = vmatprep.subr.mxu0 0.0
    %1968 = vmatpush1.msra.mxu0 0.0
    %1969 = vmatprep.subr.mxu0 0.0
    %1970 = vmatpush1.msra.mxu0 0.0
    %1971 = vmatprep.subr.mxu0 0.0
    %1972 = vmatpush1.msra.mxu0 0.0
    %1973 = vmatprep.subr.mxu0 0.0
    %1974 = vmatpush1.msra.mxu0 0.0
    %1975 = vmatprep.subr.mxu0 0.0
    %1976 = vmatpush1.msra.mxu0 0.0
    %1977 = vmatprep.subr.mxu0 0.0
    %1978 = vmatpush1.msra.mxu0 0.0
    %1979 = vmatprep.subr.mxu0 0.0
    %1980 = vmatpush1.msra.mxu0 0.0
    %1981 = vmatprep.subr.mxu0 0.0
    %1982 = vmatpush1.msra.mxu0 0.0
    %1983 = vmatprep.subr.mxu0 0.0
    %1984 = vmatpush1.msra.mxu0 0.0
    %1985 = vmatprep.subr.mxu0 0.0
    %1986 = vmatpush1.msra.mxu0 0.0
    %1987 = vmatprep.subr.mxu0 0.0
    %1988 = vmatpush1.msra.mxu0 0.0
    %1989 = vmatprep.subr.mxu0 0.0
    %1990 = vmatpush1.msra.mxu0 0.0
    %1991 = vmatprep.subr.mxu0 0.0
    %1992 = vmatpush1.msra.mxu0 0.0
    %1993 = vmatprep.subr.mxu0 0.0
    %1994 = vmatpush1.msra.mxu0 0.0
    %1995 = vmatprep.subr.mxu0 0.0
    %1996 = vmatpush1.msra.mxu0 0.0
    %1997 = vmatprep.subr.mxu0 0.0
    %1998 = vmatpush1.msra.mxu0 0.0
    %1999 = vmatprep.mubr.f32.mxu0 0.0
    %2000 = vmatmul.mubr.f32.gmra.mrb[0].mxu0 %v1931
    %v2001 = vpop.f32.mrb[0].mxu0
    %v2002 = vadd.f32 0.0, %v2001
    %v2003 = vpop.f32.mrb[0].mxu0
    %2004 = vdwg.mxu0
    %2005 = vrot.lane.b32.xlu0 %v1433, 32
    %v2006 = vpop.permute.xlu0 %2005
    %2007 = vrot.lane.b32.xlu0 %v1435, 32
    %v2008 = vpop.permute.xlu0 %2007
    %v2009 = vsel %vm523, %v2006, 0
    %v2011 = vsel %vm523, %v2008, 0
    %2013 = vmatprep.subr.mxu0 0.0
    %2014 = vmatpush1.xpose.msra.mxu0 %v2011
    %2015 = vmatprep.subr.mxu0 0.0
    %2016 = vmatpush1.xpose.msra.mxu0 0.0
    %2017 = vmatprep.subr.mxu0 0.0
    %2018 = vmatpush1.xpose.msra.mxu0 0.0
    %2019 = vmatprep.subr.mxu0 0.0
    %2020 = vmatpush1.xpose.msra.mxu0 0.0
    %2021 = vmatprep.subr.mxu0 0.0
    %2022 = vmatpush1.xpose.msra.mxu0 0.0
    %2023 = vmatprep.subr.mxu0 0.0
    %2024 = vmatpush1.xpose.msra.mxu0 0.0
    %2025 = vmatprep.subr.mxu0 0.0
    %2026 = vmatpush1.xpose.msra.mxu0 0.0
    %2027 = vmatprep.subr.mxu0 0.0
    %2028 = vmatpush1.xpose.msra.mxu0 0.0
    %2029 = vmatprep.subr.mxu0 0.0
    %2030 = vmatpush1.xpose.msra.mxu0 0.0
    %2031 = vmatprep.subr.mxu0 0.0
    %2032 = vmatpush1.xpose.msra.mxu0 0.0
    %2033 = vmatprep.subr.mxu0 0.0
    %2034 = vmatpush1.xpose.msra.mxu0 0.0
    %2035 = vmatprep.subr.mxu0 0.0
    %2036 = vmatpush1.xpose.msra.mxu0 0.0
    %2037 = vmatprep.subr.mxu0 0.0
    %2038 = vmatpush1.xpose.msra.mxu0 0.0
    %2039 = vmatprep.subr.mxu0 0.0
    %2040 = vmatpush1.xpose.msra.mxu0 0.0
    %2041 = vmatprep.subr.mxu0 0.0
    %2042 = vmatpush1.xpose.msra.mxu0 0.0
    %2043 = vmatprep.subr.mxu0 0.0
    %2044 = vmatpush1.xpose.msra.mxu0 0.0
    %2045 = vmatprep.subr.mxu0 0.0
    %2046 = vmatpush1.xpose.msra.mxu0 0.0
    %2047 = vmatprep.subr.mxu0 0.0
    %2048 = vmatpush1.xpose.msra.mxu0 0.0
    %2049 = vmatprep.subr.mxu0 0.0
    %2050 = vmatpush1.xpose.msra.mxu0 0.0
    %2051 = vmatprep.subr.mxu0 0.0
    %2052 = vmatpush1.xpose.msra.mxu0 0.0
    %2053 = vmatprep.subr.mxu0 0.0
    %2054 = vmatpush1.xpose.msra.mxu0 0.0
    %2055 = vmatprep.subr.mxu0 0.0
    %2056 = vmatpush1.xpose.msra.mxu0 0.0
    %2057 = vmatprep.subr.mxu0 0.0
    %2058 = vmatpush1.xpose.msra.mxu0 0.0
    %2059 = vmatprep.subr.mxu0 0.0
    %2060 = vmatpush1.xpose.msra.mxu0 0.0
    %2061 = vmatprep.subr.mxu0 0.0
    %2062 = vmatpush1.xpose.msra.mxu0 0.0
    %2063 = vmatprep.subr.mxu0 0.0
    %2064 = vmatpush1.xpose.msra.mxu0 0.0
    %2065 = vmatprep.subr.mxu0 0.0
    %2066 = vmatpush1.xpose.msra.mxu0 0.0
    %2067 = vmatprep.subr.mxu0 0.0
    %2068 = vmatpush1.xpose.msra.mxu0 0.0
    %2069 = vmatprep.subr.mxu0 0.0
    %2070 = vmatpush1.xpose.msra.mxu0 0.0
    %2071 = vmatprep.subr.mxu0 0.0
    %2072 = vmatpush1.xpose.msra.mxu0 0.0
    %2073 = vmatprep.subr.mxu0 0.0
    %2074 = vmatpush1.xpose.msra.mxu0 0.0
    %2075 = vmatprep.subr.mxu0 0.0
    %2076 = vmatpush1.xpose.msra.mxu0 0.0
    %2077 = vmatprep.mubr.f32.mxu0 0.0
    %2078 = vmatmul.mubr.f32.gmra.mrb[0].mxu0 %v2009
    %v2079 = vpop.f32.mrb[0].mxu0
    %v2080 = vadd.f32 0.0, %v2079
    %v2081 = vpop.f32.mrb[0].mxu0
    %2082 = vdwg.mxu0
    %v2083 = vmul.f32 %v2080, 0.17677669
    %v2084 = vsel %vm601, %v2083, -inf
    %2085 = vmax.xlane.f32.xlu0 %v2084
    %v2086 = vpop.xlane.xlu0 %2085
    %v2087 = vsub.f32 %v2083, %v2086
    %v2088 = vmul.f32 %v2087, 1.442695
    %v2089 = vpow.pop %v2088
    %v2090 = vsel %vm601, %v2089, 0.0
    %2091 = vadd.xlane.f32.xlu0 %v2090
    %v2092 = vpop.xlane.xlu0 %2091
    %v2093 = vrcp.pop %v2092
    %v2094 = vmul.f32 %v2089, %v2093
    %2095 = vrot.lane.b32.xlu0 %v1504, 32
    %v2096 = vpop.permute.xlu0 %2095
    %v2098 = vsel %vm613, %v2094, 0
    %v2100 = vsel %vm617, %v2096, 0
    %2102 = vmatprep.subr.mxu0 0.0
    %2103 = vmatpush1.msra.mxu0 %v2100
    %2104 = vmatprep.subr.mxu0 0.0
    %2105 = vmatpush1.msra.mxu0 0.0
    %2106 = vmatprep.subr.mxu0 0.0
    %2107 = vmatpush1.msra.mxu0 0.0
    %2108 = vmatprep.subr.mxu0 0.0
    %2109 = vmatpush1.msra.mxu0 0.0
    %2110 = vmatprep.subr.mxu0 0.0
    %2111 = vmatpush1.msra.mxu0 0.0
    %2112 = vmatprep.subr.mxu0 0.0
    %2113 = vmatpush1.msra.mxu0 0.0
    %2114 = vmatprep.subr.mxu0 0.0
    %2115 = vmatpush1.msra.mxu0 0.0
    %2116 = vmatprep.subr.mxu0 0.0
    %2117 = vmatpush1.msra.mxu0 0.0
    %2118 = vmatprep.subr.mxu0 0.0
    %2119 = vmatpush1.msra.mxu0 0.0
    %2120 = vmatprep.subr.mxu0 0.0
    %2121 = vmatpush1.msra.mxu0 0.0
    %2122 = vmatprep.subr.mxu0 0.0
    %2123 = vmatpush1.msra.mxu0 0.0
    %2124 = vmatprep.subr.mxu0 0.0
    %2125 = vmatpush1.msra.mxu0 0.0
    %2126 = vmatprep.subr.mxu0 0.0
    %2127 = vmatpush1.msra.mxu0 0.0
    %2128 = vmatprep.subr.mxu0 0.0
    %2129 = vmatpush1.msra.mxu0 0.0
    %2130 = vmatprep.subr.mxu0 0.0
    %2131 = vmatpush1.msra.mxu0 0.0
    %2132 = vmatprep.subr.mxu0 0.0
    %2133 = vmatpush1.msra.mxu0 0.0
    %2134 = vmatprep.subr.mxu0 0.0
    %2135 = vmatpush1.msra.mxu0 0.0
    %2136 = vmatprep.subr.mxu0 0.0
    %2137 = vmatpush1.msra.mxu0 0.0
    %2138 = vmatprep.subr.mxu0 0.0
    %2139 = vmatpush1.msra.mxu0 0.0
    %2140 = vmatprep.subr.mxu0 0.0
    %2141 = vmatpush1.msra.mxu0 0.0
    %2142 = vmatprep.subr.mxu0 0.0
    %2143 = vmatpush1.msra.mxu0 0.0
    %2144 = vmatprep.subr.mxu0 0.0
    %2145 = vmatpush1.msra.mxu0 0.0
    %2146 = vmatprep.subr.mxu0 0.0
    %2147 = vmatpush1.msra.mxu0 0.0
    %2148 = vmatprep.subr.mxu0 0.0
    %2149 = vmatpush1.msra.mxu0 0.0
    %2150 = vmatprep.subr.mxu0 0.0
    %2151 = vmatpush1.msra.mxu0 0.0
    %2152 = vmatprep.subr.mxu0 0.0
    %2153 = vmatpush1.msra.mxu0 0.0
    %2154 = vmatprep.subr.mxu0 0.0
    %2155 = vmatpush1.msra.mxu0 0.0
    %2156 = vmatprep.subr.mxu0 0.0
    %2157 = vmatpush1.msra.mxu0 0.0
    %2158 = vmatprep.subr.mxu0 0.0
    %2159 = vmatpush1.msra.mxu0 0.0
    %2160 = vmatprep.subr.mxu0 0.0
    %2161 = vmatpush1.msra.mxu0 0.0
    %2162 = vmatprep.subr.mxu0 0.0
    %2163 = vmatpush1.msra.mxu0 0.0
    %2164 = vmatprep.subr.mxu0 0.0
    %2165 = vmatpush1.msra.mxu0 0.0
    %2166 = vmatprep.mubr.f32.mxu0 0.0
    %2167 = vmatmul.mubr.f32.gmra.mrb[0].mxu0 %v2098
    %v2168 = vpop.f32.mrb[0].mxu0
    %v2169 = vadd.f32 0.0, %v2168
    %v2170 = vpop.f32.mrb[0].mxu0
    %2171 = vdwg.mxu0
    %2173 = vrot.lane.b32.xlu0 %v1835, 32
    %v2174 = vpop.permute.xlu0 %2173
    %2177 = vrot.lane.b32.xlu0 %v2002, 64
    %v2178 = vpop.permute.xlu0 %2177
    %2181 = vrot.lane.b32.xlu0 %v2169, 96
    %v2182 = vpop.permute.xlu0 %2181
    %v2184 = vsel %vm523, %v1668, %v2174
    %v2185 = vsel %vm1205, %v2184, %v2178
    %v2186 = vsel %vm1207, %v2185, %v2182
    %v2187 = vlaneseq
    %v2188 = vshrl.u32 %v2187, 7
    %v2189 = vsub.s32 0, %v2188
    %v2190 = vrot.slane %v1349, %v2189
    %2191 = vmatprep.subr.mxu0 0.0
    %2192 = vmatpush1.msra.mxu0 %v1333
    %2193 = vmatprep.subr.mxu0 0.0
    %2194 = vmatpush1.msra.mxu0 %v1334
    %2195 = vmatprep.subr.mxu0 0.0
    %2196 = vmatpush1.msra.mxu0 %v1335
    %2197 = vmatprep.subr.mxu0 0.0
    %2198 = vmatpush1.msra.mxu0 %v1336
    %2199 = vmatprep.subr.mxu0 0.0
    %2200 = vmatpush1.msra.mxu0 %v1337
    %2201 = vmatprep.subr.mxu0 0.0
    %2202 = vmatpush1.msra.mxu0 %v1338
    %2203 = vmatprep.subr.mxu0 0.0
    %2204 = vmatpush1.msra.mxu0 %v1339
    %2205 = vmatprep.subr.mxu0 0.0
    %2206 = vmatpush1.msra.mxu0 %v1340
    %2207 = vmatprep.subr.mxu0 0.0
    %2208 = vmatpush1.msra.mxu0 %v1341
    %2209 = vmatprep.subr.mxu0 0.0
    %2210 = vmatpush1.msra.mxu0 %v1342
    %2211 = vmatprep.subr.mxu0 0.0
    %2212 = vmatpush1.msra.mxu0 %v1343
    %2213 = vmatprep.subr.mxu0 0.0
    %2214 = vmatpush1.msra.mxu0 %v1344
    %2215 = vmatprep.subr.mxu0 0.0
    %2216 = vmatpush1.msra.mxu0 %v1345
    %2217 = vmatprep.subr.mxu0 0.0
    %2218 = vmatpush1.msra.mxu0 %v1346
    %2219 = vmatprep.subr.mxu0 0.0
    %2220 = vmatpush1.msra.mxu0 %v1347
    %2221 = vmatprep.subr.mxu0 0.0
    %2222 = vmatpush1.msra.mxu0 %v1348
    %2223 = vmatprep.subr.mxu0 0.0
    %2224 = vmatpush1.msra.mxu0 0.0
    %2225 = vmatprep.subr.mxu0 0.0
    %2226 = vmatpush1.msra.mxu0 0.0
    %2227 = vmatprep.subr.mxu0 0.0
    %2228 = vmatpush1.msra.mxu0 0.0
    %2229 = vmatprep.subr.mxu0 0.0
    %2230 = vmatpush1.msra.mxu0 0.0
    %2231 = vmatprep.subr.mxu0 0.0
    %2232 = vmatpush1.msra.mxu0 0.0
    %2233 = vmatprep.subr.mxu0 0.0
    %2234 = vmatpush1.msra.mxu0 0.0
    %2235 = vmatprep.subr.mxu0 0.0
    %2236 = vmatpush1.msra.mxu0 0.0
    %2237 = vmatprep.subr.mxu0 0.0
    %2238 = vmatpush1.msra.mxu0 0.0
    %2239 = vmatprep.subr.mxu0 0.0
    %2240 = vmatpush1.msra.mxu0 0.0
    %2241 = vmatprep.subr.mxu0 0.0
    %2242 = vmatpush1.msra.mxu0 0.0
    %2243 = vmatprep.subr.mxu0 0.0
    %2244 = vmatpush1.msra.mxu0 0.0
    %2245 = vmatprep.subr.mxu0 0.0
    %2246 = vmatpush1.msra.mxu0 0.0
    %2247 = vmatprep.subr.mxu0 0.0
    %2248 = vmatpush1.msra.mxu0 0.0
    %2249 = vmatprep.subr.mxu0 0.0
    %2250 = vmatpush1.msra.mxu0 0.0
    %2251 = vmatprep.subr.mxu0 0.0
    %2252 = vmatpush1.msra.mxu0 0.0
    %2253 = vmatprep.subr.mxu0 0.0
    %2254 = vmatpush1.msra.mxu0 0.0
    %2255 = vmatprep.mubr.f32.mxu0 0.0
    %2256 = vmatmul.mubr.f32.gmra.mrb[0].mxu0 %v2186
    %v2257 = vpop.f32.mrb[0].mxu0
    %v2258 = vadd.f32 %v2190, %v2257
    %v2259 = vpop.f32.mrb[0].mxu0
    %2260 = vdwg.mxu0
    %v2261 = vld [vmem:[#allocation7 + $0x300] sm:$0xff]
    %v2262 = vld [vmem:[#allocation7 + $0x308] sm:$0xff]
    %v2263 = vld [vmem:[#allocation7 + $0x310] sm:$0xff]
    %v2264 = vld [vmem:[#allocation7 + $0x318] sm:$0xff]
    %v2265 = vld [vmem:[#allocation7 + $0x320] sm:$0xff]
    %v2266 = vld [vmem:[#allocation7 + $0x328] sm:$0xff]
    %v2267 = vld [vmem:[#allocation7 + $0x330] sm:$0xff]
    %v2268 = vld [vmem:[#allocation7 + $0x338] sm:$0xff]
    %v2269 = vld [vmem:[#allocation7 + $0x340] sm:$0xff]
    %v2270 = vld [vmem:[#allocation7 + $0x348] sm:$0xff]
    %v2271 = vld [vmem:[#allocation7 + $0x350] sm:$0xff]
    %v2272 = vld [vmem:[#allocation7 + $0x358] sm:$0xff]
    %v2273 = vld [vmem:[#allocation7 + $0x360] sm:$0xff]
    %v2274 = vld [vmem:[#allocation7 + $0x368] sm:$0xff]
    %v2275 = vld [vmem:[#allocation7 + $0x370] sm:$0xff]
    %v2276 = vld [vmem:[#allocation7 + $0x378] sm:$0xff]
    %v2277 = vld [vmem:[#allocation7 + $0x380] sm:$0xff]
    %v2278 = vld [vmem:[#allocation7 + $0x388] sm:$0xff]
    %v2279 = vld [vmem:[#allocation7 + $0x390] sm:$0xff]
    %v2280 = vld [vmem:[#allocation7 + $0x398] sm:$0xff]
    %v2281 = vld [vmem:[#allocation7 + $0x3a0] sm:$0xff]
    %v2282 = vld [vmem:[#allocation7 + $0x3a8] sm:$0xff]
    %v2283 = vld [vmem:[#allocation7 + $0x3b0] sm:$0xff]
    %v2284 = vld [vmem:[#allocation7 + $0x3b8] sm:$0xff]
    %v2285 = vld [vmem:[#allocation7 + $0x3c0] sm:$0xff]
    %v2286 = vld [vmem:[#allocation7 + $0x3c8] sm:$0xff]
    %v2287 = vld [vmem:[#allocation7 + $0x3d0] sm:$0xff]
    %v2288 = vld [vmem:[#allocation7 + $0x3d8] sm:$0xff]
    %v2289 = vld [vmem:[#allocation7 + $0x3e0] sm:$0xff]
    %v2290 = vld [vmem:[#allocation7 + $0x3e8] sm:$0xff]
    %v2291 = vld [vmem:[#allocation7 + $0x3f0] sm:$0xff]
    %v2292 = vld [vmem:[#allocation7 + $0x3f8] sm:$0xff]
    %v2293 = vld [vmem:[#allocation7 + $0x400] sm:$0xff]
    %v2294 = vld [vmem:[#allocation7 + $0x408] sm:$0xff]
    %v2295 = vld [vmem:[#allocation7 + $0x410] sm:$0xff]
    %v2296 = vld [vmem:[#allocation7 + $0x418] sm:$0xff]
    %v2297 = vld [vmem:[#allocation7 + $0x420] sm:$0xff]
    %v2298 = vld [vmem:[#allocation7 + $0x428] sm:$0xff]
    %v2299 = vld [vmem:[#allocation7 + $0x430] sm:$0xff]
    %v2300 = vld [vmem:[#allocation7 + $0x438] sm:$0xff]
    %v2301 = vld [vmem:[#allocation7 + $0x440] sm:$0xff]
    %v2302 = vld [vmem:[#allocation7 + $0x448] sm:$0xff]
    %v2303 = vld [vmem:[#allocation7 + $0x450] sm:$0xff]
    %v2304 = vld [vmem:[#allocation7 + $0x458] sm:$0xff]
    %v2305 = vld [vmem:[#allocation7 + $0x460] sm:$0xff]
    %v2306 = vld [vmem:[#allocation7 + $0x468] sm:$0xff]
    %v2307 = vld [vmem:[#allocation7 + $0x470] sm:$0xff]
    %v2308 = vld [vmem:[#allocation7 + $0x478] sm:$0xff]
    %s2309 = scalar_lea.vmem [#allocation7], 1200
    %v2310 = vld [vmem:[%s2309] ss:$8 sm:$0x7]
    %v2311 = vld [vmem:[#allocation5 + $0x280] sm:$0xff]
    %v2312 = vld [vmem:[#allocation5 + $0x288] sm:$0xff]
    %v2313 = vld [vmem:[#allocation5 + $0x290] sm:$0xff]
    %v2314 = vld [vmem:[#allocation5 + $0x298] sm:$0xff]
    %v2315 = vld [vmem:[#allocation5 + $0x2a0] sm:$0xff]
    %v2316 = vld [vmem:[#allocation5 + $0x2a8] sm:$0xff]
    %v2317 = vld [vmem:[#allocation5 + $0x2b0] sm:$0xff]
    %v2318 = vld [vmem:[#allocation5 + $0x2b8] sm:$0xff]
    %v2319 = vld [vmem:[#allocation5 + $0x2c0] sm:$0xff]
    %v2320 = vld [vmem:[#allocation5 + $0x2c8] sm:$0xff]
    %v2321 = vld [vmem:[#allocation5 + $0x2d0] sm:$0xff]
    %v2322 = vld [vmem:[#allocation5 + $0x2d8] sm:$0xff]
    %v2323 = vld [vmem:[#allocation5 + $0x2e0] sm:$0xff]
    %v2324 = vld [vmem:[#allocation5 + $0x2e8] sm:$0xff]
    %v2325 = vld [vmem:[#allocation5 + $0x2f0] sm:$0xff]
    %v2326 = vld [vmem:[#allocation5 + $0x2f8] sm:$0xff]
    %v2327 = vld [vmem:[#allocation5 + $0x498] sm:$0x1]
    %v2329 = vlaneseq
    %v2330 = vshrl.u32 %v2329, 7
    %v2331 = vsub.s32 0, %v2330
    %v2332 = vrot.slane %v2310, %v2331
    %v2333 = vlaneseq
    %v2334 = vshrl.u32 %v2333, 7
    %v2335 = vsub.s32 1, %v2334
    %v2336 = vrot.slane %v2310, %v2335
    %v2337 = vlaneseq
    %v2338 = vshrl.u32 %v2337, 7
    %v2339 = vsub.s32 2, %v2338
    %v2340 = vrot.slane %v2310, %v2339
    %2344 = vmatprep.subr.mxu0 %v2262
    %2345 = vmatpush1.msra.mxu0 %v2261
    %2346 = vmatprep.subr.mxu0 %v2265
    %2347 = vmatpush1.msra.mxu0 %v2264
    %2348 = vmatprep.subr.mxu0 %v2268
    %2349 = vmatpush1.msra.mxu0 %v2267
    %2350 = vmatprep.subr.mxu0 %v2271
    %2351 = vmatpush1.msra.mxu0 %v2270
    %2352 = vmatprep.subr.mxu0 %v2274
    %2353 = vmatpush1.msra.mxu0 %v2273
    %2354 = vmatprep.subr.mxu0 %v2277
    %2355 = vmatpush1.msra.mxu0 %v2276
    %2356 = vmatprep.subr.mxu0 %v2280
    %2357 = vmatpush1.msra.mxu0 %v2279
    %2358 = vmatprep.subr.mxu0 %v2283
    %2359 = vmatpush1.msra.mxu0 %v2282
    %2360 = vmatprep.subr.mxu0 %v2286
    %2361 = vmatpush1.msra.mxu0 %v2285
    %2362 = vmatprep.subr.mxu0 %v2289
    %2363 = vmatpush1.msra.mxu0 %v2288
    %2364 = vmatprep.subr.mxu0 %v2292
    %2365 = vmatpush1.msra.mxu0 %v2291
    %2366 = vmatprep.subr.mxu0 %v2295
    %2367 = vmatpush1.msra.mxu0 %v2294
    %2368 = vmatprep.subr.mxu0 %v2298
    %2369 = vmatpush1.msra.mxu0 %v2297
    %2370 = vmatprep.subr.mxu0 %v2301
    %2371 = vmatpush1.msra.mxu0 %v2300
    %2372 = vmatprep.subr.mxu0 %v2304
    %2373 = vmatpush1.msra.mxu0 %v2303
    %2374 = vmatprep.subr.mxu0 %v2307
    %2375 = vmatpush1.msra.mxu0 %v2306
    %2376 = vmatprep.subr.mxu0 0.0
    %2377 = vmatpush1.msra.mxu0 0.0
    %2378 = vmatprep.subr.mxu0 0.0
    %2379 = vmatpush1.msra.mxu0 0.0
    %2380 = vmatprep.subr.mxu0 0.0
    %2381 = vmatpush1.msra.mxu0 0.0
    %2382 = vmatprep.subr.mxu0 0.0
    %2383 = vmatpush1.msra.mxu0 0.0
    %2384 = vmatprep.subr.mxu0 0.0
    %2385 = vmatpush1.msra.mxu0 0.0
    %2386 = vmatprep.subr.mxu0 0.0
    %2387 = vmatpush1.msra.mxu0 0.0
    %2388 = vmatprep.subr.mxu0 0.0
    %2389 = vmatpush1.msra.mxu0 0.0
    %2390 = vmatprep.subr.mxu0 0.0
    %2391 = vmatpush1.msra.mxu0 0.0
    %2392 = vmatprep.subr.mxu0 0.0
    %2393 = vmatpush1.msra.mxu0 0.0
    %2394 = vmatprep.subr.mxu0 0.0
    %2395 = vmatpush1.msra.mxu0 0.0
    %2396 = vmatprep.subr.mxu0 0.0
    %2397 = vmatpush1.msra.mxu0 0.0
    %2398 = vmatprep.subr.mxu0 0.0
    %2399 = vmatpush1.msra.mxu0 0.0
    %2400 = vmatprep.subr.mxu0 0.0
    %2401 = vmatpush1.msra.mxu0 0.0
    %2402 = vmatprep.subr.mxu0 0.0
    %2403 = vmatpush1.msra.mxu0 0.0
    %2404 = vmatprep.subr.mxu0 0.0
    %2405 = vmatpush1.msra.mxu0 0.0
    %2406 = vmatprep.subr.mxu0 0.0
    %2407 = vmatpush1.msra.mxu0 0.0
    %2408 = vmatprep.mubr.f32.mxu0 0.0
    %2409 = vmatmul.mubr.f32.gmra.mrb[0].mxu0 %v287
    %v2410 = vpop.f32.mrb[0].mxu0
    %v2411 = vadd.f32 %v2332, %v2410
    %v2412 = vpop.f32.mrb[0].mxu0
    %v2413 = vadd.f32 %v2336, %v2412
    %2414 = vdwg.mxu0
    %2415 = vmatprep.subr.mxu0 0.0
    %2416 = vmatpush1.msra.mxu0 %v2263
    %2417 = vmatprep.subr.mxu0 0.0
    %2418 = vmatpush1.msra.mxu0 %v2266
    %2419 = vmatprep.subr.mxu0 0.0
    %2420 = vmatpush1.msra.mxu0 %v2269
    %2421 = vmatprep.subr.mxu0 0.0
    %2422 = vmatpush1.msra.mxu0 %v2272
    %2423 = vmatprep.subr.mxu0 0.0
    %2424 = vmatpush1.msra.mxu0 %v2275
    %2425 = vmatprep.subr.mxu0 0.0
    %2426 = vmatpush1.msra.mxu0 %v2278
    %2427 = vmatprep.subr.mxu0 0.0
    %2428 = vmatpush1.msra.mxu0 %v2281
    %2429 = vmatprep.subr.mxu0 0.0
    %2430 = vmatpush1.msra.mxu0 %v2284
    %2431 = vmatprep.subr.mxu0 0.0
    %2432 = vmatpush1.msra.mxu0 %v2287
    %2433 = vmatprep.subr.mxu0 0.0
    %2434 = vmatpush1.msra.mxu0 %v2290
    %2435 = vmatprep.subr.mxu0 0.0
    %2436 = vmatpush1.msra.mxu0 %v2293
    %2437 = vmatprep.subr.mxu0 0.0
    %2438 = vmatpush1.msra.mxu0 %v2296
    %2439 = vmatprep.subr.mxu0 0.0
    %2440 = vmatpush1.msra.mxu0 %v2299
    %2441 = vmatprep.subr.mxu0 0.0
    %2442 = vmatpush1.msra.mxu0 %v2302
    %2443 = vmatprep.subr.mxu0 0.0
    %2444 = vmatpush1.msra.mxu0 %v2305
    %2445 = vmatprep.subr.mxu0 0.0
    %2446 = vmatpush1.msra.mxu0 %v2308
    %2447 = vmatprep.subr.mxu0 0.0
    %2448 = vmatpush1.msra.mxu0 0.0
    %2449 = vmatprep.subr.mxu0 0.0
    %2450 = vmatpush1.msra.mxu0 0.0
    %2451 = vmatprep.subr.mxu0 0.0
    %2452 = vmatpush1.msra.mxu0 0.0
    %2453 = vmatprep.subr.mxu0 0.0
    %2454 = vmatpush1.msra.mxu0 0.0
    %2455 = vmatprep.subr.mxu0 0.0
    %2456 = vmatpush1.msra.mxu0 0.0
    %2457 = vmatprep.subr.mxu0 0.0
    %2458 = vmatpush1.msra.mxu0 0.0
    %2459 = vmatprep.subr.mxu0 0.0
    %2460 = vmatpush1.msra.mxu0 0.0
    %2461 = vmatprep.subr.mxu0 0.0
    %2462 = vmatpush1.msra.mxu0 0.0
    %2463 = vmatprep.subr.mxu0 0.0
    %2464 = vmatpush1.msra.mxu0 0.0
    %2465 = vmatprep.subr.mxu0 0.0
    %2466 = vmatpush1.msra.mxu0 0.0
    %2467 = vmatprep.subr.mxu0 0.0
    %2468 = vmatpush1.msra.mxu0 0.0
    %2469 = vmatprep.subr.mxu0 0.0
    %2470 = vmatpush1.msra.mxu0 0.0
    %2471 = vmatprep.subr.mxu0 0.0
    %2472 = vmatpush1.msra.mxu0 0.0
    %2473 = vmatprep.subr.mxu0 0.0
    %2474 = vmatpush1.msra.mxu0 0.0
    %2475 = vmatprep.subr.mxu0 0.0
    %2476 = vmatpush1.msra.mxu0 0.0
    %2477 = vmatprep.subr.mxu0 0.0
    %2478 = vmatpush1.msra.mxu0 0.0
    %2479 = vmatprep.mubr.f32.mxu0 0.0
    %2480 = vmatmul.mubr.f32.gmra.mrb[0].mxu0 %v287
    %v2481 = vpop.f32.mrb[0].mxu0
    %v2482 = vadd.f32 %v2340, %v2481
    %v2483 = vpop.f32.mrb[0].mxu0
    %2484 = vdwg.mxu0
    %v2485 = vmul.f32 %v2411, %v2413
    %vm2486 = vcmask 253952
    %v2487 = vsel %vm2486, %v2485, 0.0
    %2488 = vadd.xlane.f32.xlu0 %v2487
    %v2489 = vpop.xlane.xlu0 %2488
    %v2490 = vmul.f32 %v2489, 0.17677669
    %v2491 = vsub.f32 %v2490, %v2490
    %v2492 = vmul.f32 %v2491, 1.442695
    %v2493 = vpow.pop %v2492
    %v2494 = vadd.f32 %v2493, 0.0
    %v2495 = vrcp.pop %v2494
    %v2496 = vmul.f32 %v2493, %v2495
    %vm2497 = vcmask 7168
    %v2499 = vsel %vm2497, %v2496, 0
    %vm2501 = vcmask 1040384
    %v2503 = vsel %vm2501, %v2482, 0
    %2505 = vmatprep.subr.mxu0 0.0
    %2506 = vmatpush1.msra.mxu0 %v2503
    %2507 = vmatprep.subr.mxu0 0.0
    %2508 = vmatpush1.msra.mxu0 0.0
    %2509 = vmatprep.subr.mxu0 0.0
    %2510 = vmatpush1.msra.mxu0 0.0
    %2511 = vmatprep.subr.mxu0 0.0
    %2512 = vmatpush1.msra.mxu0 0.0
    %2513 = vmatprep.subr.mxu0 0.0
    %2514 = vmatpush1.msra.mxu0 0.0
    %2515 = vmatprep.subr.mxu0 0.0
    %2516 = vmatpush1.msra.mxu0 0.0
    %2517 = vmatprep.subr.mxu0 0.0
    %2518 = vmatpush1.msra.mxu0 0.0
    %2519 = vmatprep.subr.mxu0 0.0
    %2520 = vmatpush1.msra.mxu0 0.0
    %2521 = vmatprep.subr.mxu0 0.0
    %2522 = vmatpush1.msra.mxu0 0.0
    %2523 = vmatprep.subr.mxu0 0.0
    %2524 = vmatpush1.msra.mxu0 0.0
    %2525 = vmatprep.subr.mxu0 0.0
    %2526 = vmatpush1.msra.mxu0 0.0
    %2527 = vmatprep.subr.mxu0 0.0
    %2528 = vmatpush1.msra.mxu0 0.0
    %2529 = vmatprep.subr.mxu0 0.0
    %2530 = vmatpush1.msra.mxu0 0.0
    %2531 = vmatprep.subr.mxu0 0.0
    %2532 = vmatpush1.msra.mxu0 0.0
    %2533 = vmatprep.subr.mxu0 0.0
    %2534 = vmatpush1.msra.mxu0 0.0
    %2535 = vmatprep.subr.mxu0 0.0
    %2536 = vmatpush1.msra.mxu0 0.0
    %2537 = vmatprep.subr.mxu0 0.0
    %2538 = vmatpush1.msra.mxu0 0.0
    %2539 = vmatprep.subr.mxu0 0.0
    %2540 = vmatpush1.msra.mxu0 0.0
    %2541 = vmatprep.subr.mxu0 0.0
    %2542 = vmatpush1.msra.mxu0 0.0
    %2543 = vmatprep.subr.mxu0 0.0
    %2544 = vmatpush1.msra.mxu0 0.0
    %2545 = vmatprep.subr.mxu0 0.0
    %2546 = vmatpush1.msra.mxu0 0.0
    %2547 = vmatprep.subr.mxu0 0.0
    %2548 = vmatpush1.msra.mxu0 0.0
    %2549 = vmatprep.subr.mxu0 0.0
    %2550 = vmatpush1.msra.mxu0 0.0
    %2551 = vmatprep.subr.mxu0 0.0
    %2552 = vmatpush1.msra.mxu0 0.0
    %2553 = vmatprep.subr.mxu0 0.0
    %2554 = vmatpush1.msra.mxu0 0.0
    %2555 = vmatprep.subr.mxu0 0.0
    %2556 = vmatpush1.msra.mxu0 0.0
    %2557 = vmatprep.subr.mxu0 0.0
    %2558 = vmatpush1.msra.mxu0 0.0
    %2559 = vmatprep.subr.mxu0 0.0
    %2560 = vmatpush1.msra.mxu0 0.0
    %2561 = vmatprep.subr.mxu0 0.0
    %2562 = vmatpush1.msra.mxu0 0.0
    %2563 = vmatprep.subr.mxu0 0.0
    %2564 = vmatpush1.msra.mxu0 0.0
    %2565 = vmatprep.subr.mxu0 0.0
    %2566 = vmatpush1.msra.mxu0 0.0
    %2567 = vmatprep.subr.mxu0 0.0
    %2568 = vmatpush1.msra.mxu0 0.0
    %2569 = vmatprep.mubr.f32.mxu0 0.0
    %2570 = vmatmul.mubr.f32.gmra.mrb[0].mxu0 %v2499
    %v2571 = vpop.f32.mrb[0].mxu0
    %v2572 = vadd.f32 0.0, %v2571
    %v2573 = vpop.f32.mrb[0].mxu0
    %2574 = vdwg.mxu0
    %2576 = vrot.lane.b32.xlu0 %v2485, 96
    %v2577 = vpop.permute.xlu0 %2576
    %v2579 = vsel %vm2486, %v2577, 0.0
    %2580 = vadd.xlane.f32.xlu0 %v2579
    %v2581 = vpop.xlane.xlu0 %2580
    %v2582 = vmul.f32 %v2581, 0.17677669
    %v2583 = vsub.f32 %v2582, %v2582
    %v2584 = vmul.f32 %v2583, 1.442695
    %v2585 = vpow.pop %v2584
    %v2586 = vadd.f32 %v2585, 0.0
    %v2587 = vrcp.pop %v2586
    %v2588 = vmul.f32 %v2585, %v2587
    %2589 = vrot.lane.b32.xlu0 %v2482, 96
    %v2590 = vpop.permute.xlu0 %2589
    %v2592 = vsel %vm2497, %v2588, 0
    %v2594 = vsel %vm2501, %v2590, 0
    %2596 = vmatprep.subr.mxu0 0.0
    %2597 = vmatpush1.msra.mxu0 %v2594
    %2598 = vmatprep.subr.mxu0 0.0
    %2599 = vmatpush1.msra.mxu0 0.0
    %2600 = vmatprep.subr.mxu0 0.0
    %2601 = vmatpush1.msra.mxu0 0.0
    %2602 = vmatprep.subr.mxu0 0.0
    %2603 = vmatpush1.msra.mxu0 0.0
    %2604 = vmatprep.subr.mxu0 0.0
    %2605 = vmatpush1.msra.mxu0 0.0
    %2606 = vmatprep.subr.mxu0 0.0
    %2607 = vmatpush1.msra.mxu0 0.0
    %2608 = vmatprep.subr.mxu0 0.0
    %2609 = vmatpush1.msra.mxu0 0.0
    %2610 = vmatprep.subr.mxu0 0.0
    %2611 = vmatpush1.msra.mxu0 0.0
    %2612 = vmatprep.subr.mxu0 0.0
    %2613 = vmatpush1.msra.mxu0 0.0
    %2614 = vmatprep.subr.mxu0 0.0
    %2615 = vmatpush1.msra.mxu0 0.0
    %2616 = vmatprep.subr.mxu0 0.0
    %2617 = vmatpush1.msra.mxu0 0.0
    %2618 = vmatprep.subr.mxu0 0.0
    %2619 = vmatpush1.msra.mxu0 0.0
    %2620 = vmatprep.subr.mxu0 0.0
    %2621 = vmatpush1.msra.mxu0 0.0
    %2622 = vmatprep.subr.mxu0 0.0
    %2623 = vmatpush1.msra.mxu0 0.0
    %2624 = vmatprep.subr.mxu0 0.0
    %2625 = vmatpush1.msra.mxu0 0.0
    %2626 = vmatprep.subr.mxu0 0.0
    %2627 = vmatpush1.msra.mxu0 0.0
    %2628 = vmatprep.subr.mxu0 0.0
    %2629 = vmatpush1.msra.mxu0 0.0
    %2630 = vmatprep.subr.mxu0 0.0
    %2631 = vmatpush1.msra.mxu0 0.0
    %2632 = vmatprep.subr.mxu0 0.0
    %2633 = vmatpush1.msra.mxu0 0.0
    %2634 = vmatprep.subr.mxu0 0.0
    %2635 = vmatpush1.msra.mxu0 0.0
    %2636 = vmatprep.subr.mxu0 0.0
    %2637 = vmatpush1.msra.mxu0 0.0
    %2638 = vmatprep.subr.mxu0 0.0
    %2639 = vmatpush1.msra.mxu0 0.0
    %2640 = vmatprep.subr.mxu0 0.0
    %2641 = vmatpush1.msra.mxu0 0.0
    %2642 = vmatprep.subr.mxu0 0.0
    %2643 = vmatpush1.msra.mxu0 0.0
    %2644 = vmatprep.subr.mxu0 0.0
    %2645 = vmatpush1.msra.mxu0 0.0
    %2646 = vmatprep.subr.mxu0 0.0
    %2647 = vmatpush1.msra.mxu0 0.0
    %2648 = vmatprep.subr.mxu0 0.0
    %2649 = vmatpush1.msra.mxu0 0.0
    %2650 = vmatprep.subr.mxu0 0.0
    %2651 = vmatpush1.msra.mxu0 0.0
    %2652 = vmatprep.subr.mxu0 0.0
    %2653 = vmatpush1.msra.mxu0 0.0
    %2654 = vmatprep.subr.mxu0 0.0
    %2655 = vmatpush1.msra.mxu0 0.0
    %2656 = vmatprep.subr.mxu0 0.0
    %2657 = vmatpush1.msra.mxu0 0.0
    %2658 = vmatprep.subr.mxu0 0.0
    %2659 = vmatpush1.msra.mxu0 0.0
    %2660 = vmatprep.mubr.f32.mxu0 0.0
    %2661 = vmatmul.mubr.f32.gmra.mrb[0].mxu0 %v2592
    %v2662 = vpop.f32.mrb[0].mxu0
    %v2663 = vadd.f32 0.0, %v2662
    %v2664 = vpop.f32.mrb[0].mxu0
    %2665 = vdwg.mxu0
    %2666 = vrot.lane.b32.xlu0 %v2485, 64
    %v2667 = vpop.permute.xlu0 %2666
    %v2669 = vsel %vm2486, %v2667, 0.0
    %2670 = vadd.xlane.f32.xlu0 %v2669
    %v2671 = vpop.xlane.xlu0 %2670
    %v2672 = vmul.f32 %v2671, 0.17677669
    %v2673 = vsub.f32 %v2672, %v2672
    %v2674 = vmul.f32 %v2673, 1.442695
    %v2675 = vpow.pop %v2674
    %v2676 = vadd.f32 %v2675, 0.0
    %v2677 = vrcp.pop %v2676
    %v2678 = vmul.f32 %v2675, %v2677
    %2679 = vrot.lane.b32.xlu0 %v2482, 64
    %v2680 = vpop.permute.xlu0 %2679
    %v2682 = vsel %vm2497, %v2678, 0
    %v2684 = vsel %vm2501, %v2680, 0
    %2686 = vmatprep.subr.mxu0 0.0
    %2687 = vmatpush1.msra.mxu0 %v2684
    %2688 = vmatprep.subr.mxu0 0.0
    %2689 = vmatpush1.msra.mxu0 0.0
    %2690 = vmatprep.subr.mxu0 0.0
    %2691 = vmatpush1.msra.mxu0 0.0
    %2692 = vmatprep.subr.mxu0 0.0
    %2693 = vmatpush1.msra.mxu0 0.0
    %2694 = vmatprep.subr.mxu0 0.0
    %2695 = vmatpush1.msra.mxu0 0.0
    %2696 = vmatprep.subr.mxu0 0.0
    %2697 = vmatpush1.msra.mxu0 0.0
    %2698 = vmatprep.subr.mxu0 0.0
    %2699 = vmatpush1.msra.mxu0 0.0
    %2700 = vmatprep.subr.mxu0 0.0
    %2701 = vmatpush1.msra.mxu0 0.0
    %2702 = vmatprep.subr.mxu0 0.0
    %2703 = vmatpush1.msra.mxu0 0.0
    %2704 = vmatprep.subr.mxu0 0.0
    %2705 = vmatpush1.msra.mxu0 0.0
    %2706 = vmatprep.subr.mxu0 0.0
    %2707 = vmatpush1.msra.mxu0 0.0
    %2708 = vmatprep.subr.mxu0 0.0
    %2709 = vmatpush1.msra.mxu0 0.0
    %2710 = vmatprep.subr.mxu0 0.0
    %2711 = vmatpush1.msra.mxu0 0.0
    %2712 = vmatprep.subr.mxu0 0.0
    %2713 = vmatpush1.msra.mxu0 0.0
    %2714 = vmatprep.subr.mxu0 0.0
    %2715 = vmatpush1.msra.mxu0 0.0
    %2716 = vmatprep.subr.mxu0 0.0
    %2717 = vmatpush1.msra.mxu0 0.0
    %2718 = vmatprep.subr.mxu0 0.0
    %2719 = vmatpush1.msra.mxu0 0.0
    %2720 = vmatprep.subr.mxu0 0.0
    %2721 = vmatpush1.msra.mxu0 0.0
    %2722 = vmatprep.subr.mxu0 0.0
    %2723 = vmatpush1.msra.mxu0 0.0
    %2724 = vmatprep.subr.mxu0 0.0
    %2725 = vmatpush1.msra.mxu0 0.0
    %2726 = vmatprep.subr.mxu0 0.0
    %2727 = vmatpush1.msra.mxu0 0.0
    %2728 = vmatprep.subr.mxu0 0.0
    %2729 = vmatpush1.msra.mxu0 0.0
    %2730 = vmatprep.subr.mxu0 0.0
    %2731 = vmatpush1.msra.mxu0 0.0
    %2732 = vmatprep.subr.mxu0 0.0
    %2733 = vmatpush1.msra.mxu0 0.0
    %2734 = vmatprep.subr.mxu0 0.0
    %2735 = vmatpush1.msra.mxu0 0.0
    %2736 = vmatprep.subr.mxu0 0.0
    %2737 = vmatpush1.msra.mxu0 0.0
    %2738 = vmatprep.subr.mxu0 0.0
    %2739 = vmatpush1.msra.mxu0 0.0
    %2740 = vmatprep.subr.mxu0 0.0
    %2741 = vmatpush1.msra.mxu0 0.0
    %2742 = vmatprep.subr.mxu0 0.0
    %2743 = vmatpush1.msra.mxu0 0.0
    %2744 = vmatprep.subr.mxu0 0.0
    %2745 = vmatpush1.msra.mxu0 0.0
    %2746 = vmatprep.subr.mxu0 0.0
    %2747 = vmatpush1.msra.mxu0 0.0
    %2748 = vmatprep.subr.mxu0 0.0
    %2749 = vmatpush1.msra.mxu0 0.0
    %2750 = vmatprep.mubr.f32.mxu0 0.0
    %2751 = vmatmul.mubr.f32.gmra.mrb[0].mxu0 %v2682
    %v2752 = vpop.f32.mrb[0].mxu0
    %v2753 = vadd.f32 0.0, %v2752
    %v2754 = vpop.f32.mrb[0].mxu0
    %2755 = vdwg.mxu0
    %2756 = vrot.lane.b32.xlu0 %v2485, 32
    %v2757 = vpop.permute.xlu0 %2756
    %v2759 = vsel %vm2486, %v2757, 0.0
    %2760 = vadd.xlane.f32.xlu0 %v2759
    %v2761 = vpop.xlane.xlu0 %2760
    %v2762 = vmul.f32 %v2761, 0.17677669
    %v2763 = vsub.f32 %v2762, %v2762
    %v2764 = vmul.f32 %v2763, 1.442695
    %v2765 = vpow.pop %v2764
    %v2766 = vadd.f32 %v2765, 0.0
    %v2767 = vrcp.pop %v2766
    %v2768 = vmul.f32 %v2765, %v2767
    %2769 = vrot.lane.b32.xlu0 %v2482, 32
    %v2770 = vpop.permute.xlu0 %2769
    %v2772 = vsel %vm2497, %v2768, 0
    %v2774 = vsel %vm2501, %v2770, 0
    %2776 = vmatprep.subr.mxu0 0.0
    %2777 = vmatpush1.msra.mxu0 %v2774
    %2778 = vmatprep.subr.mxu0 0.0
    %2779 = vmatpush1.msra.mxu0 0.0
    %2780 = vmatprep.subr.mxu0 0.0
    %2781 = vmatpush1.msra.mxu0 0.0
    %2782 = vmatprep.subr.mxu0 0.0
    %2783 = vmatpush1.msra.mxu0 0.0
    %2784 = vmatprep.subr.mxu0 0.0
    %2785 = vmatpush1.msra.mxu0 0.0
    %2786 = vmatprep.subr.mxu0 0.0
    %2787 = vmatpush1.msra.mxu0 0.0
    %2788 = vmatprep.subr.mxu0 0.0
    %2789 = vmatpush1.msra.mxu0 0.0
    %2790 = vmatprep.subr.mxu0 0.0
    %2791 = vmatpush1.msra.mxu0 0.0
    %2792 = vmatprep.subr.mxu0 0.0
    %2793 = vmatpush1.msra.mxu0 0.0
    %2794 = vmatprep.subr.mxu0 0.0
    %2795 = vmatpush1.msra.mxu0 0.0
    %2796 = vmatprep.subr.mxu0 0.0
    %2797 = vmatpush1.msra.mxu0 0.0
    %2798 = vmatprep.subr.mxu0 0.0
    %2799 = vmatpush1.msra.mxu0 0.0
    %2800 = vmatprep.subr.mxu0 0.0
    %2801 = vmatpush1.msra.mxu0 0.0
    %2802 = vmatprep.subr.mxu0 0.0
    %2803 = vmatpush1.msra.mxu0 0.0
    %2804 = vmatprep.subr.mxu0 0.0
    %2805 = vmatpush1.msra.mxu0 0.0
    %2806 = vmatprep.subr.mxu0 0.0
    %2807 = vmatpush1.msra.mxu0 0.0
    %2808 = vmatprep.subr.mxu0 0.0
    %2809 = vmatpush1.msra.mxu0 0.0
    %2810 = vmatprep.subr.mxu0 0.0
    %2811 = vmatpush1.msra.mxu0 0.0
    %2812 = vmatprep.subr.mxu0 0.0
    %2813 = vmatpush1.msra.mxu0 0.0
    %2814 = vmatprep.subr.mxu0 0.0
    %2815 = vmatpush1.msra.mxu0 0.0
    %2816 = vmatprep.subr.mxu0 0.0
    %2817 = vmatpush1.msra.mxu0 0.0
    %2818 = vmatprep.subr.mxu0 0.0
    %2819 = vmatpush1.msra.mxu0 0.0
    %2820 = vmatprep.subr.mxu0 0.0
    %2821 = vmatpush1.msra.mxu0 0.0
    %2822 = vmatprep.subr.mxu0 0.0
    %2823 = vmatpush1.msra.mxu0 0.0
    %2824 = vmatprep.subr.mxu0 0.0
    %2825 = vmatpush1.msra.mxu0 0.0
    %2826 = vmatprep.subr.mxu0 0.0
    %2827 = vmatpush1.msra.mxu0 0.0
    %2828 = vmatprep.subr.mxu0 0.0
    %2829 = vmatpush1.msra.mxu0 0.0
    %2830 = vmatprep.subr.mxu0 0.0
    %2831 = vmatpush1.msra.mxu0 0.0
    %2832 = vmatprep.subr.mxu0 0.0
    %2833 = vmatpush1.msra.mxu0 0.0
    %2834 = vmatprep.subr.mxu0 0.0
    %2835 = vmatpush1.msra.mxu0 0.0
    %2836 = vmatprep.subr.mxu0 0.0
    %2837 = vmatpush1.msra.mxu0 0.0
    %2838 = vmatprep.subr.mxu0 0.0
    %2839 = vmatpush1.msra.mxu0 0.0
    %2840 = vmatprep.mubr.f32.mxu0 0.0
    %2841 = vmatmul.mubr.f32.gmra.mrb[0].mxu0 %v2772
    %v2842 = vpop.f32.mrb[0].mxu0
    %v2843 = vadd.f32 0.0, %v2842
    %v2844 = vpop.f32.mrb[0].mxu0
    %2845 = vdwg.mxu0
    %2847 = vrot.lane.b32.xlu0 %v2663, 32
    %v2848 = vpop.permute.xlu0 %2847
    %2851 = vrot.lane.b32.xlu0 %v2753, 64
    %v2852 = vpop.permute.xlu0 %2851
    %2855 = vrot.lane.b32.xlu0 %v2843, 96
    %v2856 = vpop.permute.xlu0 %2855
    %v2858 = vsel %vm523, %v2572, %v2848
    %v2859 = vsel %vm1205, %v2858, %v2852
    %v2860 = vsel %vm1207, %v2859, %v2856
    %2861 = vmatprep.subr.mxu0 0.0
    %2862 = vmatpush1.msra.mxu0 %v2311
    %2863 = vmatprep.subr.mxu0 0.0
    %2864 = vmatpush1.msra.mxu0 %v2312
    %2865 = vmatprep.subr.mxu0 0.0
    %2866 = vmatpush1.msra.mxu0 %v2313
    %2867 = vmatprep.subr.mxu0 0.0
    %2868 = vmatpush1.msra.mxu0 %v2314
    %2869 = vmatprep.subr.mxu0 0.0
    %2870 = vmatpush1.msra.mxu0 %v2315
    %2871 = vmatprep.subr.mxu0 0.0
    %2872 = vmatpush1.msra.mxu0 %v2316
    %2873 = vmatprep.subr.mxu0 0.0
    %2874 = vmatpush1.msra.mxu0 %v2317
    %2875 = vmatprep.subr.mxu0 0.0
    %2876 = vmatpush1.msra.mxu0 %v2318
    %2877 = vmatprep.subr.mxu0 0.0
    %2878 = vmatpush1.msra.mxu0 %v2319
    %2879 = vmatprep.subr.mxu0 0.0
    %2880 = vmatpush1.msra.mxu0 %v2320
    %2881 = vmatprep.subr.mxu0 0.0
    %2882 = vmatpush1.msra.mxu0 %v2321
    %2883 = vmatprep.subr.mxu0 0.0
    %2884 = vmatpush1.msra.mxu0 %v2322
    %2885 = vmatprep.subr.mxu0 0.0
    %2886 = vmatpush1.msra.mxu0 %v2323
    %2887 = vmatprep.subr.mxu0 0.0
    %2888 = vmatpush1.msra.mxu0 %v2324
    %2889 = vmatprep.subr.mxu0 0.0
    %2890 = vmatpush1.msra.mxu0 %v2325
    %2891 = vmatprep.subr.mxu0 0.0
    %2892 = vmatpush1.msra.mxu0 %v2326
    %2893 = vmatprep.subr.mxu0 0.0
    %2894 = vmatpush1.msra.mxu0 0.0
    %2895 = vmatprep.subr.mxu0 0.0
    %2896 = vmatpush1.msra.mxu0 0.0
    %2897 = vmatprep.subr.mxu0 0.0
    %2898 = vmatpush1.msra.mxu0 0.0
    %2899 = vmatprep.subr.mxu0 0.0
    %2900 = vmatpush1.msra.mxu0 0.0
    %2901 = vmatprep.subr.mxu0 0.0
    %2902 = vmatpush1.msra.mxu0 0.0
    %2903 = vmatprep.subr.mxu0 0.0
    %2904 = vmatpush1.msra.mxu0 0.0
    %2905 = vmatprep.subr.mxu0 0.0
    %2906 = vmatpush1.msra.mxu0 0.0
    %2907 = vmatprep.subr.mxu0 0.0
    %2908 = vmatpush1.msra.mxu0 0.0
    %2909 = vmatprep.subr.mxu0 0.0
    %2910 = vmatpush1.msra.mxu0 0.0
    %2911 = vmatprep.subr.mxu0 0.0
    %2912 = vmatpush1.msra.mxu0 0.0
    %2913 = vmatprep.subr.mxu0 0.0
    %2914 = vmatpush1.msra.mxu0 0.0
    %2915 = vmatprep.subr.mxu0 0.0
    %2916 = vmatpush1.msra.mxu0 0.0
    %2917 = vmatprep.subr.mxu0 0.0
    %2918 = vmatpush1.msra.mxu0 0.0
    %2919 = vmatprep.subr.mxu0 0.0
    %2920 = vmatpush1.msra.mxu0 0.0
    %2921 = vmatprep.subr.mxu0 0.0
    %2922 = vmatpush1.msra.mxu0 0.0
    %2923 = vmatprep.subr.mxu0 0.0
    %2924 = vmatpush1.msra.mxu0 0.0
    %2925 = vmatprep.mubr.f32.mxu0 0.0
    %2926 = vmatmul.mubr.f32.gmra.mrb[0].mxu0 %v2860
    %v2927 = vpop.f32.mrb[0].mxu0
    %v2928 = vadd.f32 %v2327, %v2927
    %v2929 = vpop.f32.mrb[0].mxu0
    %2930 = vdwg.mxu0
    %v2931 = vmax.f32 %v1280, 0.0
    %v2932 = vmax.f32 %v2258, 0.0
    %v2933 = vmax.f32 %v2928, 0.0
    %v2935 = vrot.slane %v2933, 6
    %v2936 = vld [vmem:[#allocation5 + $0x300] sm:$0xff]
    %v2937 = vld [vmem:[#allocation5 + $0x308] sm:$0xff]
    %v2938 = vld [vmem:[#allocation5 + $0x310] sm:$0xff]
    %v2939 = vld [vmem:[#allocation5 + $0x318] sm:$0xff]
    %v2940 = vld [vmem:[#allocation5 + $0x320] sm:$0xff]
    %v2941 = vld [vmem:[#allocation5 + $0x328] sm:$0xff]
    %v2942 = vld [vmem:[#allocation5 + $0x330] sm:$0xff]
    %v2943 = vld [vmem:[#allocation5 + $0x338] sm:$0xff]
    %v2944 = vld [vmem:[#allocation5 + $0x340] sm:$0xff]
    %v2945 = vld [vmem:[#allocation5 + $0x348] sm:$0xff]
    %v2946 = vld [vmem:[#allocation5 + $0x350] sm:$0xff]
    %v2947 = vld [vmem:[#allocation5 + $0x358] sm:$0xff]
    %v2948 = vld [vmem:[#allocation5 + $0x360] sm:$0xff]
    %v2949 = vld [vmem:[#allocation5 + $0x368] sm:$0xff]
    %v2950 = vld [vmem:[#allocation5 + $0x370] sm:$0xff]
    %v2951 = vld [vmem:[#allocation5 + $0x378] sm:$0xff]
    %v2952 = vld [vmem:[#allocation5 + $0x380] sm:$0xff]
    %v2953 = vld [vmem:[#allocation5 + $0x388] sm:$0xff]
    %v2954 = vld [vmem:[#allocation5 + $0x390] sm:$0xff]
    %v2955 = vld [vmem:[#allocation5 + $0x398] sm:$0xff]
    %v2956 = vld [vmem:[#allocation5 + $0x3a0] sm:$0xff]
    %v2957 = vld [vmem:[#allocation5 + $0x3a8] sm:$0xff]
    %v2958 = vld [vmem:[#allocation5 + $0x3b0] sm:$0xff]
    %v2959 = vld [vmem:[#allocation5 + $0x3b8] sm:$0xff]
    %v2960 = vld [vmem:[#allocation5 + $0x3c0] sm:$0xff]
    %v2961 = vld [vmem:[#allocation5 + $0x3c8] sm:$0xff]
    %v2962 = vld [vmem:[#allocation5 + $0x3d0] sm:$0xff]
    %v2963 = vld [vmem:[#allocation5 + $0x3d8] sm:$0xff]
    %v2964 = vld [vmem:[#allocation5 + $0x3e0] sm:$0xff]
    %v2965 = vld [vmem:[#allocation5 + $0x3e8] sm:$0xff]
    %v2966 = vld [vmem:[#allocation5 + $0x3f0] sm:$0xff]
    %v2967 = vld [vmem:[#allocation5 + $0x3f8] sm:$0xff]
    %v2968 = vld [vmem:[#allocation5 + $0x400] sm:$0xff]
    %v2969 = vld [vmem:[#allocation5 + $0x408] sm:$0xff]
    %v2970 = vld [vmem:[#allocation5 + $0x410] sm:$0xff]
    %v2971 = vld [vmem:[#allocation5 + $0x418] sm:$0xff]
    %v2972 = vld [vmem:[#allocation5 + $0x420] sm:$0xff]
    %v2973 = vld [vmem:[#allocation5 + $0x428] sm:$0xff]
    %v2974 = vld [vmem:[#allocation5 + $0x430] sm:$0xff]
    %v2975 = vld [vmem:[#allocation5 + $0x438] sm:$0xff]
    %v2976 = vld [vmem:[#allocation5 + $0x440] sm:$0xff]
    %v2977 = vld [vmem:[#allocation5 + $0x448] sm:$0xff]
    %v2978 = vld [vmem:[#allocation5 + $0x450] sm:$0xff]
    %v2979 = vld [vmem:[#allocation5 + $0x458] sm:$0xff]
    %v2980 = vld [vmem:[#allocation5 + $0x460] sm:$0xff]
    %v2981 = vld [vmem:[#allocation5 + $0x468] sm:$0xff]
    %v2982 = vld [vmem:[#allocation5 + $0x470] sm:$0xff]
    %v2983 = vld [vmem:[#allocation5 + $0x478] sm:$0xff]
    %v2984 = vld [vmem:[#allocation5 + $0x4a0] sm:$0x1]
    %v2987 = vrot.slane %v2931, 2
    %v2988 = vrot.slane %v2932, 2
    %v2989 = vrot.slane %v2935, 2
    %2993 = vmatprep.subr.mxu0 0.0
    %2994 = vmatpush1.msra.mxu0 %v2936
    %2995 = vmatprep.subr.mxu0 0.0
    %2996 = vmatpush1.msra.mxu0 %v2937
    %2997 = vmatprep.subr.mxu0 0.0
    %2998 = vmatpush1.msra.mxu0 %v2938
    %2999 = vmatprep.subr.mxu0 0.0
    %3000 = vmatpush1.msra.mxu0 %v2939
    %3001 = vmatprep.subr.mxu0 0.0
    %3002 = vmatpush1.msra.mxu0 %v2940
    %3003 = vmatprep.subr.mxu0 0.0
    %3004 = vmatpush1.msra.mxu0 %v2941
    %3005 = vmatprep.subr.mxu0 0.0
    %3006 = vmatpush1.msra.mxu0 %v2942
    %3007 = vmatprep.subr.mxu0 0.0
    %3008 = vmatpush1.msra.mxu0 %v2943
    %3009 = vmatprep.subr.mxu0 0.0
    %3010 = vmatpush1.msra.mxu0 %v2944
    %3011 = vmatprep.subr.mxu0 0.0
    %3012 = vmatpush1.msra.mxu0 %v2945
    %3013 = vmatprep.subr.mxu0 0.0
    %3014 = vmatpush1.msra.mxu0 %v2946
    %3015 = vmatprep.subr.mxu0 0.0
    %3016 = vmatpush1.msra.mxu0 %v2947
    %3017 = vmatprep.subr.mxu0 0.0
    %3018 = vmatpush1.msra.mxu0 %v2948
    %3019 = vmatprep.subr.mxu0 0.0
    %3020 = vmatpush1.msra.mxu0 %v2949
    %3021 = vmatprep.subr.mxu0 0.0
    %3022 = vmatpush1.msra.mxu0 %v2950
    %3023 = vmatprep.subr.mxu0 0.0
    %3024 = vmatpush1.msra.mxu0 %v2951
    %3025 = vmatprep.subr.mxu0 0.0
    %3026 = vmatpush1.msra.mxu0 %v2952
    %3027 = vmatprep.subr.mxu0 0.0
    %3028 = vmatpush1.msra.mxu0 %v2953
    %3029 = vmatprep.subr.mxu0 0.0
    %3030 = vmatpush1.msra.mxu0 %v2954
    %3031 = vmatprep.subr.mxu0 0.0
    %3032 = vmatpush1.msra.mxu0 %v2955
    %3033 = vmatprep.subr.mxu0 0.0
    %3034 = vmatpush1.msra.mxu0 %v2956
    %3035 = vmatprep.subr.mxu0 0.0
    %3036 = vmatpush1.msra.mxu0 %v2957
    %3037 = vmatprep.subr.mxu0 0.0
    %3038 = vmatpush1.msra.mxu0 %v2958
    %3039 = vmatprep.subr.mxu0 0.0
    %3040 = vmatpush1.msra.mxu0 %v2959
    %3041 = vmatprep.subr.mxu0 0.0
    %3042 = vmatpush1.msra.mxu0 %v2960
    %3043 = vmatprep.subr.mxu0 0.0
    %3044 = vmatpush1.msra.mxu0 %v2961
    %3045 = vmatprep.subr.mxu0 0.0
    %3046 = vmatpush1.msra.mxu0 %v2962
    %3047 = vmatprep.subr.mxu0 0.0
    %3048 = vmatpush1.msra.mxu0 %v2963
    %3049 = vmatprep.subr.mxu0 0.0
    %3050 = vmatpush1.msra.mxu0 %v2964
    %3051 = vmatprep.subr.mxu0 0.0
    %3052 = vmatpush1.msra.mxu0 %v2965
    %3053 = vmatprep.subr.mxu0 0.0
    %3054 = vmatpush1.msra.mxu0 %v2966
    %3055 = vmatprep.subr.mxu0 0.0
    %3056 = vmatpush1.msra.mxu0 %v2967
    %3057 = vmatprep.mubr.f32.mxu0 %v2988
    %3058 = vmatmul.mubr.f32.gmra.mrb[0].mxu0 %v2987
    %v3059 = vpop.f32.mrb[0].mxu0
    %v3060 = vadd.f32 %v2984, %v3059
    %v3061 = vpop.f32.mrb[0].mxu0
    %3062 = vdwg.mxu0
    %3063 = vmatprep.subr.mxu0 0.0
    %3064 = vmatpush1.msra.mxu0 %v2968
    %3065 = vmatprep.subr.mxu0 0.0
    %3066 = vmatpush1.msra.mxu0 %v2969
    %3067 = vmatprep.subr.mxu0 0.0
    %3068 = vmatpush1.msra.mxu0 %v2970
    %3069 = vmatprep.subr.mxu0 0.0
    %3070 = vmatpush1.msra.mxu0 %v2971
    %3071 = vmatprep.subr.mxu0 0.0
    %3072 = vmatpush1.msra.mxu0 %v2972
    %3073 = vmatprep.subr.mxu0 0.0
    %3074 = vmatpush1.msra.mxu0 %v2973
    %3075 = vmatprep.subr.mxu0 0.0
    %3076 = vmatpush1.msra.mxu0 %v2974
    %3077 = vmatprep.subr.mxu0 0.0
    %3078 = vmatpush1.msra.mxu0 %v2975
    %3079 = vmatprep.subr.mxu0 0.0
    %3080 = vmatpush1.msra.mxu0 %v2976
    %3081 = vmatprep.subr.mxu0 0.0
    %3082 = vmatpush1.msra.mxu0 %v2977
    %3083 = vmatprep.subr.mxu0 0.0
    %3084 = vmatpush1.msra.mxu0 %v2978
    %3085 = vmatprep.subr.mxu0 0.0
    %3086 = vmatpush1.msra.mxu0 %v2979
    %3087 = vmatprep.subr.mxu0 0.0
    %3088 = vmatpush1.msra.mxu0 %v2980
    %3089 = vmatprep.subr.mxu0 0.0
    %3090 = vmatpush1.msra.mxu0 %v2981
    %3091 = vmatprep.subr.mxu0 0.0
    %3092 = vmatpush1.msra.mxu0 %v2982
    %3093 = vmatprep.subr.mxu0 0.0
    %3094 = vmatpush1.msra.mxu0 %v2983
    %3095 = vmatprep.subr.mxu0 0.0
    %3096 = vmatpush1.msra.mxu0 0.0
    %3097 = vmatprep.subr.mxu0 0.0
    %3098 = vmatpush1.msra.mxu0 0.0
    %3099 = vmatprep.subr.mxu0 0.0
    %3100 = vmatpush1.msra.mxu0 0.0
    %3101 = vmatprep.subr.mxu0 0.0
    %3102 = vmatpush1.msra.mxu0 0.0
    %3103 = vmatprep.subr.mxu0 0.0
    %3104 = vmatpush1.msra.mxu0 0.0
    %3105 = vmatprep.subr.mxu0 0.0
    %3106 = vmatpush1.msra.mxu0 0.0
    %3107 = vmatprep.subr.mxu0 0.0
    %3108 = vmatpush1.msra.mxu0 0.0
    %3109 = vmatprep.subr.mxu0 0.0
    %3110 = vmatpush1.msra.mxu0 0.0
    %3111 = vmatprep.subr.mxu0 0.0
    %3112 = vmatpush1.msra.mxu0 0.0
    %3113 = vmatprep.subr.mxu0 0.0
    %3114 = vmatpush1.msra.mxu0 0.0
    %3115 = vmatprep.subr.mxu0 0.0
    %3116 = vmatpush1.msra.mxu0 0.0
    %3117 = vmatprep.subr.mxu0 0.0
    %3118 = vmatpush1.msra.mxu0 0.0
    %3119 = vmatprep.subr.mxu0 0.0
    %3120 = vmatpush1.msra.mxu0 0.0
    %3121 = vmatprep.subr.mxu0 0.0
    %3122 = vmatpush1.msra.mxu0 0.0
    %3123 = vmatprep.subr.mxu0 0.0
    %3124 = vmatpush1.msra.mxu0 0.0
    %3125 = vmatprep.subr.mxu0 0.0
    %3126 = vmatpush1.msra.mxu0 0.0
    %3127 = vmatprep.mubr.f32.mxu0 0.0
    %3128 = vmatmul.mubr.f32.gmra.mrb[0].mxu0 %v2989
    %v3129 = vpop.f32.mrb[0].mxu0
    %v3130 = vadd.f32 %v3060, %v3129
    %v3131 = vpop.f32.mrb[0].mxu0
    %3132 = vdwg.mxu0
    %v3133 = vmax.f32 %v3130, 0.0
    %v3134 = vld [vmem:[#allocation8] sm:$0xff]
    %v3135 = vld [vmem:[#allocation8 + $0x8] sm:$0xff]
    %v3136 = vld [vmem:[#allocation8 + $0x10] sm:$0xff]
    %v3137 = vld [vmem:[#allocation8 + $0x18] sm:$0xff]
    %v3138 = vld [vmem:[#allocation8 + $0x20] sm:$0xff]
    %v3139 = vld [vmem:[#allocation8 + $0x28] sm:$0xff]
    %v3140 = vld [vmem:[#allocation8 + $0x30] sm:$0xff]
    %v3141 = vld [vmem:[#allocation8 + $0x38] sm:$0xff]
    %v3142 = vld [vmem:[#allocation8 + $0x40] sm:$0xff]
    %v3143 = vld [vmem:[#allocation8 + $0x48] sm:$0xff]
    %v3144 = vld [vmem:[#allocation8 + $0x50] sm:$0xff]
    %v3145 = vld [vmem:[#allocation8 + $0x58] sm:$0xff]
    %v3146 = vld [vmem:[#allocation8 + $0x60] sm:$0xff]
    %v3147 = vld [vmem:[#allocation8 + $0x68] sm:$0xff]
    %v3148 = vld [vmem:[#allocation8 + $0x70] sm:$0xff]
    %v3149 = vld [vmem:[#allocation8 + $0x78] sm:$0xff]
    %v3150 = vld [vmem:[#allocation8 + $0x80] sm:$0x1]
    %3151 = vmatprep.subr.mxu0 0.0
    %3152 = vmatpush1.msra.mxu0 %v3134
    %3153 = vmatprep.subr.mxu0 0.0
    %3154 = vmatpush1.msra.mxu0 %v3135
    %3155 = vmatprep.subr.mxu0 0.0
    %3156 = vmatpush1.msra.mxu0 %v3136
    %3157 = vmatprep.subr.mxu0 0.0
    %3158 = vmatpush1.msra.mxu0 %v3137
    %3159 = vmatprep.subr.mxu0 0.0
    %3160 = vmatpush1.msra.mxu0 %v3138
    %3161 = vmatprep.subr.mxu0 0.0
    %3162 = vmatpush1.msra.mxu0 %v3139
    %3163 = vmatprep.subr.mxu0 0.0
    %3164 = vmatpush1.msra.mxu0 %v3140
    %3165 = vmatprep.subr.mxu0 0.0
    %3166 = vmatpush1.msra.mxu0 %v3141
    %3167 = vmatprep.subr.mxu0 0.0
    %3168 = vmatpush1.msra.mxu0 %v3142
    %3169 = vmatprep.subr.mxu0 0.0
    %3170 = vmatpush1.msra.mxu0 %v3143
    %3171 = vmatprep.subr.mxu0 0.0
    %3172 = vmatpush1.msra.mxu0 %v3144
    %3173 = vmatprep.subr.mxu0 0.0
    %3174 = vmatpush1.msra.mxu0 %v3145
    %3175 = vmatprep.subr.mxu0 0.0
    %3176 = vmatpush1.msra.mxu0 %v3146
    %3177 = vmatprep.subr.mxu0 0.0
    %3178 = vmatpush1.msra.mxu0 %v3147
    %3179 = vmatprep.subr.mxu0 0.0
    %3180 = vmatpush1.msra.mxu0 %v3148
    %3181 = vmatprep.subr.mxu0 0.0
    %3182 = vmatpush1.msra.mxu0 %v3149
    %3183 = vmatprep.subr.mxu0 0.0
    %3184 = vmatpush1.msra.mxu0 0.0
    %3185 = vmatprep.subr.mxu0 0.0
    %3186 = vmatpush1.msra.mxu0 0.0
    %3187 = vmatprep.subr.mxu0 0.0
    %3188 = vmatpush1.msra.mxu0 0.0
    %3189 = vmatprep.subr.mxu0 0.0
    %3190 = vmatpush1.msra.mxu0 0.0
    %3191 = vmatprep.subr.mxu0 0.0
    %3192 = vmatpush1.msra.mxu0 0.0
    %3193 = vmatprep.subr.mxu0 0.0
    %3194 = vmatpush1.msra.mxu0 0.0
    %3195 = vmatprep.subr.mxu0 0.0
    %3196 = vmatpush1.msra.mxu0 0.0
    %3197 = vmatprep.subr.mxu0 0.0
    %3198 = vmatpush1.msra.mxu0 0.0
    %3199 = vmatprep.subr.mxu0 0.0
    %3200 = vmatpush1.msra.mxu0 0.0
    %3201 = vmatprep.subr.mxu0 0.0
    %3202 = vmatpush1.msra.mxu0 0.0
    %3203 = vmatprep.subr.mxu0 0.0
    %3204 = vmatpush1.msra.mxu0 0.0
    %3205 = vmatprep.subr.mxu0 0.0
    %3206 = vmatpush1.msra.mxu0 0.0
    %3207 = vmatprep.subr.mxu0 0.0
    %3208 = vmatpush1.msra.mxu0 0.0
    %3209 = vmatprep.subr.mxu0 0.0
    %3210 = vmatpush1.msra.mxu0 0.0
    %3211 = vmatprep.subr.mxu0 0.0
    %3212 = vmatpush1.msra.mxu0 0.0
    %3213 = vmatprep.subr.mxu0 0.0
    %3214 = vmatpush1.msra.mxu0 0.0
    %3215 = vmatprep.mubr.f32.mxu0 0.0
    %3216 = vmatmul.mubr.f32.gmra.mrb[0].mxu0 %v3133
    %v3217 = vpop.f32.mrb[0].mxu0
    %v3218 = vadd.f32 %v3150, %v3217
    %v3219 = vpop.f32.mrb[0].mxu0
    %3220 = vdwg.mxu0
    %3221 = vst [vmem:[#allocation10] sm:$0x1] %v3218
    // Predicated region
    $region34: #{tpu_custom_call.1} parent=1 // pred_check
      _
    $region35: #{tpu_custom_call.1} parent=1 // pred_check_branch
      %3223 = sbr.rel (0) target = $region37
    $region36: #{tpu_custom_call.1} parent=1 // pred_region
      %s3225 = ssub.s32 16, 16
      %3226 = vsyncadd [#allocation4], %s3225
      %s3228 = sshll.u32 [#allocation10], 4
      %s3229 = int_to_ptr.vmem [resolvable:$true] %s3228
      %3231 = dma.vmem_to_hbm [thread:$0]  %s3229, 16, %s4, [#allocation4]
    $region37: #{tpu_custom_call.1} parent=1 // pred_fallthru
      _
    // Predicated region
    $region38: #{tpu_custom_call.1} parent=1 // pred_check
      _
    $region39: #{tpu_custom_call.1} parent=1 // pred_check_branch
      %3233 = sbr.rel (0) target = $region41
    $region40: #{tpu_custom_call.1} parent=1 // pred_region
      %3234 = dma.done [#allocation4], 16
    $region41: #{tpu_custom_call.1} parent=1 // pred_fallthru
      _
    %3235 = vsyncpa [#allocation3], 1
    %3236 = vsyncpa [#allocation6], 1
    %3237 = vsyncpa [#allocation9], 1
    %3238 = vsyncpa [#allocation4], 1

</llo_original>
